<compile_context>
chip_gen: v6e
topology: v6e:2x2x1
jax: 0.10.0
libtpu: 0.0.40
codegen_flags: <defaults>
</compile_context>

<pallas_src>
import math

import jax
import jax.numpy as jnp
import numpy as np
from jax.experimental import pallas as pl
from jax.experimental.pallas import tpu as pltpu


def _round_up(x, n):
    return ((x + n - 1) // n) * n


# -----------------------------------------------------------------------------
# Kernel factory (static dims closed over).  One batch tile per grid step,
# weights resident across steps, everything batch-on-lanes.
# -----------------------------------------------------------------------------
def _make_xdeepfm_kernel(m, d, h1, h2, u2, c0):
    f_total = c0 + h1 + h2 + u2

    def kernel(
        front_ref,    # (c0, TB)      [emb d-major | dense | ones | 0-pad]
        cin_w1_ref,   # (h1, m*m)     Conv1d layer 1, (out, in=h*m+f)
        cin_w2_ref,   # (h2, h1*m)
        dnn_w1_ref,   # (u1, c0)      [w1_sparse(d-major) | w1_dense | b1 | 0]
        dnn_w2_ref,   # (u2, u1)
        dnn_b2_ref,   # (u2, 1)
        head_w_ref,   # (1, c0+h1+h2+u2)  fused output head
        out_ref,      # (1, TB)       lane-dense sigmoid(logits)
    ):
        tb = front_ref.shape[1]

        # ---------------- CIN (direct=True) --------------------------------
        # Loop over the embedding dims (static unroll, d is tiny).  Per dim:
        #   z[h*m+f, b] = x_{k-1}[h, b] * x0[f, b]     (lane-dense, TB lanes)
        #   x_k = W_k @ z                              (MXU, output (hk, TB))
        # The sum-pool over embedding dims is a plain accumulation, so no
        # lane/sublane relayout is needed anywhere.
        w1 = cin_w1_ref[...]                              # (h1, m*m)
        w2 = cin_w2_ref[...]                              # (h2, h1*m)
        p1 = jnp.zeros((h1, tb), jnp.float32)
        p2 = jnp.zeros((h2, tb), jnp.float32)
        for dd in range(d):                               # static unroll
            x0_dd = front_ref[dd * m:(dd + 1) * m, :]     # (m, TB)
            z1 = (x0_dd[:, None, :] * x0_dd[None, :, :]).reshape(m * m, tb)
            x1_dd = jnp.dot(w1, z1, preferred_element_type=jnp.float32)
            p1 = p1 + x1_dd                               # sum-pool layer 1
            z2 = (x1_dd[:, None, :] * x0_dd[None, :, :]).reshape(h1 * m, tb)
            p2 = p2 + jnp.dot(w2, z2, preferred_element_type=jnp.float32)

        # ---------------- DNN (W @ x, batch on lanes) -----------------------
        # dnn_b1 is folded into dnn_w1 via the ones row of `front`.
        h = jnp.maximum(
            jnp.dot(dnn_w1_ref[...], front_ref[...],
                    preferred_element_type=jnp.float32), 0.0)       # (u1, TB)
        h = jnp.maximum(
            jnp.dot(dnn_w2_ref[...], h, preferred_element_type=jnp.float32)
            + dnn_b2_ref[...], 0.0)                                 # (u2, TB)

        # ---------------- fused output head ---------------------------------
        # linear part (ones over emb rows + lin_w over dense + biases on the
        # ones row), the two CIN fc slices and dnn_linear are one packed row
        # vector; evaluated against data that is already live so no slab /
        # transpose is needed.  All outputs are (1, TB) lane-dense.
        hw = head_w_ref[...]                               # (1, f_total)
        logit = jnp.dot(hw[:, 0:c0], front_ref[...],
                        preferred_element_type=jnp.float32)
        logit = logit + jnp.dot(hw[:, c0:c0 + h1], p1,
                                preferred_element_type=jnp.float32)
        logit = logit + jnp.dot(hw[:, c0 + h1:c0 + h1 + h2], p2,
                                preferred_element_type=jnp.float32)
        logit = logit + jnp.dot(hw[:, c0 + h1 + h2:f_total], h,
                                preferred_element_type=jnp.float32)
        out_ref[...] = jax.nn.sigmoid(logit)

    return kernel


# -----------------------------------------------------------------------------
# Wrapper: embedding gather / padding / weight packing in JAX, rest in kernel.
# -----------------------------------------------------------------------------
def xdeepfm_forward(dense_input, sparse_input, params, block_b=1024):
    tables = params["embed"]
    b, nd = dense_input.shape
    m = sparse_input.shape[1]
    emb = jnp.stack(
        [tables[i][sparse_input[:, i]] for i in range(m)], axis=1)   # (B, m, d)
    d = emb.shape[2]
    dm = d * m

    h1 = params["cin_w1_t"].shape[1]
    h2 = params["cin_w2_t"].shape[1]
    u1, u2 = params["dnn_w2"].shape

    c0 = _round_up(nd + 1 + dm, 8)          # front rows (8-aligned, zero pad)
    n_pad_rows = c0 - (nd + 1 + dm)
    f_total = c0 + h1 + h2 + u2

    # ---- batch tiling: batch on lanes, tile a multiple of 128 ---------------
    b128 = _round_up(b, 128)
    tb = min(block_b, b128)
    if b128 // tb < 2 and b128 >= 256:
        # keep >= 2 grid steps so the ("parallel",) batch axis can be sharded
        # across both v7x TensorCores
        tb = _round_up(b128 // 2, 128)
    b_pad = _round_up(b128, tb)
    pad = b_pad - b

    dense_p = jnp.pad(dense_input.astype(jnp.float32), ((0, pad), (0, 0)))
    emb_p = jnp.pad(emb.astype(jnp.float32), ((0, pad), (0, 0), (0, 0)))
    # d-major embedding rows: row = dim*m + field
    emb_dmaj = jnp.transpose(emb_p, (2, 1, 0)).reshape(dm, b_pad)

    parts = [emb_dmaj, dense_p.T, jnp.ones((1, b_pad), jnp.float32)]
    if n_pad_rows:
        parts.append(jnp.zeros((n_pad_rows, b_pad), jnp.float32))
    front = jnp.concatenate(parts, axis=0)                        # (c0, B_pad)

    # ---- weight packing (param-sized, once per call) -------------------------
    # DNN first layer: permute the sparse slice from PyTorch flatten order
    # (field*d + dim) to the kernel's d-major order (dim*m + field); fold b1
    # via the ones row; zero columns for the front pad rows.
    w1b_perm = params["dnn_w1b"].reshape(m, d, u1).transpose(1, 0, 2).reshape(dm, u1)
    rows = [w1b_perm, params["dnn_w1a"], params["dnn_b1"]]
    if n_pad_rows:
        rows.append(jnp.zeros((n_pad_rows, u1), jnp.float32))
    dnn_w1 = jnp.concatenate(rows, axis=0).T                      # (u1, c0)
    dnn_w2 = params["dnn_w2"].T                                   # (u2, u1)
    dnn_b2 = params["dnn_b2"].T                                   # (u2, 1)
    cin_w1 = params["cin_w1_t"].T                                 # (h1, m*m)
    cin_w2 = params["cin_w2_t"].T                                 # (h2, h1*m)

    head_rows = [jnp.ones((dm, 1), jnp.float32),          # emb rows -> sum(emb)
                 params["lin_w"],                          # dense rows
                 params["lin_b"] + params["cin_fc_b"]]     # ones row -> biases
    if n_pad_rows:
        head_rows.append(jnp.zeros((n_pad_rows, 1), jnp.float32))
    head_rows += [params["cin_fc_w1"], params["cin_fc_w2"], params["dnn_out_w"]]
    head_w = jnp.concatenate(head_rows, axis=0).T                 # (1, f_total)

    # ---- cost estimate (advisory) --------------------------------------------
    per_b_cin = d * (m * m * (1 + 2 * h1) + h1 + h1 * m * (1 + 2 * h2) + h2)
    per_b_dnn = 2 * c0 * u1 + 2 * u1 * u2 + 3 * (u1 + u2)
    per_b_head = 2 * f_total + 8
    flops = int(b_pad * (per_b_cin + per_b_dnn + per_b_head))
    bytes_accessed = int(4 * (front.size + b_pad + cin_w1.size + cin_w2.size
                              + dnn_w1.size + dnn_w2.size + dnn_b2.size
                              + head_w.size))

    kernel = _make_xdeepfm_kernel(m, d, h1, h2, u2, c0)
    grid = (b_pad // tb,)
    fixed = lambda i: (0, 0)

    out = pl.pallas_call(
        kernel,
        out_shape=jax.ShapeDtypeStruct((1, b_pad), jnp.float32),
        grid=grid,
        in_specs=[
            pl.BlockSpec((c0, tb), lambda i: (0, i)),
            pl.BlockSpec((h1, m * m), fixed),
            pl.BlockSpec((h2, h1 * m), fixed),
            pl.BlockSpec((u1, c0), fixed),
            pl.BlockSpec((u2, u1), fixed),
            pl.BlockSpec((u2, 1), fixed),
            pl.BlockSpec((1, f_total), fixed),
        ],
        out_specs=pl.BlockSpec((1, tb), lambda i: (0, i)),
        compiler_params=pltpu.CompilerParams(
            dimension_semantics=("parallel",),
            vmem_limit_bytes=32 * 1024 * 1024),
        cost_estimate=pl.CostEstimate(flops=flops, transcendentals=int(b_pad),
                                      bytes_accessed=bytes_accessed),
    )(front, cin_w1, cin_w2, dnn_w1, dnn_w2, dnn_b2, head_w)

    return out[0, :b].reshape(b, 1)


# -----------------------------------------------------------------------------
# Pure-JAX reference (mirrors the PyTorch semantics) for checking.
# -----------------------------------------------------------------------------
def reference_forward(dense_input, sparse_input, params):
    tables = params["embed"]
    emb = jnp.stack(
        [tables[i][sparse_input[:, i]] for i in range(len(tables))], axis=1
    )                                                           # (B, m, d)
    B, m, d = emb.shape
    emb_flat = emb.reshape(B, m * d)

    lin = dense_input @ params["lin_w"] + params["lin_b"]
    lin = lin + jnp.sum(emb_flat, axis=1, keepdims=True)

    x0 = emb                                                    # (B, m, d)

    def layer(xk, w_t):
        z = jnp.einsum("bhd,bmd->bhmd", xk, x0).reshape(B, -1, d)
        return jnp.einsum("bjd,jo->bod", z, w_t)

    x1 = layer(x0, params["cin_w1_t"])
    x2 = layer(x1, params["cin_w2_t"])
    cin = (jnp.sum(x1, -1) @ params["cin_fc_w1"]
           + jnp.sum(x2, -1) @ params["cin_fc_w2"]
           + params["cin_fc_b"])

    h = jax.nn.relu(dense_input @ params["dnn_w1a"]
                    + emb_flat @ params["dnn_w1b"] + params["dnn_b1"])
    h = jax.nn.relu(h @ params["dnn_w2"] + params["dnn_b2"])
    dnn = h @ params["dnn_out_w"]

    return jax.nn.sigmoid(lin + cin + dnn)


# -----------------------------------------------------------------------------
# Deterministic synthetic parameters (xavier-normal-style).
# -----------------------------------------------------------------------------
def xavier_normal(key, shape, fan_in, fan_out):
    std = math.sqrt(2.0 / (fan_in + fan_out))
    return std * jax.random.normal(key, shape, dtype=jnp.float32)


def init_params(key, n_dense, vocabs, embed_dim, cin_layers, dnn_units):
    m = len(vocabs)
    h1, h2 = cin_layers
    u1, u2 = dnn_units
    dnn_in = n_dense + m * embed_dim

    keys = jax.random.split(key, 16)
    p = {}
    p["embed"] = [
        xavier_normal(keys[i], (vocabs[i], embed_dim), vocabs[i], embed_dim)
        for i in range(m)
    ]
    p["lin_w"] = xavier_normal(keys[4], (n_dense, 1), n_dense, 1)
    p["lin_b"] = jnp.zeros((1, 1), jnp.float32)

    # Conv1d weights (out, in, 1) stored pre-transposed as (in, out)
    p["cin_w1_t"] = xavier_normal(keys[5], (m * m, h1), m * m, h1)
    p["cin_w2_t"] = xavier_normal(keys[6], (h1 * m, h2), h1 * m, h2)
    p["cin_fc_w1"] = xavier_normal(keys[7], (h1, 1), h1 + h2, 1)
    p["cin_fc_w2"] = xavier_normal(keys[8], (h2, 1), h1 + h2, 1)
    p["cin_fc_b"] = jnp.zeros((1, 1), jnp.float32)

    w1 = xavier_normal(keys[9], (dnn_in, u1), dnn_in, u1)
    p["dnn_w1a"] = w1[:n_dense]                 # dense slice
    p["dnn_w1b"] = w1[n_dense:]                 # sparse slice (field-major)
    p["dnn_b1"] = jnp.zeros((1, u1), jnp.float32)
    p["dnn_w2"] = xavier_normal(keys[10], (u1, u2), u1, u2)
    p["dnn_b2"] = jnp.zeros((1, u2), jnp.float32)
    p["dnn_out_w"] = xavier_normal(keys[11], (u2, 1), u2, 1)
    return p


if __name__ == "__main__":
    B = 200                     # non-multiple of the 128 batch tile -> exercises
                                # padding and a 2-step "parallel" grid
    N_DENSE = 4
    VOCABS = [10, 20, 30, 40]   # m = 4 sparse fields
    EMBED_DIM = 8
    CIN_LAYERS = [8, 8]         # cin_direct = True
    DNN_UNITS = [32, 16]        # dropout_rate = 0.0, use_bn = False (inference)

    key = jax.random.PRNGKey(0)
    key, k_params, k_dense = jax.random.split(key, 3)
    params = init_params(k_params, N_DENSE, VOCABS, EMBED_DIM, CIN_LAYERS, DNN_UNITS)

    dense_input = jax.random.normal(k_dense, (B, N_DENSE), dtype=jnp.float32)
    cols = []
    for i, v in enumerate(VOCABS):
        key, sk = jax.random.split(key)
        cols.append(jax.random.randint(sk, (B,), 0, v, dtype=jnp.int32))
    sparse_input = jnp.stack(cols, axis=1)                      # (B, m) int32

    out = xdeepfm_forward(dense_input, sparse_input, params)
    out = jax.block_until_ready(out)

    ref = jax.block_until_ready(reference_forward(dense_input, sparse_input, params))

    np.testing.assert_allclose(np.asarray(out), np.asarray(ref),
                               rtol=1e-3, atol=1e-3)
    assert out.shape == (B, 1)
    print("KERNEL_OK")
</pallas_src>

<mosaic_0001>
module attributes {stable_mosaic.version = 11 : i64} {
  func.func @kernel(%arg0: i32, %arg1: memref<40x128xf32, #tpu.memory_space<vmem>>, %arg2: memref<8x16xf32, #tpu.memory_space<vmem>>, %arg3: memref<8x32xf32, #tpu.memory_space<vmem>>, %arg4: memref<32x40xf32, #tpu.memory_space<vmem>>, %arg5: memref<16x32xf32, #tpu.memory_space<vmem>>, %arg6: memref<16x1xf32, #tpu.memory_space<vmem>>, %arg7: memref<1x72xf32, #tpu.memory_space<vmem>>, %arg8: memref<1x128xf32, #tpu.memory_space<vmem>>) attributes {dimension_semantics = [#tpu.dimension_semantics<parallel>], iteration_bounds = array<i64: 2>, scalar_prefetch = 0 : i64, scratch_operands = 0 : i64, tpu.core_type = #tpu.core_type<tc>, window_params = [{transform_indices = @transform_0, window_bounds = array<i64: 40, 128>}, {pipeline_mode = #tpu.pipeline_mode<synchronous>, transform_indices = @transform_1, window_bounds = array<i64: 8, 16>}, {pipeline_mode = #tpu.pipeline_mode<synchronous>, transform_indices = @transform_2, window_bounds = array<i64: 8, 32>}, {pipeline_mode = #tpu.pipeline_mode<synchronous>, transform_indices = @transform_3, window_bounds = array<i64: 32, 40>}, {pipeline_mode = #tpu.pipeline_mode<synchronous>, transform_indices = @transform_4, window_bounds = array<i64: 16, 32>}, {pipeline_mode = #tpu.pipeline_mode<synchronous>, transform_indices = @transform_5, window_bounds = array<i64: 16, 1>}, {pipeline_mode = #tpu.pipeline_mode<synchronous>, transform_indices = @transform_6, window_bounds = array<i64: 1, 72>}, {transform_indices = @transform_7, window_bounds = array<i64: 1, 128>}]} {
    %c0 = arith.constant 0 : index
    %c0_0 = arith.constant 0 : index
    %0 = vector.load %arg2[%c0, %c0_0] : memref<8x16xf32, #tpu.memory_space<vmem>>, vector<8x16xf32>
    %c0_1 = arith.constant 0 : index
    %c0_2 = arith.constant 0 : index
    %1 = vector.load %arg3[%c0_1, %c0_2] : memref<8x32xf32, #tpu.memory_space<vmem>>, vector<8x32xf32>
    %cst = arith.constant 0.000000e+00 : f32
    %2 = vector.broadcast %cst : f32 to vector<8x128xf32>
    %cst_3 = arith.constant 0.000000e+00 : f32
    %3 = vector.broadcast %cst_3 : f32 to vector<8x128xf32>
    %c0_4 = arith.constant 0 : index
    %c0_5 = arith.constant 0 : index
    %4 = vector.load %arg1[%c0_4, %c0_5] : memref<40x128xf32, #tpu.memory_space<vmem>>, vector<4x128xf32>
    %5 = vector.shape_cast %4 : vector<4x128xf32> to vector<4x1x128xf32>
    %6 = vector.shape_cast %4 : vector<4x128xf32> to vector<1x4x128xf32>
    %7 = vector.broadcast %5 : vector<4x1x128xf32> to vector<4x4x128xf32>
    %8 = vector.broadcast %6 : vector<1x4x128xf32> to vector<4x4x128xf32>
    %9 = arith.mulf %7, %8 : vector<4x4x128xf32>
    %10 = vector.shape_cast %9 : vector<4x4x128xf32> to vector<16x128xf32>
    %cst_6 = arith.constant dense<0.000000e+00> : vector<8x128xf32>
    %11 = tpu.matmul %0, %10, %cst_6 {dimension_numbers = #tpu.dot_dimension_numbers<[1], [0], [0], [1], [0, 0, 1, 1], [], []>} : vector<8x16xf32>, vector<16x128xf32>, vector<8x128xf32> -> vector<8x128xf32>
    %12 = arith.addf %2, %11 : vector<8x128xf32>
    %13 = vector.shape_cast %11 : vector<8x128xf32> to vector<8x1x128xf32>
    %14 = vector.shape_cast %4 : vector<4x128xf32> to vector<1x4x128xf32>
    %15 = vector.broadcast %13 : vector<8x1x128xf32> to vector<8x4x128xf32>
    %16 = vector.broadcast %14 : vector<1x4x128xf32> to vector<8x4x128xf32>
    %17 = arith.mulf %15, %16 : vector<8x4x128xf32>
    %18 = vector.shape_cast %17 : vector<8x4x128xf32> to vector<32x128xf32>
    %cst_7 = arith.constant dense<0.000000e+00> : vector<8x128xf32>
    %19 = tpu.matmul %1, %18, %cst_7 {dimension_numbers = #tpu.dot_dimension_numbers<[1], [0], [0], [1], [0, 0, 1, 1], [], []>} : vector<8x32xf32>, vector<32x128xf32>, vector<8x128xf32> -> vector<8x128xf32>
    %20 = arith.addf %3, %19 : vector<8x128xf32>
    %c4 = arith.constant 4 : index
    %c0_8 = arith.constant 0 : index
    %21 = vector.load %arg1[%c4, %c0_8] : memref<40x128xf32, #tpu.memory_space<vmem>>, vector<4x128xf32>
    %22 = vector.shape_cast %21 : vector<4x128xf32> to vector<4x1x128xf32>
    %23 = vector.shape_cast %21 : vector<4x128xf32> to vector<1x4x128xf32>
    %24 = vector.broadcast %22 : vector<4x1x128xf32> to vector<4x4x128xf32>
    %25 = vector.broadcast %23 : vector<1x4x128xf32> to vector<4x4x128xf32>
    %26 = arith.mulf %24, %25 : vector<4x4x128xf32>
    %27 = vector.shape_cast %26 : vector<4x4x128xf32> to vector<16x128xf32>
    %cst_9 = arith.constant dense<0.000000e+00> : vector<8x128xf32>
    %28 = tpu.matmul %0, %27, %cst_9 {dimension_numbers = #tpu.dot_dimension_numbers<[1], [0], [0], [1], [0, 0, 1, 1], [], []>} : vector<8x16xf32>, vector<16x128xf32>, vector<8x128xf32> -> vector<8x128xf32>
    %29 = arith.addf %12, %28 : vector<8x128xf32>
    %30 = vector.shape_cast %28 : vector<8x128xf32> to vector<8x1x128xf32>
    %31 = vector.shape_cast %21 : vector<4x128xf32> to vector<1x4x128xf32>
    %32 = vector.broadcast %30 : vector<8x1x128xf32> to vector<8x4x128xf32>
    %33 = vector.broadcast %31 : vector<1x4x128xf32> to vector<8x4x128xf32>
    %34 = arith.mulf %32, %33 : vector<8x4x128xf32>
    %35 = vector.shape_cast %34 : vector<8x4x128xf32> to vector<32x128xf32>
    %cst_10 = arith.constant dense<0.000000e+00> : vector<8x128xf32>
    %36 = tpu.matmul %1, %35, %cst_10 {dimension_numbers = #tpu.dot_dimension_numbers<[1], [0], [0], [1], [0, 0, 1, 1], [], []>} : vector<8x32xf32>, vector<32x128xf32>, vector<8x128xf32> -> vector<8x128xf32>
    %37 = arith.addf %20, %36 : vector<8x128xf32>
    %c8 = arith.constant 8 : index
    %c0_11 = arith.constant 0 : index
    %38 = vector.load %arg1[%c8, %c0_11] : memref<40x128xf32, #tpu.memory_space<vmem>>, vector<4x128xf32>
    %39 = vector.shape_cast %38 : vector<4x128xf32> to vector<4x1x128xf32>
    %40 = vector.shape_cast %38 : vector<4x128xf32> to vector<1x4x128xf32>
    %41 = vector.broadcast %39 : vector<4x1x128xf32> to vector<4x4x128xf32>
    %42 = vector.broadcast %40 : vector<1x4x128xf32> to vector<4x4x128xf32>
    %43 = arith.mulf %41, %42 : vector<4x4x128xf32>
    %44 = vector.shape_cast %43 : vector<4x4x128xf32> to vector<16x128xf32>
    %cst_12 = arith.constant dense<0.000000e+00> : vector<8x128xf32>
    %45 = tpu.matmul %0, %44, %cst_12 {dimension_numbers = #tpu.dot_dimension_numbers<[1], [0], [0], [1], [0, 0, 1, 1], [], []>} : vector<8x16xf32>, vector<16x128xf32>, vector<8x128xf32> -> vector<8x128xf32>
    %46 = arith.addf %29, %45 : vector<8x128xf32>
    %47 = vector.shape_cast %45 : vector<8x128xf32> to vector<8x1x128xf32>
    %48 = vector.shape_cast %38 : vector<4x128xf32> to vector<1x4x128xf32>
    %49 = vector.broadcast %47 : vector<8x1x128xf32> to vector<8x4x128xf32>
    %50 = vector.broadcast %48 : vector<1x4x128xf32> to vector<8x4x128xf32>
    %51 = arith.mulf %49, %50 : vector<8x4x128xf32>
    %52 = vector.shape_cast %51 : vector<8x4x128xf32> to vector<32x128xf32>
    %cst_13 = arith.constant dense<0.000000e+00> : vector<8x128xf32>
    %53 = tpu.matmul %1, %52, %cst_13 {dimension_numbers = #tpu.dot_dimension_numbers<[1], [0], [0], [1], [0, 0, 1, 1], [], []>} : vector<8x32xf32>, vector<32x128xf32>, vector<8x128xf32> -> vector<8x128xf32>
    %54 = arith.addf %37, %53 : vector<8x128xf32>
    %c12 = arith.constant 12 : index
    %c0_14 = arith.constant 0 : index
    %55 = vector.load %arg1[%c12, %c0_14] : memref<40x128xf32, #tpu.memory_space<vmem>>, vector<4x128xf32>
    %56 = vector.shape_cast %55 : vector<4x128xf32> to vector<4x1x128xf32>
    %57 = vector.shape_cast %55 : vector<4x128xf32> to vector<1x4x128xf32>
    %58 = vector.broadcast %56 : vector<4x1x128xf32> to vector<4x4x128xf32>
    %59 = vector.broadcast %57 : vector<1x4x128xf32> to vector<4x4x128xf32>
    %60 = arith.mulf %58, %59 : vector<4x4x128xf32>
    %61 = vector.shape_cast %60 : vector<4x4x128xf32> to vector<16x128xf32>
    %cst_15 = arith.constant dense<0.000000e+00> : vector<8x128xf32>
    %62 = tpu.matmul %0, %61, %cst_15 {dimension_numbers = #tpu.dot_dimension_numbers<[1], [0], [0], [1], [0, 0, 1, 1], [], []>} : vector<8x16xf32>, vector<16x128xf32>, vector<8x128xf32> -> vector<8x128xf32>
    %63 = arith.addf %46, %62 : vector<8x128xf32>
    %64 = vector.shape_cast %62 : vector<8x128xf32> to vector<8x1x128xf32>
    %65 = vector.shape_cast %55 : vector<4x128xf32> to vector<1x4x128xf32>
    %66 = vector.broadcast %64 : vector<8x1x128xf32> to vector<8x4x128xf32>
    %67 = vector.broadcast %65 : vector<1x4x128xf32> to vector<8x4x128xf32>
    %68 = arith.mulf %66, %67 : vector<8x4x128xf32>
    %69 = vector.shape_cast %68 : vector<8x4x128xf32> to vector<32x128xf32>
    %cst_16 = arith.constant dense<0.000000e+00> : vector<8x128xf32>
    %70 = tpu.matmul %1, %69, %cst_16 {dimension_numbers = #tpu.dot_dimension_numbers<[1], [0], [0], [1], [0, 0, 1, 1], [], []>} : vector<8x32xf32>, vector<32x128xf32>, vector<8x128xf32> -> vector<8x128xf32>
    %71 = arith.addf %54, %70 : vector<8x128xf32>
    %c16 = arith.constant 16 : index
    %c0_17 = arith.constant 0 : index
    %72 = vector.load %arg1[%c16, %c0_17] : memref<40x128xf32, #tpu.memory_space<vmem>>, vector<4x128xf32>
    %73 = vector.shape_cast %72 : vector<4x128xf32> to vector<4x1x128xf32>
    %74 = vector.shape_cast %72 : vector<4x128xf32> to vector<1x4x128xf32>
    %75 = vector.broadcast %73 : vector<4x1x128xf32> to vector<4x4x128xf32>
    %76 = vector.broadcast %74 : vector<1x4x128xf32> to vector<4x4x128xf32>
    %77 = arith.mulf %75, %76 : vector<4x4x128xf32>
    %78 = vector.shape_cast %77 : vector<4x4x128xf32> to vector<16x128xf32>
    %cst_18 = arith.constant dense<0.000000e+00> : vector<8x128xf32>
    %79 = tpu.matmul %0, %78, %cst_18 {dimension_numbers = #tpu.dot_dimension_numbers<[1], [0], [0], [1], [0, 0, 1, 1], [], []>} : vector<8x16xf32>, vector<16x128xf32>, vector<8x128xf32> -> vector<8x128xf32>
    %80 = arith.addf %63, %79 : vector<8x128xf32>
    %81 = vector.shape_cast %79 : vector<8x128xf32> to vector<8x1x128xf32>
    %82 = vector.shape_cast %72 : vector<4x128xf32> to vector<1x4x128xf32>
    %83 = vector.broadcast %81 : vector<8x1x128xf32> to vector<8x4x128xf32>
    %84 = vector.broadcast %82 : vector<1x4x128xf32> to vector<8x4x128xf32>
    %85 = arith.mulf %83, %84 : vector<8x4x128xf32>
    %86 = vector.shape_cast %85 : vector<8x4x128xf32> to vector<32x128xf32>
    %cst_19 = arith.constant dense<0.000000e+00> : vector<8x128xf32>
    %87 = tpu.matmul %1, %86, %cst_19 {dimension_numbers = #tpu.dot_dimension_numbers<[1], [0], [0], [1], [0, 0, 1, 1], [], []>} : vector<8x32xf32>, vector<32x128xf32>, vector<8x128xf32> -> vector<8x128xf32>
    %88 = arith.addf %71, %87 : vector<8x128xf32>
    %c20 = arith.constant 20 : index
    %c0_20 = arith.constant 0 : index
    %89 = vector.load %arg1[%c20, %c0_20] : memref<40x128xf32, #tpu.memory_space<vmem>>, vector<4x128xf32>
    %90 = vector.shape_cast %89 : vector<4x128xf32> to vector<4x1x128xf32>
    %91 = vector.shape_cast %89 : vector<4x128xf32> to vector<1x4x128xf32>
    %92 = vector.broadcast %90 : vector<4x1x128xf32> to vector<4x4x128xf32>
    %93 = vector.broadcast %91 : vector<1x4x128xf32> to vector<4x4x128xf32>
    %94 = arith.mulf %92, %93 : vector<4x4x128xf32>
    %95 = vector.shape_cast %94 : vector<4x4x128xf32> to vector<16x128xf32>
    %cst_21 = arith.constant dense<0.000000e+00> : vector<8x128xf32>
    %96 = tpu.matmul %0, %95, %cst_21 {dimension_numbers = #tpu.dot_dimension_numbers<[1], [0], [0], [1], [0, 0, 1, 1], [], []>} : vector<8x16xf32>, vector<16x128xf32>, vector<8x128xf32> -> vector<8x128xf32>
    %97 = arith.addf %80, %96 : vector<8x128xf32>
    %98 = vector.shape_cast %96 : vector<8x128xf32> to vector<8x1x128xf32>
    %99 = vector.shape_cast %89 : vector<4x128xf32> to vector<1x4x128xf32>
    %100 = vector.broadcast %98 : vector<8x1x128xf32> to vector<8x4x128xf32>
    %101 = vector.broadcast %99 : vector<1x4x128xf32> to vector<8x4x128xf32>
    %102 = arith.mulf %100, %101 : vector<8x4x128xf32>
    %103 = vector.shape_cast %102 : vector<8x4x128xf32> to vector<32x128xf32>
    %cst_22 = arith.constant dense<0.000000e+00> : vector<8x128xf32>
    %104 = tpu.matmul %1, %103, %cst_22 {dimension_numbers = #tpu.dot_dimension_numbers<[1], [0], [0], [1], [0, 0, 1, 1], [], []>} : vector<8x32xf32>, vector<32x128xf32>, vector<8x128xf32> -> vector<8x128xf32>
    %105 = arith.addf %88, %104 : vector<8x128xf32>
    %c24 = arith.constant 24 : index
    %c0_23 = arith.constant 0 : index
    %106 = vector.load %arg1[%c24, %c0_23] : memref<40x128xf32, #tpu.memory_space<vmem>>, vector<4x128xf32>
    %107 = vector.shape_cast %106 : vector<4x128xf32> to vector<4x1x128xf32>
    %108 = vector.shape_cast %106 : vector<4x128xf32> to vector<1x4x128xf32>
    %109 = vector.broadcast %107 : vector<4x1x128xf32> to vector<4x4x128xf32>
    %110 = vector.broadcast %108 : vector<1x4x128xf32> to vector<4x4x128xf32>
    %111 = arith.mulf %109, %110 : vector<4x4x128xf32>
    %112 = vector.shape_cast %111 : vector<4x4x128xf32> to vector<16x128xf32>
    %cst_24 = arith.constant dense<0.000000e+00> : vector<8x128xf32>
    %113 = tpu.matmul %0, %112, %cst_24 {dimension_numbers = #tpu.dot_dimension_numbers<[1], [0], [0], [1], [0, 0, 1, 1], [], []>} : vector<8x16xf32>, vector<16x128xf32>, vector<8x128xf32> -> vector<8x128xf32>
    %114 = arith.addf %97, %113 : vector<8x128xf32>
    %115 = vector.shape_cast %113 : vector<8x128xf32> to vector<8x1x128xf32>
    %116 = vector.shape_cast %106 : vector<4x128xf32> to vector<1x4x128xf32>
    %117 = vector.broadcast %115 : vector<8x1x128xf32> to vector<8x4x128xf32>
    %118 = vector.broadcast %116 : vector<1x4x128xf32> to vector<8x4x128xf32>
    %119 = arith.mulf %117, %118 : vector<8x4x128xf32>
    %120 = vector.shape_cast %119 : vector<8x4x128xf32> to vector<32x128xf32>
    %cst_25 = arith.constant dense<0.000000e+00> : vector<8x128xf32>
    %121 = tpu.matmul %1, %120, %cst_25 {dimension_numbers = #tpu.dot_dimension_numbers<[1], [0], [0], [1], [0, 0, 1, 1], [], []>} : vector<8x32xf32>, vector<32x128xf32>, vector<8x128xf32> -> vector<8x128xf32>
    %122 = arith.addf %105, %121 : vector<8x128xf32>
    %c28 = arith.constant 28 : index
    %c0_26 = arith.constant 0 : index
    %123 = vector.load %arg1[%c28, %c0_26] : memref<40x128xf32, #tpu.memory_space<vmem>>, vector<4x128xf32>
    %124 = vector.shape_cast %123 : vector<4x128xf32> to vector<4x1x128xf32>
    %125 = vector.shape_cast %123 : vector<4x128xf32> to vector<1x4x128xf32>
    %126 = vector.broadcast %124 : vector<4x1x128xf32> to vector<4x4x128xf32>
    %127 = vector.broadcast %125 : vector<1x4x128xf32> to vector<4x4x128xf32>
    %128 = arith.mulf %126, %127 : vector<4x4x128xf32>
    %129 = vector.shape_cast %128 : vector<4x4x128xf32> to vector<16x128xf32>
    %cst_27 = arith.constant dense<0.000000e+00> : vector<8x128xf32>
    %130 = tpu.matmul %0, %129, %cst_27 {dimension_numbers = #tpu.dot_dimension_numbers<[1], [0], [0], [1], [0, 0, 1, 1], [], []>} : vector<8x16xf32>, vector<16x128xf32>, vector<8x128xf32> -> vector<8x128xf32>
    %131 = arith.addf %114, %130 : vector<8x128xf32>
    %132 = vector.shape_cast %130 : vector<8x128xf32> to vector<8x1x128xf32>
    %133 = vector.shape_cast %123 : vector<4x128xf32> to vector<1x4x128xf32>
    %134 = vector.broadcast %132 : vector<8x1x128xf32> to vector<8x4x128xf32>
    %135 = vector.broadcast %133 : vector<1x4x128xf32> to vector<8x4x128xf32>
    %136 = arith.mulf %134, %135 : vector<8x4x128xf32>
    %137 = vector.shape_cast %136 : vector<8x4x128xf32> to vector<32x128xf32>
    %cst_28 = arith.constant dense<0.000000e+00> : vector<8x128xf32>
    %138 = tpu.matmul %1, %137, %cst_28 {dimension_numbers = #tpu.dot_dimension_numbers<[1], [0], [0], [1], [0, 0, 1, 1], [], []>} : vector<8x32xf32>, vector<32x128xf32>, vector<8x128xf32> -> vector<8x128xf32>
    %139 = arith.addf %122, %138 : vector<8x128xf32>
    %c0_29 = arith.constant 0 : index
    %c0_30 = arith.constant 0 : index
    %140 = vector.load %arg4[%c0_29, %c0_30] : memref<32x40xf32, #tpu.memory_space<vmem>>, vector<32x40xf32>
    %c0_31 = arith.constant 0 : index
    %c0_32 = arith.constant 0 : index
    %141 = vector.load %arg1[%c0_31, %c0_32] : memref<40x128xf32, #tpu.memory_space<vmem>>, vector<40x128xf32>
    %cst_33 = arith.constant dense<0.000000e+00> : vector<32x128xf32>
    %142 = tpu.matmul %140, %141, %cst_33 {dimension_numbers = #tpu.dot_dimension_numbers<[1], [0], [0], [1], [0, 0, 1, 1], [], []>} : vector<32x40xf32>, vector<40x128xf32>, vector<32x128xf32> -> vector<32x128xf32>
    %cst_34 = arith.constant 0.000000e+00 : f32
    %143 = vector.broadcast %cst_34 : f32 to vector<32x128xf32>
    %144 = arith.maximumf %142, %143 : vector<32x128xf32>
    %c0_35 = arith.constant 0 : index
    %c0_36 = arith.constant 0 : index
    %145 = vector.load %arg5[%c0_35, %c0_36] : memref<16x32xf32, #tpu.memory_space<vmem>>, vector<16x32xf32>
    %cst_37 = arith.constant dense<0.000000e+00> : vector<16x128xf32>
    %146 = tpu.matmul %145, %144, %cst_37 {dimension_numbers = #tpu.dot_dimension_numbers<[1], [0], [0], [1], [0, 0, 1, 1], [], []>} : vector<16x32xf32>, vector<32x128xf32>, vector<16x128xf32> -> vector<16x128xf32>
    %c0_38 = arith.constant 0 : index
    %c0_39 = arith.constant 0 : index
    %147 = vector.load %arg6[%c0_38, %c0_39] : memref<16x1xf32, #tpu.memory_space<vmem>>, vector<16x1xf32>
    %148 = vector.broadcast %147 : vector<16x1xf32> to vector<16x128xf32>
    %149 = arith.addf %146, %148 : vector<16x128xf32>
    %cst_40 = arith.constant 0.000000e+00 : f32
    %150 = vector.broadcast %cst_40 : f32 to vector<16x128xf32>
    %151 = arith.maximumf %149, %150 : vector<16x128xf32>
    %c0_41 = arith.constant 0 : index
    %c0_42 = arith.constant 0 : index
    %152 = vector.load %arg7[%c0_41, %c0_42] : memref<1x72xf32, #tpu.memory_space<vmem>>, vector<1x72xf32>
    %153 = vector.extract_strided_slice %152 {offsets = [0, 0], sizes = [1, 40], strides = [1, 1]} : vector<1x72xf32> to vector<1x40xf32>
    %c0_43 = arith.constant 0 : index
    %c0_44 = arith.constant 0 : index
    %154 = vector.load %arg1[%c0_43, %c0_44] : memref<40x128xf32, #tpu.memory_space<vmem>>, vector<40x128xf32>
    %cst_45 = arith.constant dense<0.000000e+00> : vector<1x128xf32>
    %155 = tpu.matmul %153, %154, %cst_45 {dimension_numbers = #tpu.dot_dimension_numbers<[1], [0], [0], [1], [0, 0, 1, 1], [], []>} : vector<1x40xf32>, vector<40x128xf32>, vector<1x128xf32> -> vector<1x128xf32>
    %156 = vector.extract_strided_slice %152 {offsets = [0, 40], sizes = [1, 8], strides = [1, 1]} : vector<1x72xf32> to vector<1x8xf32>
    %cst_46 = arith.constant dense<0.000000e+00> : vector<1x128xf32>
    %157 = tpu.matmul %156, %131, %cst_46 {dimension_numbers = #tpu.dot_dimension_numbers<[1], [0], [0], [1], [0, 0, 1, 1], [], []>} : vector<1x8xf32>, vector<8x128xf32>, vector<1x128xf32> -> vector<1x128xf32>
    %158 = arith.addf %155, %157 : vector<1x128xf32>
    %159 = vector.extract_strided_slice %152 {offsets = [0, 48], sizes = [1, 8], strides = [1, 1]} : vector<1x72xf32> to vector<1x8xf32>
    %cst_47 = arith.constant dense<0.000000e+00> : vector<1x128xf32>
    %160 = tpu.matmul %159, %139, %cst_47 {dimension_numbers = #tpu.dot_dimension_numbers<[1], [0], [0], [1], [0, 0, 1, 1], [], []>} : vector<1x8xf32>, vector<8x128xf32>, vector<1x128xf32> -> vector<1x128xf32>
    %161 = arith.addf %158, %160 : vector<1x128xf32>
    %162 = vector.extract_strided_slice %152 {offsets = [0, 56], sizes = [1, 16], strides = [1, 1]} : vector<1x72xf32> to vector<1x16xf32>
    %cst_48 = arith.constant dense<0.000000e+00> : vector<1x128xf32>
    %163 = tpu.matmul %162, %151, %cst_48 {dimension_numbers = #tpu.dot_dimension_numbers<[1], [0], [0], [1], [0, 0, 1, 1], [], []>} : vector<1x16xf32>, vector<16x128xf32>, vector<1x128xf32> -> vector<1x128xf32>
    %164 = arith.addf %161, %163 : vector<1x128xf32>
    %165 = arith.negf %164 : vector<1x128xf32>
    %166 = math.exp %165 : vector<1x128xf32>
    %cst_49 = arith.constant 1.000000e+00 : f32
    %167 = vector.broadcast %cst_49 : f32 to vector<1x128xf32>
    %168 = arith.addf %167, %166 : vector<1x128xf32>
    %169 = arith.divf %167, %168 : vector<1x128xf32>
    %c0_50 = arith.constant 0 : index
    %c0_51 = arith.constant 0 : index
    %170 = vector.load %arg8[%c0_50, %c0_51] : memref<1x128xf32, #tpu.memory_space<vmem>>, vector<1x128xf32>
    tpu.vector_store %arg8[%c0_50, %c0_51], %169 {strides = array<i32>} : memref<1x128xf32, #tpu.memory_space<vmem>>, vector<1x128xf32>,
    return
  }
  func.func @transform_0(%arg0: i32) -> (i32, i32) {
    %c0_i32 = arith.constant 0 : i32
    %c0_i32_0 = arith.constant 0 : i32
    return %c0_i32, %arg0 : i32, i32
  }
  func.func @transform_1(%arg0: i32) -> (i32, i32) {
    %c0_i32 = arith.constant 0 : i32
    %c0_i32_0 = arith.constant 0 : i32
    %c0_i32_1 = arith.constant 0 : i32
    return %c0_i32, %c0_i32_0 : i32, i32
  }
  func.func @transform_2(%arg0: i32) -> (i32, i32) {
    %c0_i32 = arith.constant 0 : i32
    %c0_i32_0 = arith.constant 0 : i32
    %c0_i32_1 = arith.constant 0 : i32
    return %c0_i32, %c0_i32_0 : i32, i32
  }
  func.func @transform_3(%arg0: i32) -> (i32, i32) {
    %c0_i32 = arith.constant 0 : i32
    %c0_i32_0 = arith.constant 0 : i32
    %c0_i32_1 = arith.constant 0 : i32
    return %c0_i32, %c0_i32_0 : i32, i32
  }
  func.func @transform_4(%arg0: i32) -> (i32, i32) {
    %c0_i32 = arith.constant 0 : i32
    %c0_i32_0 = arith.constant 0 : i32
    %c0_i32_1 = arith.constant 0 : i32
    return %c0_i32, %c0_i32_0 : i32, i32
  }
  func.func @transform_5(%arg0: i32) -> (i32, i32) {
    %c0_i32 = arith.constant 0 : i32
    %c0_i32_0 = arith.constant 0 : i32
    %c0_i32_1 = arith.constant 0 : i32
    return %c0_i32, %c0_i32_0 : i32, i32
  }
  func.func @transform_6(%arg0: i32) -> (i32, i32) {
    %c0_i32 = arith.constant 0 : i32
    %c0_i32_0 = arith.constant 0 : i32
    %c0_i32_1 = arith.constant 0 : i32
    return %c0_i32, %c0_i32_0 : i32, i32
  }
  func.func @transform_7(%arg0: i32) -> (i32, i32) {
    %c0_i32 = arith.constant 0 : i32
    %c0_i32_0 = arith.constant 0 : i32
    return %c0_i32, %arg0 : i32, i32
  }
}

</mosaic_0001>

<llo_original>
// kernel: tpu_custom_call.1
$region0: #{tpu_custom_call.1}
  #allocation0 [shape = 'u32[]', space=smem, size = 0x4, offset = 0x4, fixed_abs, tag = 'smem constant byte address 0x4 - core index']
  #allocation1 [shape = 'u32[144,128]{1,0:T(1,128)}', space=vmem, size = 0x12000, scoped, tag = 'internal scratch']
  %s0 = inlined_call_operand.hbm [shape: f32[40,256], index: 0, kind: input, shape index: {}]
  %s1 = inlined_call_operand.vmem [shape: f32[8,16], index: 1, kind: input, shape index: {}]
  %s2 = inlined_call_operand.hbm [shape: f32[8,32], index: 2, kind: input, shape index: {}]
  %s3 = inlined_call_operand.hbm [shape: f32[32,40], index: 3, kind: input, shape index: {}]
  %s4 = inlined_call_operand.vmem [shape: f32[16,32], index: 4, kind: input, shape index: {}]
  %s5 = inlined_call_operand.vmem [shape: f32[16,1], index: 5, kind: input, shape index: {}]
  %s6 = inlined_call_operand.vmem [shape: f32[1,72], index: 6, kind: input, shape index: {}]
  %s7 = inlined_call_operand.hbm [shape: f32[1,256], index: 7, kind: output, shape index: {}]
  %s8 = sld [smem:[#allocation0]]
  $region73: #{tpu_custom_call.1} parent=0
    _
  %s10 = ssub.s32 1, %s8
  %s11 = scalar_select 0, %s10, %s8
  $region1: #{tpu_custom_call.1} parent=0
    #allocation2 [shape = 'u8[40960]{0}', space=vmem, size = 0xa000, scoped, tag = 'input window, operand 0']
    #allocation3 [shape = 's32[2]{0}', space=sflag, size = 0x8, scoped, tag = 'scoped memory for tpu_custom_call.1']
    #allocation4 [shape = 's32[2]{0}', space=sflag, size = 0x8, scoped, tag = 'scoped memory for tpu_custom_call.1']
    #allocation5 [shape = 'u8[4096]{0}', space=vmem, size = 0x1000, scoped, tag = 'input window, operand 2, single buffered']
    #allocation6 [shape = 's32[1]{0}', space=sflag, size = 0x4, scoped, tag = 'scoped memory for tpu_custom_call.1']
    #allocation7 [shape = 'u8[16384]{0}', space=vmem, size = 0x4000, scoped, tag = 'input window, operand 3, single buffered']
    #allocation8 [shape = 'u8[1024]{0}', space=vmem, size = 0x400, scoped, tag = 'output window, operand 0']
    %12 = vsyncpa [#allocation3], 0
    %s13 = scalar_lea.sflag [#allocation3], 1
    %14 = vsyncpa %s13, 0
    %15 = vsyncpa [#allocation6], 0
    %16 = vsyncpa [#allocation4], 0
    %s17 = scalar_lea.sflag [#allocation4], 1
    %18 = vsyncpa %s17, 0
    loop: start=0, step=1, limit=4
    $region2: #{tpu_custom_call.1} parent=1 // loop_pre_header
      _
    $region3: #{tpu_custom_call.1} parent=1 // loop_header
      %s20 = sphi 0, %s24
      %p21 = scmp.ge.s32.totalorder %s20, 4
      %s30 = sphi 0, %s32
      %s33 = sphi 0, %s30
      %s34 = sphi 0, %s33
      %s50 = sphi 0, %s34
      %s54 = sphi 0, %s54
      %s56 = sphi 0, %s54
      %s57 = sphi 0, %s56
      %s71 = sphi 0, %s57
      %s75 = sphi 0, %s75
      %s77 = sphi 0, %s75
      %s78 = sphi 0, %s77
      %s92 = sphi 0, %s78
      %s96 = sphi 0, %s96
      %s98 = sphi 0, %s96
      %s99 = sphi 0, %s98
      %s113 = sphi 0, %s99
      %s117 = sphi 0, %s117
      %s119 = sphi 0, %s117
      %s120 = sphi 0, %s119
      %s134 = sphi 0, %s120
      %s138 = sphi 0, %s138
      %s140 = sphi 0, %s138
      %s141 = sphi 0, %s140
      %s155 = sphi 0, %s141
      %s159 = sphi 0, %s159
      %s161 = sphi 0, %s159
      %s162 = sphi 0, %s161
      %s176 = sphi 0, %s162
      %s182 = sphi 0, %s184
      %s185 = sphi 0, %s182
      %s186 = sphi 0, %s185
      %s202 = sphi 0, %s186
    $region4: #{tpu_custom_call.1} parent=1 // loop_header_branch
      %23 = sbr.rel (%p21) target = $region8
    $region5: #{tpu_custom_call.1} parent=1 // loop_body
      %s25 = ssub.s32 %s20, 1
      %s26 = ssub.s32 %s20, 2
      %s27 = sadd.s32 %s20, 1
      %s28 = ssub.s32 %s20, %s27
      %p29 = scmp.eq.s32.totalorder %s28, 0
      %s31 = sadd.s32 %s30, 1
      %s32 = scalar_select %p29, %s30, %s31
      %p35 = pneg %p29
      %p36 = scmp.eq.s32.totalorder %s20, 1
      %p37 = por %p35, %p36
      %p38 = scmp.ne.s32.totalorder %s30, %s33
      %p39 = scmp.eq.s32.totalorder %s20, 0
      %p40 = por %p38, %p39
      %p41 = scmp.ne.s32.totalorder %s30, %s33
      %p42 = scmp.eq.s32.totalorder %s25, 1
      %p43 = por %p41, %p42
      %p44 = scmp.ne.s32.totalorder %s33, %s34
      %p45 = scmp.eq.s32.totalorder %s25, 0
      %p46 = por %p44, %p45
      %p47 = scmp.ne.s32.totalorder %s33, %s34
      %p48 = scmp.eq.s32.totalorder %s26, 1
      %p49 = por %p47, %p48
      %p51 = scmp.ne.s32.totalorder %s34, %s50
      %p52 = scmp.eq.s32.totalorder %s26, 0
      %p53 = por %p51, %p52
      %s55 = sadd.s32 %s54, 1
      %p58 = scmp.eq.s32.totalorder %s20, 1
      %p59 = scmp.ne.s32.totalorder %s54, %s56
      %p60 = scmp.eq.s32.totalorder %s20, 0
      %p61 = por %p59, %p60
      %p62 = scmp.ne.s32.totalorder %s54, %s56
      %p63 = scmp.eq.s32.totalorder %s25, 1
      %p64 = por %p62, %p63
      %p65 = scmp.ne.s32.totalorder %s56, %s57
      %p66 = scmp.eq.s32.totalorder %s25, 0
      %p67 = por %p65, %p66
      %p68 = scmp.ne.s32.totalorder %s56, %s57
      %p69 = scmp.eq.s32.totalorder %s26, 1
      %p70 = por %p68, %p69
      %p72 = scmp.ne.s32.totalorder %s57, %s71
      %p73 = scmp.eq.s32.totalorder %s26, 0
      %p74 = por %p72, %p73
      %s76 = sadd.s32 %s75, 1
      %p79 = scmp.eq.s32.totalorder %s20, 1
      %p80 = scmp.ne.s32.totalorder %s75, %s77
      %p81 = scmp.eq.s32.totalorder %s20, 0
      %p82 = por %p80, %p81
      %p83 = scmp.ne.s32.totalorder %s75, %s77
      %p84 = scmp.eq.s32.totalorder %s25, 1
      %p85 = por %p83, %p84
      %p86 = scmp.ne.s32.totalorder %s77, %s78
      %p87 = scmp.eq.s32.totalorder %s25, 0
      %p88 = por %p86, %p87
      %p89 = scmp.ne.s32.totalorder %s77, %s78
      %p90 = scmp.eq.s32.totalorder %s26, 1
      %p91 = por %p89, %p90
      %p93 = scmp.ne.s32.totalorder %s78, %s92
      %p94 = scmp.eq.s32.totalorder %s26, 0
      %p95 = por %p93, %p94
      %s97 = sadd.s32 %s96, 1
      %p100 = scmp.eq.s32.totalorder %s20, 1
      %p101 = scmp.ne.s32.totalorder %s96, %s98
      %p102 = scmp.eq.s32.totalorder %s20, 0
      %p103 = por %p101, %p102
      %p104 = scmp.ne.s32.totalorder %s96, %s98
      %p105 = scmp.eq.s32.totalorder %s25, 1
      %p106 = por %p104, %p105
      %p107 = scmp.ne.s32.totalorder %s98, %s99
      %p108 = scmp.eq.s32.totalorder %s25, 0
      %p109 = por %p107, %p108
      %p110 = scmp.ne.s32.totalorder %s98, %s99
      %p111 = scmp.eq.s32.totalorder %s26, 1
      %p112 = por %p110, %p111
      %p114 = scmp.ne.s32.totalorder %s99, %s113
      %p115 = scmp.eq.s32.totalorder %s26, 0
      %p116 = por %p114, %p115
      %s118 = sadd.s32 %s117, 1
      %p121 = scmp.eq.s32.totalorder %s20, 1
      %p122 = scmp.ne.s32.totalorder %s117, %s119
      %p123 = scmp.eq.s32.totalorder %s20, 0
      %p124 = por %p122, %p123
      %p125 = scmp.ne.s32.totalorder %s117, %s119
      %p126 = scmp.eq.s32.totalorder %s25, 1
      %p127 = por %p125, %p126
      %p128 = scmp.ne.s32.totalorder %s119, %s120
      %p129 = scmp.eq.s32.totalorder %s25, 0
      %p130 = por %p128, %p129
      %p131 = scmp.ne.s32.totalorder %s119, %s120
      %p132 = scmp.eq.s32.totalorder %s26, 1
      %p133 = por %p131, %p132
      %p135 = scmp.ne.s32.totalorder %s120, %s134
      %p136 = scmp.eq.s32.totalorder %s26, 0
      %p137 = por %p135, %p136
      %s139 = sadd.s32 %s138, 1
      %p142 = scmp.eq.s32.totalorder %s20, 1
      %p143 = scmp.ne.s32.totalorder %s138, %s140
      %p144 = scmp.eq.s32.totalorder %s20, 0
      %p145 = por %p143, %p144
      %p146 = scmp.ne.s32.totalorder %s138, %s140
      %p147 = scmp.eq.s32.totalorder %s25, 1
      %p148 = por %p146, %p147
      %p149 = scmp.ne.s32.totalorder %s140, %s141
      %p150 = scmp.eq.s32.totalorder %s25, 0
      %p151 = por %p149, %p150
      %p152 = scmp.ne.s32.totalorder %s140, %s141
      %p153 = scmp.eq.s32.totalorder %s26, 1
      %p154 = por %p152, %p153
      %p156 = scmp.ne.s32.totalorder %s141, %s155
      %p157 = scmp.eq.s32.totalorder %s26, 0
      %p158 = por %p156, %p157
      %s160 = sadd.s32 %s159, 1
      %p163 = scmp.eq.s32.totalorder %s20, 1
      %p164 = scmp.ne.s32.totalorder %s159, %s161
      %p165 = scmp.eq.s32.totalorder %s20, 0
      %p166 = por %p164, %p165
      %p167 = scmp.ne.s32.totalorder %s159, %s161
      %p168 = scmp.eq.s32.totalorder %s25, 1
      %p169 = por %p167, %p168
      %p170 = scmp.ne.s32.totalorder %s161, %s162
      %p171 = scmp.eq.s32.totalorder %s25, 0
      %p172 = por %p170, %p171
      %p173 = scmp.ne.s32.totalorder %s161, %s162
      %p174 = scmp.eq.s32.totalorder %s26, 1
      %p175 = por %p173, %p174
      %p177 = scmp.ne.s32.totalorder %s162, %s176
      %p178 = scmp.eq.s32.totalorder %s26, 0
      %p179 = por %p177, %p178
      %s180 = ssub.s32 %s20, %s27
      %p181 = scmp.eq.s32.totalorder %s180, 0
      %s183 = sadd.s32 %s182, 1
      %s184 = scalar_select %p181, %s182, %s183
      %p187 = pneg %p181
      %p188 = scmp.eq.s32.totalorder %s20, 1
      %p189 = por %p187, %p188
      %p190 = scmp.ne.s32.totalorder %s182, %s185
      %p191 = scmp.eq.s32.totalorder %s20, 0
      %p192 = por %p190, %p191
      %p193 = scmp.ne.s32.totalorder %s182, %s185
      %p194 = scmp.eq.s32.totalorder %s25, 1
      %p195 = por %p193, %p194
      %p196 = scmp.ne.s32.totalorder %s185, %s186
      %p197 = scmp.eq.s32.totalorder %s25, 0
      %p198 = por %p196, %p197
      %p199 = scmp.ne.s32.totalorder %s185, %s186
      %p200 = scmp.eq.s32.totalorder %s26, 1
      %p201 = por %p199, %p200
      %p203 = scmp.ne.s32.totalorder %s186, %s202
      %p204 = scmp.eq.s32.totalorder %s26, 0
      %p205 = por %p203, %p204
      %p206 = scmp.le.s32.totalorder 1, %s20
      %p207 = scmp.lt.s32.totalorder %s20, 3
      %p208 = pnand %p206, %p207
      %p209 = pneg %p208
      // Predicated region
      $region9: #{tpu_custom_call.1} parent=5 // pred_check
        _
      $region10: #{tpu_custom_call.1} parent=5 // pred_check_branch
        %211 = sbr.rel (%p208) target = $region12
      $region11: #{tpu_custom_call.1} parent=5 // pred_region
        %s212 = ssub.s32 %s20, 1
        // Predicated region
        $region13: #{tpu_custom_call.1} parent=11 // pred_check
          %p213 = pneg %p67
        $region14: #{tpu_custom_call.1} parent=11 // pred_check_branch
          %215 = sbr.rel (%p213) target = $region16
        $region15: #{tpu_custom_call.1} parent=11 // pred_region
          _
        $region16: #{tpu_custom_call.1} parent=11 // pred_fallthru
          _
        // Predicated region
        $region17: #{tpu_custom_call.1} parent=11 // pred_check
          %p216 = pneg %p88
        $region18: #{tpu_custom_call.1} parent=11 // pred_check_branch
          %218 = sbr.rel (%p216) target = $region20
        $region19: #{tpu_custom_call.1} parent=11 // pred_region
          %s220 = ssub.s32 128, 128
          %221 = vsyncadd [#allocation6], %s220
          %s223 = sshll.u32 [#allocation5], 4
          %s224 = int_to_ptr.vmem [resolvable:$true] %s223
          %226 = dma.hbm_to_vmem [thread:$0]  %s2, 128, %s224, [#allocation6]
        $region20: #{tpu_custom_call.1} parent=11 // pred_fallthru
          _
        // Predicated region
        $region21: #{tpu_custom_call.1} parent=11 // pred_check
          %p227 = pneg %p109
        $region22: #{tpu_custom_call.1} parent=11 // pred_check_branch
          %229 = sbr.rel (%p227) target = $region24
        $region23: #{tpu_custom_call.1} parent=11 // pred_region
          %s231 = ssub.s32 512, 512
          %232 = vsyncadd [#allocation6], %s231
          %s233 = sshll.u32 [#allocation7], 4
          %s234 = int_to_ptr.vmem [resolvable:$true] %s233
          %239 = dma.hbm_to_vmem [thread:$0]  %s3, 512, %s234, [#allocation6], 128, 128, 8
        $region24: #{tpu_custom_call.1} parent=11 // pred_fallthru
          _
        // Predicated region
        $region25: #{tpu_custom_call.1} parent=11 // pred_check
          %p240 = pneg %p130
        $region26: #{tpu_custom_call.1} parent=11 // pred_check_branch
          %242 = sbr.rel (%p240) target = $region28
        $region27: #{tpu_custom_call.1} parent=11 // pred_region
          _
        $region28: #{tpu_custom_call.1} parent=11 // pred_fallthru
          _
        // Predicated region
        $region29: #{tpu_custom_call.1} parent=11 // pred_check
          %p243 = pneg %p151
        $region30: #{tpu_custom_call.1} parent=11 // pred_check_branch
          %245 = sbr.rel (%p243) target = $region32
        $region31: #{tpu_custom_call.1} parent=11 // pred_region
          _
        $region32: #{tpu_custom_call.1} parent=11 // pred_fallthru
          _
        // Predicated region
        $region33: #{tpu_custom_call.1} parent=11 // pred_check
          %p246 = pneg %p172
        $region34: #{tpu_custom_call.1} parent=11 // pred_check_branch
          %248 = sbr.rel (%p246) target = $region36
        $region35: #{tpu_custom_call.1} parent=11 // pred_region
          _
        $region36: #{tpu_custom_call.1} parent=11 // pred_fallthru
          _
      $region12: #{tpu_custom_call.1} parent=5 // pred_fallthru
        _
      %p249 = scmp.lt.s32.totalorder %s20, 2
      // Predicated region
      $region37: #{tpu_custom_call.1} parent=5 // pred_check
        %p250 = pneg %p249
      $region38: #{tpu_custom_call.1} parent=5 // pred_check_branch
        %252 = sbr.rel (%p250) target = $region40
      $region39: #{tpu_custom_call.1} parent=5 // pred_region
        // Predicated region
        $region41: #{tpu_custom_call.1} parent=39 // pred_check
          %p253 = pneg %p40
        $region42: #{tpu_custom_call.1} parent=39 // pred_check_branch
          %255 = sbr.rel (%p253) target = $region44
        $region43: #{tpu_custom_call.1} parent=39 // pred_region
          %s256 = sand.u32 %s30, 1
          %s257 = scalar_lea.sflag [#allocation3], %s256
          %s258 = sand.u32 %s30, 1
          %s259 = smul.addr %s258, 40
          %s260 = scalar_lea.vmem [#allocation2], %s259
          %s262 = ssub.s32 640, 640
          %263 = vsyncadd %s257, %s262
          %s264 = smul.addr %s20, 128
          %s265 = scalar_lea.hbm %s0, %s264
          %s266 = sshll.u32 %s260, 4
          %s267 = int_to_ptr.vmem [resolvable:$true] %s266
          %272 = dma.hbm_to_vmem [thread:$0]  %s265, 640, %s267, %s257, 256, 128, 8
        $region44: #{tpu_custom_call.1} parent=39 // pred_fallthru
          _
      $region40: #{tpu_custom_call.1} parent=5 // pred_fallthru
        _
      %p273 = scmp.le.s32.totalorder 1, %s20
      %p274 = scmp.lt.s32.totalorder %s20, 3
      %p275 = pnand %p273, %p274
      %p276 = pneg %p275
      // Predicated region
      $region45: #{tpu_custom_call.1} parent=5 // pred_check
        _
      $region46: #{tpu_custom_call.1} parent=5 // pred_check_branch
        %278 = sbr.rel (%p275) target = $region48
      $region47: #{tpu_custom_call.1} parent=5 // pred_region
        %s279 = ssub.s32 %s20, 1
        %s280 = sand.u32 %s33, 1
        %s281 = scalar_lea.sflag [#allocation3], %s280
        %s282 = sand.u32 %s33, 1
        %s283 = smul.addr %s282, 40
        %s284 = scalar_lea.vmem [#allocation2], %s283
        // Predicated region
        $region49: #{tpu_custom_call.1} parent=47 // pred_check
          %p285 = pneg %p46
        $region50: #{tpu_custom_call.1} parent=47 // pred_check_branch
          %287 = sbr.rel (%p285) target = $region52
        $region51: #{tpu_custom_call.1} parent=47 // pred_region
          %288 = dma.done %s281, 640
        $region52: #{tpu_custom_call.1} parent=47 // pred_fallthru
          _
        // Predicated region
        $region53: #{tpu_custom_call.1} parent=47 // pred_check
          %p289 = pneg %p88
        $region54: #{tpu_custom_call.1} parent=47 // pred_check_branch
          %291 = sbr.rel (%p289) target = $region56
        $region55: #{tpu_custom_call.1} parent=47 // pred_region
          %292 = dma.done [#allocation6], 128
        $region56: #{tpu_custom_call.1} parent=47 // pred_fallthru
          _
        // Predicated region
        $region57: #{tpu_custom_call.1} parent=47 // pred_check
          %p293 = pneg %p109
        $region58: #{tpu_custom_call.1} parent=47 // pred_check_branch
          %295 = sbr.rel (%p293) target = $region60
        $region59: #{tpu_custom_call.1} parent=47 // pred_region
          %296 = dma.done [#allocation6], 512
        $region60: #{tpu_custom_call.1} parent=47 // pred_fallthru
          _
        %s297 = sand.u32 %s33, 1
        %s298 = scalar_lea.sflag [#allocation3], %s297
        %s299 = sand.u32 %s33, 1
        %s300 = smul.addr %s299, 40
        %s301 = scalar_lea.vmem [#allocation2], %s300
        %p302 = pneg %p46
        %p303 = pneg %p43
        %p304 = pneg %p67
        %p305 = pneg %p64
        %p306 = pneg %p88
        %p307 = pneg %p85
        %p308 = pneg %p109
        %p309 = pneg %p106
        %p310 = pneg %p130
        %p311 = pneg %p127
        %p312 = pneg %p151
        %p313 = pneg %p148
        %p314 = pneg %p172
        %p315 = pneg %p169
        %p316 = pneg %p198
        %p317 = pneg %p195
        %s318 = sand.u32 %s185, 1
        %s319 = scalar_lea.sflag [#allocation4], %s318
        %s320 = sand.u32 %s185, 1
        %s321 = scalar_lea.vmem [#allocation8], %s320
        %v322 = vld [vmem:[%s1] sm:$0xff]
        %v323 = vld [vmem:[#allocation5] sm:$0xff]
        %v324 = vld [vmem:[%s284] sm:$0xf]
        %v327 = vunpack.c.l.s4 1966171168
        %v328 = vunpack.c.0.s8 %v327
        %v329 = vlaneseq
        %v330 = vshrl.u32 %v329, 7
        %v331 = vsub.s32 %v328, %v330
        %v332 = vrot.slane %v324, %v331
        %v333 = vcombine.high %v332, %v332
        %v335 = vunpack.c.l.s4 1966171168
        %v336 = vunpack.c.0.s8 %v335
        %v337 = vlaneseq
        %v338 = vshrl.u32 %v337, 7
        %v339 = vsub.s32 %v336, %v338
        %v340 = vrot.slane %v332, %v339
        %v342 = vunpack.c.l.s4 1966171168
        %v343 = vunpack.c.0.s8 %v342
        %v344 = vlaneseq
        %v345 = vshrl.u32 %v344, 7
        %v346 = vsub.s32 %v343, %v345
        %v347 = vrot.slane %v333, %v346
        %v348 = vcombine.high %v340, %v340
        %v349 = vcombine.high %v347, %v347
        %v350 = vlaneseq
        %v351 = vshrl.u32 %v350, 7
        %v352 = vsub.s32 0, %v351
        %v353 = vrot.slane %v340, %v352
        %v354 = vlaneseq
        %v355 = vshrl.u32 %v354, 7
        %v356 = vsub.s32 0, %v355
        %v357 = vrot.slane %v347, %v356
        %v358 = vlaneseq
        %v359 = vshrl.u32 %v358, 7
        %v360 = vsub.s32 0, %v359
        %v361 = vrot.slane %v348, %v360
        %v362 = vlaneseq
        %v363 = vshrl.u32 %v362, 7
        %v364 = vsub.s32 0, %v363
        %v365 = vrot.slane %v349, %v364
        %v370 = vmul.f32 %v353, %v324
        %v371 = vmul.f32 %v357, %v324
        %v372 = vmul.f32 %v361, %v324
        %v373 = vmul.f32 %v365, %v324
        %v378 = vcombine.low %v370, %v371
        %v379 = vcombine.low %v372, %v373
        %vm382 = vcmask 130048
        %v384 = vsel %vm382, %v322, 0
        %386 = vmatprep.subr.mxu0 0.0
        %387 = vmatpush1.msra.mxu0 0.0
        %388 = vmatprep.subr.mxu0 0.0
        %389 = vmatpush1.msra.mxu0 0.0
        %390 = vmatprep.subr.mxu0 0.0
        %391 = vmatpush1.msra.mxu0 0.0
        %392 = vmatprep.subr.mxu0 0.0
        %393 = vmatpush1.msra.mxu0 0.0
        %394 = vmatprep.subr.mxu0 0.0
        %395 = vmatpush1.msra.mxu0 0.0
        %396 = vmatprep.subr.mxu0 0.0
        %397 = vmatpush1.msra.mxu0 0.0
        %398 = vmatprep.subr.mxu0 0.0
        %399 = vmatpush1.msra.mxu0 0.0
        %400 = vmatprep.subr.mxu0 0.0
        %401 = vmatpush1.msra.mxu0 0.0
        %402 = vmatprep.subr.mxu0 0.0
        %403 = vmatpush1.msra.mxu0 0.0
        %404 = vmatprep.subr.mxu0 0.0
        %405 = vmatpush1.msra.mxu0 0.0
        %406 = vmatprep.subr.mxu0 0.0
        %407 = vmatpush1.msra.mxu0 0.0
        %408 = vmatprep.subr.mxu0 0.0
        %409 = vmatpush1.msra.mxu0 0.0
        %410 = vmatprep.subr.mxu0 0.0
        %411 = vmatpush1.msra.mxu0 0.0
        %412 = vmatprep.subr.mxu0 0.0
        %413 = vmatpush1.msra.mxu0 0.0
        %414 = vmatprep.subr.mxu0 0.0
        %415 = vmatpush1.msra.mxu0 %v379
        %416 = vmatprep.subr.mxu0 0.0
        %417 = vmatpush1.msra.mxu0 %v378
        %418 = vmatprep.subr.mxu0 0.0
        %419 = vmatpush2.msra.mxu0 0.0
        %420 = vmatprep.subr.mxu0 0.0
        %421 = vmatpush2.msra.mxu0 0.0
        %422 = vmatprep.subr.mxu0 0.0
        %423 = vmatpush2.msra.mxu0 0.0
        %424 = vmatprep.subr.mxu0 0.0
        %425 = vmatpush2.msra.mxu0 0.0
        %426 = vmatprep.subr.mxu0 0.0
        %427 = vmatpush2.msra.mxu0 0.0
        %428 = vmatprep.subr.mxu0 0.0
        %429 = vmatpush2.msra.mxu0 0.0
        %430 = vmatprep.subr.mxu0 0.0
        %431 = vmatpush2.msra.mxu0 0.0
        %432 = vmatprep.subr.mxu0 0.0
        %433 = vmatpush2.msra.mxu0 0.0
        %434 = vmatprep.subr.mxu0 0.0
        %435 = vmatpush2.msra.mxu0 0.0
        %436 = vmatprep.subr.mxu0 0.0
        %437 = vmatpush2.msra.mxu0 0.0
        %438 = vmatprep.subr.mxu0 0.0
        %439 = vmatpush2.msra.mxu0 0.0
        %440 = vmatprep.subr.mxu0 0.0
        %441 = vmatpush2.msra.mxu0 0.0
        %442 = vmatprep.subr.mxu0 0.0
        %443 = vmatpush2.msra.mxu0 0.0
        %444 = vmatprep.subr.mxu0 0.0
        %445 = vmatpush2.msra.mxu0 0.0
        %446 = vmatprep.subr.mxu0 0.0
        %447 = vmatpush2.msra.mxu0 0.0
        %448 = vmatprep.subr.mxu0 0.0
        %449 = vmatpush2.msra.mxu0 0.0
        %450 = vmatprep.mubr.f32.mxu0 0.0
        %451 = vmatmul.mubr.f32.gmra.mxu0 %v384
        %v452 = vpop.f32.mrf.mxu0
        %v453 = vadd.f32 0.0, %v452
        %v454 = vpop.f32.mrf.mxu0
        %455 = vdwg.mxu0
        %v456 = vadd.f32 %v453, 0.0
        %v458 = vcombine.high %v453, %v453
        %v460 = vunpack.c.l.s4 1966171168
        %v461 = vunpack.c.0.s8 %v460
        %v462 = vlaneseq
        %v463 = vshrl.u32 %v462, 7
        %v464 = vsub.s32 %v461, %v463
        %v465 = vrot.slane %v453, %v464
        %v467 = vunpack.c.l.s4 1966171168
        %v468 = vunpack.c.0.s8 %v467
        %v469 = vlaneseq
        %v470 = vshrl.u32 %v469, 7
        %v471 = vsub.s32 %v468, %v470
        %v472 = vrot.slane %v458, %v471
        %v473 = vcombine.high %v465, %v465
        %v474 = vcombine.high %v472, %v472
        %v476 = vunpack.c.l.s4 1966171168
        %v477 = vunpack.c.0.s8 %v476
        %v478 = vlaneseq
        %v479 = vshrl.u32 %v478, 7
        %v480 = vsub.s32 %v477, %v479
        %v481 = vrot.slane %v465, %v480
        %v483 = vunpack.c.l.s4 1966171168
        %v484 = vunpack.c.0.s8 %v483
        %v485 = vlaneseq
        %v486 = vshrl.u32 %v485, 7
        %v487 = vsub.s32 %v484, %v486
        %v488 = vrot.slane %v472, %v487
        %v490 = vunpack.c.l.s4 1966171168
        %v491 = vunpack.c.0.s8 %v490
        %v492 = vlaneseq
        %v493 = vshrl.u32 %v492, 7
        %v494 = vsub.s32 %v491, %v493
        %v495 = vrot.slane %v473, %v494
        %v497 = vunpack.c.l.s4 1966171168
        %v498 = vunpack.c.0.s8 %v497
        %v499 = vlaneseq
        %v500 = vshrl.u32 %v499, 7
        %v501 = vsub.s32 %v498, %v500
        %v502 = vrot.slane %v474, %v501
        %v503 = vcombine.high %v481, %v481
        %v504 = vcombine.high %v488, %v488
        %v505 = vcombine.high %v495, %v495
        %v506 = vcombine.high %v502, %v502
        %v507 = vlaneseq
        %v508 = vshrl.u32 %v507, 7
        %v509 = vsub.s32 0, %v508
        %v510 = vrot.slane %v481, %v509
        %v511 = vlaneseq
        %v512 = vshrl.u32 %v511, 7
        %v513 = vsub.s32 0, %v512
        %v514 = vrot.slane %v495, %v513
        %v515 = vlaneseq
        %v516 = vshrl.u32 %v515, 7
        %v517 = vsub.s32 0, %v516
        %v518 = vrot.slane %v503, %v517
        %v519 = vlaneseq
        %v520 = vshrl.u32 %v519, 7
        %v521 = vsub.s32 0, %v520
        %v522 = vrot.slane %v505, %v521
        %v523 = vlaneseq
        %v524 = vshrl.u32 %v523, 7
        %v525 = vsub.s32 0, %v524
        %v526 = vrot.slane %v488, %v525
        %v527 = vlaneseq
        %v528 = vshrl.u32 %v527, 7
        %v529 = vsub.s32 0, %v528
        %v530 = vrot.slane %v502, %v529
        %v531 = vlaneseq
        %v532 = vshrl.u32 %v531, 7
        %v533 = vsub.s32 0, %v532
        %v534 = vrot.slane %v504, %v533
        %v535 = vlaneseq
        %v536 = vshrl.u32 %v535, 7
        %v537 = vsub.s32 0, %v536
        %v538 = vrot.slane %v506, %v537
        %v547 = vmul.f32 %v510, %v324
        %v548 = vmul.f32 %v514, %v324
        %v549 = vmul.f32 %v518, %v324
        %v550 = vmul.f32 %v522, %v324
        %v551 = vmul.f32 %v526, %v324
        %v552 = vmul.f32 %v530, %v324
        %v553 = vmul.f32 %v534, %v324
        %v554 = vmul.f32 %v538, %v324
        %v555 = vld [vmem:[%s284 + $0x4] sm:$0xf]
        %v558 = vunpack.c.l.s4 1966171168
        %v559 = vunpack.c.0.s8 %v558
        %v560 = vlaneseq
        %v561 = vshrl.u32 %v560, 7
        %v562 = vsub.s32 %v559, %v561
        %v563 = vrot.slane %v555, %v562
        %v564 = vcombine.high %v563, %v563
        %v566 = vunpack.c.l.s4 1966171168
        %v567 = vunpack.c.0.s8 %v566
        %v568 = vlaneseq
        %v569 = vshrl.u32 %v568, 7
        %v570 = vsub.s32 %v567, %v569
        %v571 = vrot.slane %v563, %v570
        %v573 = vunpack.c.l.s4 1966171168
        %v574 = vunpack.c.0.s8 %v573
        %v575 = vlaneseq
        %v576 = vshrl.u32 %v575, 7
        %v577 = vsub.s32 %v574, %v576
        %v578 = vrot.slane %v564, %v577
        %v579 = vcombine.high %v571, %v571
        %v580 = vcombine.high %v578, %v578
        %v581 = vlaneseq
        %v582 = vshrl.u32 %v581, 7
        %v583 = vsub.s32 0, %v582
        %v584 = vrot.slane %v571, %v583
        %v585 = vlaneseq
        %v586 = vshrl.u32 %v585, 7
        %v587 = vsub.s32 0, %v586
        %v588 = vrot.slane %v578, %v587
        %v589 = vlaneseq
        %v590 = vshrl.u32 %v589, 7
        %v591 = vsub.s32 0, %v590
        %v592 = vrot.slane %v579, %v591
        %v593 = vlaneseq
        %v594 = vshrl.u32 %v593, 7
        %v595 = vsub.s32 0, %v594
        %v596 = vrot.slane %v580, %v595
        %v601 = vmul.f32 %v584, %v555
        %v602 = vmul.f32 %v588, %v555
        %v603 = vmul.f32 %v592, %v555
        %v604 = vmul.f32 %v596, %v555
        %v609 = vcombine.low %v601, %v602
        %v610 = vcombine.low %v603, %v604
        %613 = vmatprep.subr.mxu0 0.0
        %614 = vmatpush1.msra.mxu0 0.0
        %615 = vmatprep.subr.mxu0 0.0
        %616 = vmatpush1.msra.mxu0 0.0
        %617 = vmatprep.subr.mxu0 0.0
        %618 = vmatpush1.msra.mxu0 0.0
        %619 = vmatprep.subr.mxu0 0.0
        %620 = vmatpush1.msra.mxu0 0.0
        %621 = vmatprep.subr.mxu0 0.0
        %622 = vmatpush1.msra.mxu0 0.0
        %623 = vmatprep.subr.mxu0 0.0
        %624 = vmatpush1.msra.mxu0 0.0
        %625 = vmatprep.subr.mxu0 0.0
        %626 = vmatpush1.msra.mxu0 0.0
        %627 = vmatprep.subr.mxu0 0.0
        %628 = vmatpush1.msra.mxu0 0.0
        %629 = vmatprep.subr.mxu0 0.0
        %630 = vmatpush1.msra.mxu0 0.0
        %631 = vmatprep.subr.mxu0 0.0
        %632 = vmatpush1.msra.mxu0 0.0
        %633 = vmatprep.subr.mxu0 0.0
        %634 = vmatpush1.msra.mxu0 0.0
        %635 = vmatprep.subr.mxu0 0.0
        %636 = vmatpush1.msra.mxu0 0.0
        %637 = vmatprep.subr.mxu0 0.0
        %638 = vmatpush1.msra.mxu0 0.0
        %639 = vmatprep.subr.mxu0 0.0
        %640 = vmatpush1.msra.mxu0 0.0
        %641 = vmatprep.subr.mxu0 0.0
        %642 = vmatpush1.msra.mxu0 %v610
        %643 = vmatprep.subr.mxu0 0.0
        %644 = vmatpush1.msra.mxu0 %v609
        %645 = vmatprep.subr.mxu0 0.0
        %646 = vmatpush2.msra.mxu0 0.0
        %647 = vmatprep.subr.mxu0 0.0
        %648 = vmatpush2.msra.mxu0 0.0
        %649 = vmatprep.subr.mxu0 0.0
        %650 = vmatpush2.msra.mxu0 0.0
        %651 = vmatprep.subr.mxu0 0.0
        %652 = vmatpush2.msra.mxu0 0.0
        %653 = vmatprep.subr.mxu0 0.0
        %654 = vmatpush2.msra.mxu0 0.0
        %655 = vmatprep.subr.mxu0 0.0
        %656 = vmatpush2.msra.mxu0 0.0
        %657 = vmatprep.subr.mxu0 0.0
        %658 = vmatpush2.msra.mxu0 0.0
        %659 = vmatprep.subr.mxu0 0.0
        %660 = vmatpush2.msra.mxu0 0.0
        %661 = vmatprep.subr.mxu0 0.0
        %662 = vmatpush2.msra.mxu0 0.0
        %663 = vmatprep.subr.mxu0 0.0
        %664 = vmatpush2.msra.mxu0 0.0
        %665 = vmatprep.subr.mxu0 0.0
        %666 = vmatpush2.msra.mxu0 0.0
        %667 = vmatprep.subr.mxu0 0.0
        %668 = vmatpush2.msra.mxu0 0.0
        %669 = vmatprep.subr.mxu0 0.0
        %670 = vmatpush2.msra.mxu0 0.0
        %671 = vmatprep.subr.mxu0 0.0
        %672 = vmatpush2.msra.mxu0 0.0
        %673 = vmatprep.subr.mxu0 0.0
        %674 = vmatpush2.msra.mxu0 0.0
        %675 = vmatprep.subr.mxu0 0.0
        %676 = vmatpush2.msra.mxu0 0.0
        %677 = vmatprep.mubr.f32.mxu0 0.0
        %678 = vmatmul.mubr.f32.gmra.mxu0 %v384
        %v679 = vpop.f32.mrf.mxu0
        %v680 = vadd.f32 0.0, %v679
        %v681 = vpop.f32.mrf.mxu0
        %682 = vdwg.mxu0
        %v683 = vadd.f32 %v456, %v680
        %v685 = vcombine.high %v680, %v680
        %v687 = vunpack.c.l.s4 1966171168
        %v688 = vunpack.c.0.s8 %v687
        %v689 = vlaneseq
        %v690 = vshrl.u32 %v689, 7
        %v691 = vsub.s32 %v688, %v690
        %v692 = vrot.slane %v680, %v691
        %v694 = vunpack.c.l.s4 1966171168
        %v695 = vunpack.c.0.s8 %v694
        %v696 = vlaneseq
        %v697 = vshrl.u32 %v696, 7
        %v698 = vsub.s32 %v695, %v697
        %v699 = vrot.slane %v685, %v698
        %v700 = vcombine.high %v692, %v692
        %v701 = vcombine.high %v699, %v699
        %v703 = vunpack.c.l.s4 1966171168
        %v704 = vunpack.c.0.s8 %v703
        %v705 = vlaneseq
        %v706 = vshrl.u32 %v705, 7
        %v707 = vsub.s32 %v704, %v706
        %v708 = vrot.slane %v692, %v707
        %v710 = vunpack.c.l.s4 1966171168
        %v711 = vunpack.c.0.s8 %v710
        %v712 = vlaneseq
        %v713 = vshrl.u32 %v712, 7
        %v714 = vsub.s32 %v711, %v713
        %v715 = vrot.slane %v699, %v714
        %v717 = vunpack.c.l.s4 1966171168
        %v718 = vunpack.c.0.s8 %v717
        %v719 = vlaneseq
        %v720 = vshrl.u32 %v719, 7
        %v721 = vsub.s32 %v718, %v720
        %v722 = vrot.slane %v700, %v721
        %v724 = vunpack.c.l.s4 1966171168
        %v725 = vunpack.c.0.s8 %v724
        %v726 = vlaneseq
        %v727 = vshrl.u32 %v726, 7
        %v728 = vsub.s32 %v725, %v727
        %v729 = vrot.slane %v701, %v728
        %v730 = vcombine.high %v708, %v708
        %v731 = vcombine.high %v715, %v715
        %v732 = vcombine.high %v722, %v722
        %v733 = vcombine.high %v729, %v729
        %v734 = vlaneseq
        %v735 = vshrl.u32 %v734, 7
        %v736 = vsub.s32 0, %v735
        %v737 = vrot.slane %v708, %v736
        %v738 = vlaneseq
        %v739 = vshrl.u32 %v738, 7
        %v740 = vsub.s32 0, %v739
        %v741 = vrot.slane %v722, %v740
        %v742 = vlaneseq
        %v743 = vshrl.u32 %v742, 7
        %v744 = vsub.s32 0, %v743
        %v745 = vrot.slane %v730, %v744
        %v746 = vlaneseq
        %v747 = vshrl.u32 %v746, 7
        %v748 = vsub.s32 0, %v747
        %v749 = vrot.slane %v732, %v748
        %v750 = vlaneseq
        %v751 = vshrl.u32 %v750, 7
        %v752 = vsub.s32 0, %v751
        %v753 = vrot.slane %v715, %v752
        %v754 = vlaneseq
        %v755 = vshrl.u32 %v754, 7
        %v756 = vsub.s32 0, %v755
        %v757 = vrot.slane %v729, %v756
        %v758 = vlaneseq
        %v759 = vshrl.u32 %v758, 7
        %v760 = vsub.s32 0, %v759
        %v761 = vrot.slane %v731, %v760
        %v762 = vlaneseq
        %v763 = vshrl.u32 %v762, 7
        %v764 = vsub.s32 0, %v763
        %v765 = vrot.slane %v733, %v764
        %v774 = vmul.f32 %v737, %v555
        %v775 = vmul.f32 %v741, %v555
        %v776 = vmul.f32 %v745, %v555
        %v777 = vmul.f32 %v749, %v555
        %v778 = vmul.f32 %v753, %v555
        %v779 = vmul.f32 %v757, %v555
        %v780 = vmul.f32 %v761, %v555
        %v781 = vmul.f32 %v765, %v555
        %v790 = vcombine.low %v774, %v775
        %v791 = vcombine.low %v776, %v777
        %v792 = vcombine.low %v778, %v779
        %v793 = vcombine.low %v780, %v781
        %vm798 = vcmask 261120
        %v800 = vsel %vm798, %v323, 0
        %802 = vmatprep.subr.mxu0 0.0
        %803 = vmatpush1.msra.mxu0 0.0
        %804 = vmatprep.subr.mxu0 0.0
        %805 = vmatpush1.msra.mxu0 0.0
        %806 = vmatprep.subr.mxu0 0.0
        %807 = vmatpush1.msra.mxu0 0.0
        %808 = vmatprep.subr.mxu0 0.0
        %809 = vmatpush1.msra.mxu0 0.0
        %810 = vmatprep.subr.mxu0 0.0
        %811 = vmatpush1.msra.mxu0 0.0
        %812 = vmatprep.subr.mxu0 0.0
        %813 = vmatpush1.msra.mxu0 0.0
        %814 = vmatprep.subr.mxu0 0.0
        %815 = vmatpush1.msra.mxu0 0.0
        %816 = vmatprep.subr.mxu0 0.0
        %817 = vmatpush1.msra.mxu0 0.0
        %818 = vmatprep.subr.mxu0 0.0
        %819 = vmatpush1.msra.mxu0 0.0
        %820 = vmatprep.subr.mxu0 0.0
        %821 = vmatpush1.msra.mxu0 0.0
        %822 = vmatprep.subr.mxu0 0.0
        %823 = vmatpush1.msra.mxu0 0.0
        %824 = vmatprep.subr.mxu0 0.0
        %825 = vmatpush1.msra.mxu0 0.0
        %826 = vmatprep.subr.mxu0 0.0
        %827 = vmatpush1.msra.mxu0 %v793
        %828 = vmatprep.subr.mxu0 0.0
        %829 = vmatpush1.msra.mxu0 %v792
        %830 = vmatprep.subr.mxu0 0.0
        %831 = vmatpush1.msra.mxu0 %v791
        %832 = vmatprep.subr.mxu0 0.0
        %833 = vmatpush1.msra.mxu0 %v790
        %834 = vmatprep.subr.mxu0 0.0
        %835 = vmatpush2.msra.mxu0 0.0
        %836 = vmatprep.subr.mxu0 0.0
        %837 = vmatpush2.msra.mxu0 0.0
        %838 = vmatprep.subr.mxu0 0.0
        %839 = vmatpush2.msra.mxu0 0.0
        %840 = vmatprep.subr.mxu0 0.0
        %841 = vmatpush2.msra.mxu0 0.0
        %842 = vmatprep.subr.mxu0 0.0
        %843 = vmatpush2.msra.mxu0 0.0
        %844 = vmatprep.subr.mxu0 0.0
        %845 = vmatpush2.msra.mxu0 0.0
        %846 = vmatprep.subr.mxu0 0.0
        %847 = vmatpush2.msra.mxu0 0.0
        %848 = vmatprep.subr.mxu0 0.0
        %849 = vmatpush2.msra.mxu0 0.0
        %850 = vmatprep.subr.mxu0 0.0
        %851 = vmatpush2.msra.mxu0 0.0
        %852 = vmatprep.subr.mxu0 0.0
        %853 = vmatpush2.msra.mxu0 0.0
        %854 = vmatprep.subr.mxu0 0.0
        %855 = vmatpush2.msra.mxu0 0.0
        %856 = vmatprep.subr.mxu0 0.0
        %857 = vmatpush2.msra.mxu0 0.0
        %858 = vmatprep.subr.mxu0 0.0
        %859 = vmatpush2.msra.mxu0 0.0
        %860 = vmatprep.subr.mxu0 0.0
        %861 = vmatpush2.msra.mxu0 0.0
        %862 = vmatprep.subr.mxu0 0.0
        %863 = vmatpush2.msra.mxu0 0.0
        %864 = vmatprep.subr.mxu0 0.0
        %865 = vmatpush2.msra.mxu0 0.0
        %866 = vmatprep.mubr.f32.mxu0 0.0
        %867 = vmatmul.mubr.f32.gmra.mxu0 %v800
        %v868 = vpop.f32.mrf.mxu0
        %v869 = vadd.f32 0.0, %v868
        %v870 = vpop.f32.mrf.mxu0
        %871 = vdwg.mxu0
        %v880 = vcombine.low %v547, %v548
        %v881 = vcombine.low %v549, %v550
        %v882 = vcombine.low %v551, %v552
        %v883 = vcombine.low %v553, %v554
        %888 = vmatprep.subr.mxu0 0.0
        %889 = vmatpush1.msra.mxu0 0.0
        %890 = vmatprep.subr.mxu0 0.0
        %891 = vmatpush1.msra.mxu0 0.0
        %892 = vmatprep.subr.mxu0 0.0
        %893 = vmatpush1.msra.mxu0 0.0
        %894 = vmatprep.subr.mxu0 0.0
        %895 = vmatpush1.msra.mxu0 0.0
        %896 = vmatprep.subr.mxu0 0.0
        %897 = vmatpush1.msra.mxu0 0.0
        %898 = vmatprep.subr.mxu0 0.0
        %899 = vmatpush1.msra.mxu0 0.0
        %900 = vmatprep.subr.mxu0 0.0
        %901 = vmatpush1.msra.mxu0 0.0
        %902 = vmatprep.subr.mxu0 0.0
        %903 = vmatpush1.msra.mxu0 0.0
        %904 = vmatprep.subr.mxu0 0.0
        %905 = vmatpush1.msra.mxu0 0.0
        %906 = vmatprep.subr.mxu0 0.0
        %907 = vmatpush1.msra.mxu0 0.0
        %908 = vmatprep.subr.mxu0 0.0
        %909 = vmatpush1.msra.mxu0 0.0
        %910 = vmatprep.subr.mxu0 0.0
        %911 = vmatpush1.msra.mxu0 0.0
        %912 = vmatprep.subr.mxu0 0.0
        %913 = vmatpush1.msra.mxu0 %v883
        %914 = vmatprep.subr.mxu0 0.0
        %915 = vmatpush1.msra.mxu0 %v882
        %916 = vmatprep.subr.mxu0 0.0
        %917 = vmatpush1.msra.mxu0 %v881
        %918 = vmatprep.subr.mxu0 0.0
        %919 = vmatpush1.msra.mxu0 %v880
        %920 = vmatprep.subr.mxu0 0.0
        %921 = vmatpush2.msra.mxu0 0.0
        %922 = vmatprep.subr.mxu0 0.0
        %923 = vmatpush2.msra.mxu0 0.0
        %924 = vmatprep.subr.mxu0 0.0
        %925 = vmatpush2.msra.mxu0 0.0
        %926 = vmatprep.subr.mxu0 0.0
        %927 = vmatpush2.msra.mxu0 0.0
        %928 = vmatprep.subr.mxu0 0.0
        %929 = vmatpush2.msra.mxu0 0.0
        %930 = vmatprep.subr.mxu0 0.0
        %931 = vmatpush2.msra.mxu0 0.0
        %932 = vmatprep.subr.mxu0 0.0
        %933 = vmatpush2.msra.mxu0 0.0
        %934 = vmatprep.subr.mxu0 0.0
        %935 = vmatpush2.msra.mxu0 0.0
        %936 = vmatprep.subr.mxu0 0.0
        %937 = vmatpush2.msra.mxu0 0.0
        %938 = vmatprep.subr.mxu0 0.0
        %939 = vmatpush2.msra.mxu0 0.0
        %940 = vmatprep.subr.mxu0 0.0
        %941 = vmatpush2.msra.mxu0 0.0
        %942 = vmatprep.subr.mxu0 0.0
        %943 = vmatpush2.msra.mxu0 0.0
        %944 = vmatprep.subr.mxu0 0.0
        %945 = vmatpush2.msra.mxu0 0.0
        %946 = vmatprep.subr.mxu0 0.0
        %947 = vmatpush2.msra.mxu0 0.0
        %948 = vmatprep.subr.mxu0 0.0
        %949 = vmatpush2.msra.mxu0 0.0
        %950 = vmatprep.subr.mxu0 0.0
        %951 = vmatpush2.msra.mxu0 0.0
        %952 = vmatprep.mubr.f32.mxu0 0.0
        %953 = vmatmul.mubr.f32.gmra.mxu0 %v800
        %v954 = vpop.f32.mrf.mxu0
        %v955 = vadd.f32 %v869, %v954
        %v956 = vpop.f32.mrf.mxu0
        %957 = vdwg.mxu0
        %v958 = vld [vmem:[%s284 + $0x8] sm:$0xf]
        %v961 = vunpack.c.l.s4 1966171168
        %v962 = vunpack.c.0.s8 %v961
        %v963 = vlaneseq
        %v964 = vshrl.u32 %v963, 7
        %v965 = vsub.s32 %v962, %v964
        %v966 = vrot.slane %v958, %v965
        %v967 = vcombine.high %v966, %v966
        %v969 = vunpack.c.l.s4 1966171168
        %v970 = vunpack.c.0.s8 %v969
        %v971 = vlaneseq
        %v972 = vshrl.u32 %v971, 7
        %v973 = vsub.s32 %v970, %v972
        %v974 = vrot.slane %v966, %v973
        %v976 = vunpack.c.l.s4 1966171168
        %v977 = vunpack.c.0.s8 %v976
        %v978 = vlaneseq
        %v979 = vshrl.u32 %v978, 7
        %v980 = vsub.s32 %v977, %v979
        %v981 = vrot.slane %v967, %v980
        %v982 = vcombine.high %v974, %v974
        %v983 = vcombine.high %v981, %v981
        %v984 = vlaneseq
        %v985 = vshrl.u32 %v984, 7
        %v986 = vsub.s32 0, %v985
        %v987 = vrot.slane %v974, %v986
        %v988 = vlaneseq
        %v989 = vshrl.u32 %v988, 7
        %v990 = vsub.s32 0, %v989
        %v991 = vrot.slane %v981, %v990
        %v992 = vlaneseq
        %v993 = vshrl.u32 %v992, 7
        %v994 = vsub.s32 0, %v993
        %v995 = vrot.slane %v982, %v994
        %v996 = vlaneseq
        %v997 = vshrl.u32 %v996, 7
        %v998 = vsub.s32 0, %v997
        %v999 = vrot.slane %v983, %v998
        %v1004 = vmul.f32 %v987, %v958
        %v1005 = vmul.f32 %v991, %v958
        %v1006 = vmul.f32 %v995, %v958
        %v1007 = vmul.f32 %v999, %v958
        %v1012 = vcombine.low %v1004, %v1005
        %v1013 = vcombine.low %v1006, %v1007
        %1016 = vmatprep.subr.mxu0 0.0
        %1017 = vmatpush1.msra.mxu0 0.0
        %1018 = vmatprep.subr.mxu0 0.0
        %1019 = vmatpush1.msra.mxu0 0.0
        %1020 = vmatprep.subr.mxu0 0.0
        %1021 = vmatpush1.msra.mxu0 0.0
        %1022 = vmatprep.subr.mxu0 0.0
        %1023 = vmatpush1.msra.mxu0 0.0
        %1024 = vmatprep.subr.mxu0 0.0
        %1025 = vmatpush1.msra.mxu0 0.0
        %1026 = vmatprep.subr.mxu0 0.0
        %1027 = vmatpush1.msra.mxu0 0.0
        %1028 = vmatprep.subr.mxu0 0.0
        %1029 = vmatpush1.msra.mxu0 0.0
        %1030 = vmatprep.subr.mxu0 0.0
        %1031 = vmatpush1.msra.mxu0 0.0
        %1032 = vmatprep.subr.mxu0 0.0
        %1033 = vmatpush1.msra.mxu0 0.0
        %1034 = vmatprep.subr.mxu0 0.0
        %1035 = vmatpush1.msra.mxu0 0.0
        %1036 = vmatprep.subr.mxu0 0.0
        %1037 = vmatpush1.msra.mxu0 0.0
        %1038 = vmatprep.subr.mxu0 0.0
        %1039 = vmatpush1.msra.mxu0 0.0
        %1040 = vmatprep.subr.mxu0 0.0
        %1041 = vmatpush1.msra.mxu0 0.0
        %1042 = vmatprep.subr.mxu0 0.0
        %1043 = vmatpush1.msra.mxu0 0.0
        %1044 = vmatprep.subr.mxu0 0.0
        %1045 = vmatpush1.msra.mxu0 %v1013
        %1046 = vmatprep.subr.mxu0 0.0
        %1047 = vmatpush1.msra.mxu0 %v1012
        %1048 = vmatprep.subr.mxu0 0.0
        %1049 = vmatpush2.msra.mxu0 0.0
        %1050 = vmatprep.subr.mxu0 0.0
        %1051 = vmatpush2.msra.mxu0 0.0
        %1052 = vmatprep.subr.mxu0 0.0
        %1053 = vmatpush2.msra.mxu0 0.0
        %1054 = vmatprep.subr.mxu0 0.0
        %1055 = vmatpush2.msra.mxu0 0.0
        %1056 = vmatprep.subr.mxu0 0.0
        %1057 = vmatpush2.msra.mxu0 0.0
        %1058 = vmatprep.subr.mxu0 0.0
        %1059 = vmatpush2.msra.mxu0 0.0
        %1060 = vmatprep.subr.mxu0 0.0
        %1061 = vmatpush2.msra.mxu0 0.0
        %1062 = vmatprep.subr.mxu0 0.0
        %1063 = vmatpush2.msra.mxu0 0.0
        %1064 = vmatprep.subr.mxu0 0.0
        %1065 = vmatpush2.msra.mxu0 0.0
        %1066 = vmatprep.subr.mxu0 0.0
        %1067 = vmatpush2.msra.mxu0 0.0
        %1068 = vmatprep.subr.mxu0 0.0
        %1069 = vmatpush2.msra.mxu0 0.0
        %1070 = vmatprep.subr.mxu0 0.0
        %1071 = vmatpush2.msra.mxu0 0.0
        %1072 = vmatprep.subr.mxu0 0.0
        %1073 = vmatpush2.msra.mxu0 0.0
        %1074 = vmatprep.subr.mxu0 0.0
        %1075 = vmatpush2.msra.mxu0 0.0
        %1076 = vmatprep.subr.mxu0 0.0
        %1077 = vmatpush2.msra.mxu0 0.0
        %1078 = vmatprep.subr.mxu0 0.0
        %1079 = vmatpush2.msra.mxu0 0.0
        %1080 = vmatprep.mubr.f32.mxu0 0.0
        %1081 = vmatmul.mubr.f32.gmra.mxu0 %v384
        %v1082 = vpop.f32.mrf.mxu0
        %v1083 = vadd.f32 0.0, %v1082
        %v1084 = vpop.f32.mrf.mxu0
        %1085 = vdwg.mxu0
        %v1086 = vadd.f32 %v683, %v1083
        %v1088 = vcombine.high %v1083, %v1083
        %v1090 = vunpack.c.l.s4 1966171168
        %v1091 = vunpack.c.0.s8 %v1090
        %v1092 = vlaneseq
        %v1093 = vshrl.u32 %v1092, 7
        %v1094 = vsub.s32 %v1091, %v1093
        %v1095 = vrot.slane %v1083, %v1094
        %v1097 = vunpack.c.l.s4 1966171168
        %v1098 = vunpack.c.0.s8 %v1097
        %v1099 = vlaneseq
        %v1100 = vshrl.u32 %v1099, 7
        %v1101 = vsub.s32 %v1098, %v1100
        %v1102 = vrot.slane %v1088, %v1101
        %v1103 = vcombine.high %v1095, %v1095
        %v1104 = vcombine.high %v1102, %v1102
        %v1106 = vunpack.c.l.s4 1966171168
        %v1107 = vunpack.c.0.s8 %v1106
        %v1108 = vlaneseq
        %v1109 = vshrl.u32 %v1108, 7
        %v1110 = vsub.s32 %v1107, %v1109
        %v1111 = vrot.slane %v1095, %v1110
        %v1113 = vunpack.c.l.s4 1966171168
        %v1114 = vunpack.c.0.s8 %v1113
        %v1115 = vlaneseq
        %v1116 = vshrl.u32 %v1115, 7
        %v1117 = vsub.s32 %v1114, %v1116
        %v1118 = vrot.slane %v1102, %v1117
        %v1120 = vunpack.c.l.s4 1966171168
        %v1121 = vunpack.c.0.s8 %v1120
        %v1122 = vlaneseq
        %v1123 = vshrl.u32 %v1122, 7
        %v1124 = vsub.s32 %v1121, %v1123
        %v1125 = vrot.slane %v1103, %v1124
        %v1127 = vunpack.c.l.s4 1966171168
        %v1128 = vunpack.c.0.s8 %v1127
        %v1129 = vlaneseq
        %v1130 = vshrl.u32 %v1129, 7
        %v1131 = vsub.s32 %v1128, %v1130
        %v1132 = vrot.slane %v1104, %v1131
        %v1133 = vcombine.high %v1111, %v1111
        %v1134 = vcombine.high %v1118, %v1118
        %v1135 = vcombine.high %v1125, %v1125
        %v1136 = vcombine.high %v1132, %v1132
        %v1137 = vlaneseq
        %v1138 = vshrl.u32 %v1137, 7
        %v1139 = vsub.s32 0, %v1138
        %v1140 = vrot.slane %v1111, %v1139
        %v1141 = vlaneseq
        %v1142 = vshrl.u32 %v1141, 7
        %v1143 = vsub.s32 0, %v1142
        %v1144 = vrot.slane %v1125, %v1143
        %v1145 = vlaneseq
        %v1146 = vshrl.u32 %v1145, 7
        %v1147 = vsub.s32 0, %v1146
        %v1148 = vrot.slane %v1133, %v1147
        %v1149 = vlaneseq
        %v1150 = vshrl.u32 %v1149, 7
        %v1151 = vsub.s32 0, %v1150
        %v1152 = vrot.slane %v1135, %v1151
        %v1153 = vlaneseq
        %v1154 = vshrl.u32 %v1153, 7
        %v1155 = vsub.s32 0, %v1154
        %v1156 = vrot.slane %v1118, %v1155
        %v1157 = vlaneseq
        %v1158 = vshrl.u32 %v1157, 7
        %v1159 = vsub.s32 0, %v1158
        %v1160 = vrot.slane %v1132, %v1159
        %v1161 = vlaneseq
        %v1162 = vshrl.u32 %v1161, 7
        %v1163 = vsub.s32 0, %v1162
        %v1164 = vrot.slane %v1134, %v1163
        %v1165 = vlaneseq
        %v1166 = vshrl.u32 %v1165, 7
        %v1167 = vsub.s32 0, %v1166
        %v1168 = vrot.slane %v1136, %v1167
        %v1177 = vmul.f32 %v1140, %v958
        %v1178 = vmul.f32 %v1144, %v958
        %v1179 = vmul.f32 %v1148, %v958
        %v1180 = vmul.f32 %v1152, %v958
        %v1181 = vmul.f32 %v1156, %v958
        %v1182 = vmul.f32 %v1160, %v958
        %v1183 = vmul.f32 %v1164, %v958
        %v1184 = vmul.f32 %v1168, %v958
        %v1193 = vcombine.low %v1177, %v1178
        %v1194 = vcombine.low %v1179, %v1180
        %v1195 = vcombine.low %v1181, %v1182
        %v1196 = vcombine.low %v1183, %v1184
        %1201 = vmatprep.subr.mxu0 0.0
        %1202 = vmatpush1.msra.mxu0 0.0
        %1203 = vmatprep.subr.mxu0 0.0
        %1204 = vmatpush1.msra.mxu0 0.0
        %1205 = vmatprep.subr.mxu0 0.0
        %1206 = vmatpush1.msra.mxu0 0.0
        %1207 = vmatprep.subr.mxu0 0.0
        %1208 = vmatpush1.msra.mxu0 0.0
        %1209 = vmatprep.subr.mxu0 0.0
        %1210 = vmatpush1.msra.mxu0 0.0
        %1211 = vmatprep.subr.mxu0 0.0
        %1212 = vmatpush1.msra.mxu0 0.0
        %1213 = vmatprep.subr.mxu0 0.0
        %1214 = vmatpush1.msra.mxu0 0.0
        %1215 = vmatprep.subr.mxu0 0.0
        %1216 = vmatpush1.msra.mxu0 0.0
        %1217 = vmatprep.subr.mxu0 0.0
        %1218 = vmatpush1.msra.mxu0 0.0
        %1219 = vmatprep.subr.mxu0 0.0
        %1220 = vmatpush1.msra.mxu0 0.0
        %1221 = vmatprep.subr.mxu0 0.0
        %1222 = vmatpush1.msra.mxu0 0.0
        %1223 = vmatprep.subr.mxu0 0.0
        %1224 = vmatpush1.msra.mxu0 0.0
        %1225 = vmatprep.subr.mxu0 0.0
        %1226 = vmatpush1.msra.mxu0 %v1196
        %1227 = vmatprep.subr.mxu0 0.0
        %1228 = vmatpush1.msra.mxu0 %v1195
        %1229 = vmatprep.subr.mxu0 0.0
        %1230 = vmatpush1.msra.mxu0 %v1194
        %1231 = vmatprep.subr.mxu0 0.0
        %1232 = vmatpush1.msra.mxu0 %v1193
        %1233 = vmatprep.subr.mxu0 0.0
        %1234 = vmatpush2.msra.mxu0 0.0
        %1235 = vmatprep.subr.mxu0 0.0
        %1236 = vmatpush2.msra.mxu0 0.0
        %1237 = vmatprep.subr.mxu0 0.0
        %1238 = vmatpush2.msra.mxu0 0.0
        %1239 = vmatprep.subr.mxu0 0.0
        %1240 = vmatpush2.msra.mxu0 0.0
        %1241 = vmatprep.subr.mxu0 0.0
        %1242 = vmatpush2.msra.mxu0 0.0
        %1243 = vmatprep.subr.mxu0 0.0
        %1244 = vmatpush2.msra.mxu0 0.0
        %1245 = vmatprep.subr.mxu0 0.0
        %1246 = vmatpush2.msra.mxu0 0.0
        %1247 = vmatprep.subr.mxu0 0.0
        %1248 = vmatpush2.msra.mxu0 0.0
        %1249 = vmatprep.subr.mxu0 0.0
        %1250 = vmatpush2.msra.mxu0 0.0
        %1251 = vmatprep.subr.mxu0 0.0
        %1252 = vmatpush2.msra.mxu0 0.0
        %1253 = vmatprep.subr.mxu0 0.0
        %1254 = vmatpush2.msra.mxu0 0.0
        %1255 = vmatprep.subr.mxu0 0.0
        %1256 = vmatpush2.msra.mxu0 0.0
        %1257 = vmatprep.subr.mxu0 0.0
        %1258 = vmatpush2.msra.mxu0 0.0
        %1259 = vmatprep.subr.mxu0 0.0
        %1260 = vmatpush2.msra.mxu0 0.0
        %1261 = vmatprep.subr.mxu0 0.0
        %1262 = vmatpush2.msra.mxu0 0.0
        %1263 = vmatprep.subr.mxu0 0.0
        %1264 = vmatpush2.msra.mxu0 0.0
        %1265 = vmatprep.mubr.f32.mxu0 0.0
        %1266 = vmatmul.mubr.f32.gmra.mxu0 %v800
        %v1267 = vpop.f32.mrf.mxu0
        %v1268 = vadd.f32 0.0, %v1267
        %v1269 = vpop.f32.mrf.mxu0
        %1270 = vdwg.mxu0
        %v1271 = vadd.f32 %v955, %v1268
        %v1272 = vld [vmem:[%s284 + $0xc] sm:$0xf]
        %v1275 = vunpack.c.l.s4 1966171168
        %v1276 = vunpack.c.0.s8 %v1275
        %v1277 = vlaneseq
        %v1278 = vshrl.u32 %v1277, 7
        %v1279 = vsub.s32 %v1276, %v1278
        %v1280 = vrot.slane %v1272, %v1279
        %v1281 = vcombine.high %v1280, %v1280
        %v1283 = vunpack.c.l.s4 1966171168
        %v1284 = vunpack.c.0.s8 %v1283
        %v1285 = vlaneseq
        %v1286 = vshrl.u32 %v1285, 7
        %v1287 = vsub.s32 %v1284, %v1286
        %v1288 = vrot.slane %v1280, %v1287
        %v1290 = vunpack.c.l.s4 1966171168
        %v1291 = vunpack.c.0.s8 %v1290
        %v1292 = vlaneseq
        %v1293 = vshrl.u32 %v1292, 7
        %v1294 = vsub.s32 %v1291, %v1293
        %v1295 = vrot.slane %v1281, %v1294
        %v1296 = vcombine.high %v1288, %v1288
        %v1297 = vcombine.high %v1295, %v1295
        %v1298 = vlaneseq
        %v1299 = vshrl.u32 %v1298, 7
        %v1300 = vsub.s32 0, %v1299
        %v1301 = vrot.slane %v1288, %v1300
        %v1302 = vlaneseq
        %v1303 = vshrl.u32 %v1302, 7
        %v1304 = vsub.s32 0, %v1303
        %v1305 = vrot.slane %v1295, %v1304
        %v1306 = vlaneseq
        %v1307 = vshrl.u32 %v1306, 7
        %v1308 = vsub.s32 0, %v1307
        %v1309 = vrot.slane %v1296, %v1308
        %v1310 = vlaneseq
        %v1311 = vshrl.u32 %v1310, 7
        %v1312 = vsub.s32 0, %v1311
        %v1313 = vrot.slane %v1297, %v1312
        %v1318 = vmul.f32 %v1301, %v1272
        %v1319 = vmul.f32 %v1305, %v1272
        %v1320 = vmul.f32 %v1309, %v1272
        %v1321 = vmul.f32 %v1313, %v1272
        %v1326 = vcombine.low %v1318, %v1319
        %v1327 = vcombine.low %v1320, %v1321
        %1330 = vmatprep.subr.mxu0 0.0
        %1331 = vmatpush1.msra.mxu0 0.0
        %1332 = vmatprep.subr.mxu0 0.0
        %1333 = vmatpush1.msra.mxu0 0.0
        %1334 = vmatprep.subr.mxu0 0.0
        %1335 = vmatpush1.msra.mxu0 0.0
        %1336 = vmatprep.subr.mxu0 0.0
        %1337 = vmatpush1.msra.mxu0 0.0
        %1338 = vmatprep.subr.mxu0 0.0
        %1339 = vmatpush1.msra.mxu0 0.0
        %1340 = vmatprep.subr.mxu0 0.0
        %1341 = vmatpush1.msra.mxu0 0.0
        %1342 = vmatprep.subr.mxu0 0.0
        %1343 = vmatpush1.msra.mxu0 0.0
        %1344 = vmatprep.subr.mxu0 0.0
        %1345 = vmatpush1.msra.mxu0 0.0
        %1346 = vmatprep.subr.mxu0 0.0
        %1347 = vmatpush1.msra.mxu0 0.0
        %1348 = vmatprep.subr.mxu0 0.0
        %1349 = vmatpush1.msra.mxu0 0.0
        %1350 = vmatprep.subr.mxu0 0.0
        %1351 = vmatpush1.msra.mxu0 0.0
        %1352 = vmatprep.subr.mxu0 0.0
        %1353 = vmatpush1.msra.mxu0 0.0
        %1354 = vmatprep.subr.mxu0 0.0
        %1355 = vmatpush1.msra.mxu0 0.0
        %1356 = vmatprep.subr.mxu0 0.0
        %1357 = vmatpush1.msra.mxu0 0.0
        %1358 = vmatprep.subr.mxu0 0.0
        %1359 = vmatpush1.msra.mxu0 %v1327
        %1360 = vmatprep.subr.mxu0 0.0
        %1361 = vmatpush1.msra.mxu0 %v1326
        %1362 = vmatprep.subr.mxu0 0.0
        %1363 = vmatpush2.msra.mxu0 0.0
        %1364 = vmatprep.subr.mxu0 0.0
        %1365 = vmatpush2.msra.mxu0 0.0
        %1366 = vmatprep.subr.mxu0 0.0
        %1367 = vmatpush2.msra.mxu0 0.0
        %1368 = vmatprep.subr.mxu0 0.0
        %1369 = vmatpush2.msra.mxu0 0.0
        %1370 = vmatprep.subr.mxu0 0.0
        %1371 = vmatpush2.msra.mxu0 0.0
        %1372 = vmatprep.subr.mxu0 0.0
        %1373 = vmatpush2.msra.mxu0 0.0
        %1374 = vmatprep.subr.mxu0 0.0
        %1375 = vmatpush2.msra.mxu0 0.0
        %1376 = vmatprep.subr.mxu0 0.0
        %1377 = vmatpush2.msra.mxu0 0.0
        %1378 = vmatprep.subr.mxu0 0.0
        %1379 = vmatpush2.msra.mxu0 0.0
        %1380 = vmatprep.subr.mxu0 0.0
        %1381 = vmatpush2.msra.mxu0 0.0
        %1382 = vmatprep.subr.mxu0 0.0
        %1383 = vmatpush2.msra.mxu0 0.0
        %1384 = vmatprep.subr.mxu0 0.0
        %1385 = vmatpush2.msra.mxu0 0.0
        %1386 = vmatprep.subr.mxu0 0.0
        %1387 = vmatpush2.msra.mxu0 0.0
        %1388 = vmatprep.subr.mxu0 0.0
        %1389 = vmatpush2.msra.mxu0 0.0
        %1390 = vmatprep.subr.mxu0 0.0
        %1391 = vmatpush2.msra.mxu0 0.0
        %1392 = vmatprep.subr.mxu0 0.0
        %1393 = vmatpush2.msra.mxu0 0.0
        %1394 = vmatprep.mubr.f32.mxu0 0.0
        %1395 = vmatmul.mubr.f32.gmra.mxu0 %v384
        %v1396 = vpop.f32.mrf.mxu0
        %v1397 = vadd.f32 0.0, %v1396
        %v1398 = vpop.f32.mrf.mxu0
        %1399 = vdwg.mxu0
        %v1400 = vadd.f32 %v1086, %v1397
        %v1402 = vcombine.high %v1397, %v1397
        %v1404 = vunpack.c.l.s4 1966171168
        %v1405 = vunpack.c.0.s8 %v1404
        %v1406 = vlaneseq
        %v1407 = vshrl.u32 %v1406, 7
        %v1408 = vsub.s32 %v1405, %v1407
        %v1409 = vrot.slane %v1397, %v1408
        %v1411 = vunpack.c.l.s4 1966171168
        %v1412 = vunpack.c.0.s8 %v1411
        %v1413 = vlaneseq
        %v1414 = vshrl.u32 %v1413, 7
        %v1415 = vsub.s32 %v1412, %v1414
        %v1416 = vrot.slane %v1402, %v1415
        %v1417 = vcombine.high %v1409, %v1409
        %v1418 = vcombine.high %v1416, %v1416
        %v1420 = vunpack.c.l.s4 1966171168
        %v1421 = vunpack.c.0.s8 %v1420
        %v1422 = vlaneseq
        %v1423 = vshrl.u32 %v1422, 7
        %v1424 = vsub.s32 %v1421, %v1423
        %v1425 = vrot.slane %v1409, %v1424
        %v1427 = vunpack.c.l.s4 1966171168
        %v1428 = vunpack.c.0.s8 %v1427
        %v1429 = vlaneseq
        %v1430 = vshrl.u32 %v1429, 7
        %v1431 = vsub.s32 %v1428, %v1430
        %v1432 = vrot.slane %v1416, %v1431
        %v1434 = vunpack.c.l.s4 1966171168
        %v1435 = vunpack.c.0.s8 %v1434
        %v1436 = vlaneseq
        %v1437 = vshrl.u32 %v1436, 7
        %v1438 = vsub.s32 %v1435, %v1437
        %v1439 = vrot.slane %v1417, %v1438
        %v1441 = vunpack.c.l.s4 1966171168
        %v1442 = vunpack.c.0.s8 %v1441
        %v1443 = vlaneseq
        %v1444 = vshrl.u32 %v1443, 7
        %v1445 = vsub.s32 %v1442, %v1444
        %v1446 = vrot.slane %v1418, %v1445
        %v1447 = vcombine.high %v1425, %v1425
        %v1448 = vcombine.high %v1432, %v1432
        %v1449 = vcombine.high %v1439, %v1439
        %v1450 = vcombine.high %v1446, %v1446
        %v1451 = vlaneseq
        %v1452 = vshrl.u32 %v1451, 7
        %v1453 = vsub.s32 0, %v1452
        %v1454 = vrot.slane %v1425, %v1453
        %v1455 = vlaneseq
        %v1456 = vshrl.u32 %v1455, 7
        %v1457 = vsub.s32 0, %v1456
        %v1458 = vrot.slane %v1439, %v1457
        %v1459 = vlaneseq
        %v1460 = vshrl.u32 %v1459, 7
        %v1461 = vsub.s32 0, %v1460
        %v1462 = vrot.slane %v1447, %v1461
        %v1463 = vlaneseq
        %v1464 = vshrl.u32 %v1463, 7
        %v1465 = vsub.s32 0, %v1464
        %v1466 = vrot.slane %v1449, %v1465
        %v1467 = vlaneseq
        %v1468 = vshrl.u32 %v1467, 7
        %v1469 = vsub.s32 0, %v1468
        %v1470 = vrot.slane %v1432, %v1469
        %v1471 = vlaneseq
        %v1472 = vshrl.u32 %v1471, 7
        %v1473 = vsub.s32 0, %v1472
        %v1474 = vrot.slane %v1446, %v1473
        %v1475 = vlaneseq
        %v1476 = vshrl.u32 %v1475, 7
        %v1477 = vsub.s32 0, %v1476
        %v1478 = vrot.slane %v1448, %v1477
        %v1479 = vlaneseq
        %v1480 = vshrl.u32 %v1479, 7
        %v1481 = vsub.s32 0, %v1480
        %v1482 = vrot.slane %v1450, %v1481
        %v1491 = vmul.f32 %v1454, %v1272
        %v1492 = vmul.f32 %v1458, %v1272
        %v1493 = vmul.f32 %v1462, %v1272
        %v1494 = vmul.f32 %v1466, %v1272
        %v1495 = vmul.f32 %v1470, %v1272
        %v1496 = vmul.f32 %v1474, %v1272
        %v1497 = vmul.f32 %v1478, %v1272
        %v1498 = vmul.f32 %v1482, %v1272
        %v1507 = vcombine.low %v1491, %v1492
        %v1508 = vcombine.low %v1493, %v1494
        %v1509 = vcombine.low %v1495, %v1496
        %v1510 = vcombine.low %v1497, %v1498
        %1515 = vmatprep.subr.mxu0 0.0
        %1516 = vmatpush1.msra.mxu0 0.0
        %1517 = vmatprep.subr.mxu0 0.0
        %1518 = vmatpush1.msra.mxu0 0.0
        %1519 = vmatprep.subr.mxu0 0.0
        %1520 = vmatpush1.msra.mxu0 0.0
        %1521 = vmatprep.subr.mxu0 0.0
        %1522 = vmatpush1.msra.mxu0 0.0
        %1523 = vmatprep.subr.mxu0 0.0
        %1524 = vmatpush1.msra.mxu0 0.0
        %1525 = vmatprep.subr.mxu0 0.0
        %1526 = vmatpush1.msra.mxu0 0.0
        %1527 = vmatprep.subr.mxu0 0.0
        %1528 = vmatpush1.msra.mxu0 0.0
        %1529 = vmatprep.subr.mxu0 0.0
        %1530 = vmatpush1.msra.mxu0 0.0
        %1531 = vmatprep.subr.mxu0 0.0
        %1532 = vmatpush1.msra.mxu0 0.0
        %1533 = vmatprep.subr.mxu0 0.0
        %1534 = vmatpush1.msra.mxu0 0.0
        %1535 = vmatprep.subr.mxu0 0.0
        %1536 = vmatpush1.msra.mxu0 0.0
        %1537 = vmatprep.subr.mxu0 0.0
        %1538 = vmatpush1.msra.mxu0 0.0
        %1539 = vmatprep.subr.mxu0 0.0
        %1540 = vmatpush1.msra.mxu0 %v1510
        %1541 = vmatprep.subr.mxu0 0.0
        %1542 = vmatpush1.msra.mxu0 %v1509
        %1543 = vmatprep.subr.mxu0 0.0
        %1544 = vmatpush1.msra.mxu0 %v1508
        %1545 = vmatprep.subr.mxu0 0.0
        %1546 = vmatpush1.msra.mxu0 %v1507
        %1547 = vmatprep.subr.mxu0 0.0
        %1548 = vmatpush2.msra.mxu0 0.0
        %1549 = vmatprep.subr.mxu0 0.0
        %1550 = vmatpush2.msra.mxu0 0.0
        %1551 = vmatprep.subr.mxu0 0.0
        %1552 = vmatpush2.msra.mxu0 0.0
        %1553 = vmatprep.subr.mxu0 0.0
        %1554 = vmatpush2.msra.mxu0 0.0
        %1555 = vmatprep.subr.mxu0 0.0
        %1556 = vmatpush2.msra.mxu0 0.0
        %1557 = vmatprep.subr.mxu0 0.0
        %1558 = vmatpush2.msra.mxu0 0.0
        %1559 = vmatprep.subr.mxu0 0.0
        %1560 = vmatpush2.msra.mxu0 0.0
        %1561 = vmatprep.subr.mxu0 0.0
        %1562 = vmatpush2.msra.mxu0 0.0
        %1563 = vmatprep.subr.mxu0 0.0
        %1564 = vmatpush2.msra.mxu0 0.0
        %1565 = vmatprep.subr.mxu0 0.0
        %1566 = vmatpush2.msra.mxu0 0.0
        %1567 = vmatprep.subr.mxu0 0.0
        %1568 = vmatpush2.msra.mxu0 0.0
        %1569 = vmatprep.subr.mxu0 0.0
        %1570 = vmatpush2.msra.mxu0 0.0
        %1571 = vmatprep.subr.mxu0 0.0
        %1572 = vmatpush2.msra.mxu0 0.0
        %1573 = vmatprep.subr.mxu0 0.0
        %1574 = vmatpush2.msra.mxu0 0.0
        %1575 = vmatprep.subr.mxu0 0.0
        %1576 = vmatpush2.msra.mxu0 0.0
        %1577 = vmatprep.subr.mxu0 0.0
        %1578 = vmatpush2.msra.mxu0 0.0
        %1579 = vmatprep.mubr.f32.mxu0 0.0
        %1580 = vmatmul.mubr.f32.gmra.mxu0 %v800
        %v1581 = vpop.f32.mrf.mxu0
        %v1582 = vadd.f32 0.0, %v1581
        %v1583 = vpop.f32.mrf.mxu0
        %1584 = vdwg.mxu0
        %v1585 = vadd.f32 %v1271, %v1582
        %v1586 = vld [vmem:[%s284 + $0x10] sm:$0xf]
        %v1589 = vunpack.c.l.s4 1966171168
        %v1590 = vunpack.c.0.s8 %v1589
        %v1591 = vlaneseq
        %v1592 = vshrl.u32 %v1591, 7
        %v1593 = vsub.s32 %v1590, %v1592
        %v1594 = vrot.slane %v1586, %v1593
        %v1595 = vcombine.high %v1594, %v1594
        %v1597 = vunpack.c.l.s4 1966171168
        %v1598 = vunpack.c.0.s8 %v1597
        %v1599 = vlaneseq
        %v1600 = vshrl.u32 %v1599, 7
        %v1601 = vsub.s32 %v1598, %v1600
        %v1602 = vrot.slane %v1594, %v1601
        %v1604 = vunpack.c.l.s4 1966171168
        %v1605 = vunpack.c.0.s8 %v1604
        %v1606 = vlaneseq
        %v1607 = vshrl.u32 %v1606, 7
        %v1608 = vsub.s32 %v1605, %v1607
        %v1609 = vrot.slane %v1595, %v1608
        %v1610 = vcombine.high %v1602, %v1602
        %v1611 = vcombine.high %v1609, %v1609
        %v1612 = vlaneseq
        %v1613 = vshrl.u32 %v1612, 7
        %v1614 = vsub.s32 0, %v1613
        %v1615 = vrot.slane %v1602, %v1614
        %v1616 = vlaneseq
        %v1617 = vshrl.u32 %v1616, 7
        %v1618 = vsub.s32 0, %v1617
        %v1619 = vrot.slane %v1609, %v1618
        %v1620 = vlaneseq
        %v1621 = vshrl.u32 %v1620, 7
        %v1622 = vsub.s32 0, %v1621
        %v1623 = vrot.slane %v1610, %v1622
        %v1624 = vlaneseq
        %v1625 = vshrl.u32 %v1624, 7
        %v1626 = vsub.s32 0, %v1625
        %v1627 = vrot.slane %v1611, %v1626
        %v1632 = vmul.f32 %v1615, %v1586
        %v1633 = vmul.f32 %v1619, %v1586
        %v1634 = vmul.f32 %v1623, %v1586
        %v1635 = vmul.f32 %v1627, %v1586
        %v1640 = vcombine.low %v1632, %v1633
        %v1641 = vcombine.low %v1634, %v1635
        %1644 = vmatprep.subr.mxu0 0.0
        %1645 = vmatpush1.msra.mxu0 0.0
        %1646 = vmatprep.subr.mxu0 0.0
        %1647 = vmatpush1.msra.mxu0 0.0
        %1648 = vmatprep.subr.mxu0 0.0
        %1649 = vmatpush1.msra.mxu0 0.0
        %1650 = vmatprep.subr.mxu0 0.0
        %1651 = vmatpush1.msra.mxu0 0.0
        %1652 = vmatprep.subr.mxu0 0.0
        %1653 = vmatpush1.msra.mxu0 0.0
        %1654 = vmatprep.subr.mxu0 0.0
        %1655 = vmatpush1.msra.mxu0 0.0
        %1656 = vmatprep.subr.mxu0 0.0
        %1657 = vmatpush1.msra.mxu0 0.0
        %1658 = vmatprep.subr.mxu0 0.0
        %1659 = vmatpush1.msra.mxu0 0.0
        %1660 = vmatprep.subr.mxu0 0.0
        %1661 = vmatpush1.msra.mxu0 0.0
        %1662 = vmatprep.subr.mxu0 0.0
        %1663 = vmatpush1.msra.mxu0 0.0
        %1664 = vmatprep.subr.mxu0 0.0
        %1665 = vmatpush1.msra.mxu0 0.0
        %1666 = vmatprep.subr.mxu0 0.0
        %1667 = vmatpush1.msra.mxu0 0.0
        %1668 = vmatprep.subr.mxu0 0.0
        %1669 = vmatpush1.msra.mxu0 0.0
        %1670 = vmatprep.subr.mxu0 0.0
        %1671 = vmatpush1.msra.mxu0 0.0
        %1672 = vmatprep.subr.mxu0 0.0
        %1673 = vmatpush1.msra.mxu0 %v1641
        %1674 = vmatprep.subr.mxu0 0.0
        %1675 = vmatpush1.msra.mxu0 %v1640
        %1676 = vmatprep.subr.mxu0 0.0
        %1677 = vmatpush2.msra.mxu0 0.0
        %1678 = vmatprep.subr.mxu0 0.0
        %1679 = vmatpush2.msra.mxu0 0.0
        %1680 = vmatprep.subr.mxu0 0.0
        %1681 = vmatpush2.msra.mxu0 0.0
        %1682 = vmatprep.subr.mxu0 0.0
        %1683 = vmatpush2.msra.mxu0 0.0
        %1684 = vmatprep.subr.mxu0 0.0
        %1685 = vmatpush2.msra.mxu0 0.0
        %1686 = vmatprep.subr.mxu0 0.0
        %1687 = vmatpush2.msra.mxu0 0.0
        %1688 = vmatprep.subr.mxu0 0.0
        %1689 = vmatpush2.msra.mxu0 0.0
        %1690 = vmatprep.subr.mxu0 0.0
        %1691 = vmatpush2.msra.mxu0 0.0
        %1692 = vmatprep.subr.mxu0 0.0
        %1693 = vmatpush2.msra.mxu0 0.0
        %1694 = vmatprep.subr.mxu0 0.0
        %1695 = vmatpush2.msra.mxu0 0.0
        %1696 = vmatprep.subr.mxu0 0.0
        %1697 = vmatpush2.msra.mxu0 0.0
        %1698 = vmatprep.subr.mxu0 0.0
        %1699 = vmatpush2.msra.mxu0 0.0
        %1700 = vmatprep.subr.mxu0 0.0
        %1701 = vmatpush2.msra.mxu0 0.0
        %1702 = vmatprep.subr.mxu0 0.0
        %1703 = vmatpush2.msra.mxu0 0.0
        %1704 = vmatprep.subr.mxu0 0.0
        %1705 = vmatpush2.msra.mxu0 0.0
        %1706 = vmatprep.subr.mxu0 0.0
        %1707 = vmatpush2.msra.mxu0 0.0
        %1708 = vmatprep.mubr.f32.mxu0 0.0
        %1709 = vmatmul.mubr.f32.gmra.mxu0 %v384
        %v1710 = vpop.f32.mrf.mxu0
        %v1711 = vadd.f32 0.0, %v1710
        %v1712 = vpop.f32.mrf.mxu0
        %1713 = vdwg.mxu0
        %v1714 = vadd.f32 %v1400, %v1711
        %v1716 = vcombine.high %v1711, %v1711
        %v1718 = vunpack.c.l.s4 1966171168
        %v1719 = vunpack.c.0.s8 %v1718
        %v1720 = vlaneseq
        %v1721 = vshrl.u32 %v1720, 7
        %v1722 = vsub.s32 %v1719, %v1721
        %v1723 = vrot.slane %v1711, %v1722
        %v1725 = vunpack.c.l.s4 1966171168
        %v1726 = vunpack.c.0.s8 %v1725
        %v1727 = vlaneseq
        %v1728 = vshrl.u32 %v1727, 7
        %v1729 = vsub.s32 %v1726, %v1728
        %v1730 = vrot.slane %v1716, %v1729
        %v1731 = vcombine.high %v1723, %v1723
        %v1732 = vcombine.high %v1730, %v1730
        %v1734 = vunpack.c.l.s4 1966171168
        %v1735 = vunpack.c.0.s8 %v1734
        %v1736 = vlaneseq
        %v1737 = vshrl.u32 %v1736, 7
        %v1738 = vsub.s32 %v1735, %v1737
        %v1739 = vrot.slane %v1723, %v1738
        %v1741 = vunpack.c.l.s4 1966171168
        %v1742 = vunpack.c.0.s8 %v1741
        %v1743 = vlaneseq
        %v1744 = vshrl.u32 %v1743, 7
        %v1745 = vsub.s32 %v1742, %v1744
        %v1746 = vrot.slane %v1730, %v1745
        %v1748 = vunpack.c.l.s4 1966171168
        %v1749 = vunpack.c.0.s8 %v1748
        %v1750 = vlaneseq
        %v1751 = vshrl.u32 %v1750, 7
        %v1752 = vsub.s32 %v1749, %v1751
        %v1753 = vrot.slane %v1731, %v1752
        %v1755 = vunpack.c.l.s4 1966171168
        %v1756 = vunpack.c.0.s8 %v1755
        %v1757 = vlaneseq
        %v1758 = vshrl.u32 %v1757, 7
        %v1759 = vsub.s32 %v1756, %v1758
        %v1760 = vrot.slane %v1732, %v1759
        %v1761 = vcombine.high %v1739, %v1739
        %v1762 = vcombine.high %v1746, %v1746
        %v1763 = vcombine.high %v1753, %v1753
        %v1764 = vcombine.high %v1760, %v1760
        %v1765 = vlaneseq
        %v1766 = vshrl.u32 %v1765, 7
        %v1767 = vsub.s32 0, %v1766
        %v1768 = vrot.slane %v1739, %v1767
        %v1769 = vlaneseq
        %v1770 = vshrl.u32 %v1769, 7
        %v1771 = vsub.s32 0, %v1770
        %v1772 = vrot.slane %v1753, %v1771
        %v1773 = vlaneseq
        %v1774 = vshrl.u32 %v1773, 7
        %v1775 = vsub.s32 0, %v1774
        %v1776 = vrot.slane %v1761, %v1775
        %v1777 = vlaneseq
        %v1778 = vshrl.u32 %v1777, 7
        %v1779 = vsub.s32 0, %v1778
        %v1780 = vrot.slane %v1763, %v1779
        %v1781 = vlaneseq
        %v1782 = vshrl.u32 %v1781, 7
        %v1783 = vsub.s32 0, %v1782
        %v1784 = vrot.slane %v1746, %v1783
        %v1785 = vlaneseq
        %v1786 = vshrl.u32 %v1785, 7
        %v1787 = vsub.s32 0, %v1786
        %v1788 = vrot.slane %v1760, %v1787
        %v1789 = vlaneseq
        %v1790 = vshrl.u32 %v1789, 7
        %v1791 = vsub.s32 0, %v1790
        %v1792 = vrot.slane %v1762, %v1791
        %v1793 = vlaneseq
        %v1794 = vshrl.u32 %v1793, 7
        %v1795 = vsub.s32 0, %v1794
        %v1796 = vrot.slane %v1764, %v1795
        %v1805 = vmul.f32 %v1768, %v1586
        %v1806 = vmul.f32 %v1772, %v1586
        %v1807 = vmul.f32 %v1776, %v1586
        %v1808 = vmul.f32 %v1780, %v1586
        %v1809 = vmul.f32 %v1784, %v1586
        %v1810 = vmul.f32 %v1788, %v1586
        %v1811 = vmul.f32 %v1792, %v1586
        %v1812 = vmul.f32 %v1796, %v1586
        %v1821 = vcombine.low %v1805, %v1806
        %v1822 = vcombine.low %v1807, %v1808
        %v1823 = vcombine.low %v1809, %v1810
        %v1824 = vcombine.low %v1811, %v1812
        %1829 = vmatprep.subr.mxu0 0.0
        %1830 = vmatpush1.msra.mxu0 0.0
        %1831 = vmatprep.subr.mxu0 0.0
        %1832 = vmatpush1.msra.mxu0 0.0
        %1833 = vmatprep.subr.mxu0 0.0
        %1834 = vmatpush1.msra.mxu0 0.0
        %1835 = vmatprep.subr.mxu0 0.0
        %1836 = vmatpush1.msra.mxu0 0.0
        %1837 = vmatprep.subr.mxu0 0.0
        %1838 = vmatpush1.msra.mxu0 0.0
        %1839 = vmatprep.subr.mxu0 0.0
        %1840 = vmatpush1.msra.mxu0 0.0
        %1841 = vmatprep.subr.mxu0 0.0
        %1842 = vmatpush1.msra.mxu0 0.0
        %1843 = vmatprep.subr.mxu0 0.0
        %1844 = vmatpush1.msra.mxu0 0.0
        %1845 = vmatprep.subr.mxu0 0.0
        %1846 = vmatpush1.msra.mxu0 0.0
        %1847 = vmatprep.subr.mxu0 0.0
        %1848 = vmatpush1.msra.mxu0 0.0
        %1849 = vmatprep.subr.mxu0 0.0
        %1850 = vmatpush1.msra.mxu0 0.0
        %1851 = vmatprep.subr.mxu0 0.0
        %1852 = vmatpush1.msra.mxu0 0.0
        %1853 = vmatprep.subr.mxu0 0.0
        %1854 = vmatpush1.msra.mxu0 %v1824
        %1855 = vmatprep.subr.mxu0 0.0
        %1856 = vmatpush1.msra.mxu0 %v1823
        %1857 = vmatprep.subr.mxu0 0.0
        %1858 = vmatpush1.msra.mxu0 %v1822
        %1859 = vmatprep.subr.mxu0 0.0
        %1860 = vmatpush1.msra.mxu0 %v1821
        %1861 = vmatprep.subr.mxu0 0.0
        %1862 = vmatpush2.msra.mxu0 0.0
        %1863 = vmatprep.subr.mxu0 0.0
        %1864 = vmatpush2.msra.mxu0 0.0
        %1865 = vmatprep.subr.mxu0 0.0
        %1866 = vmatpush2.msra.mxu0 0.0
        %1867 = vmatprep.subr.mxu0 0.0
        %1868 = vmatpush2.msra.mxu0 0.0
        %1869 = vmatprep.subr.mxu0 0.0
        %1870 = vmatpush2.msra.mxu0 0.0
        %1871 = vmatprep.subr.mxu0 0.0
        %1872 = vmatpush2.msra.mxu0 0.0
        %1873 = vmatprep.subr.mxu0 0.0
        %1874 = vmatpush2.msra.mxu0 0.0
        %1875 = vmatprep.subr.mxu0 0.0
        %1876 = vmatpush2.msra.mxu0 0.0
        %1877 = vmatprep.subr.mxu0 0.0
        %1878 = vmatpush2.msra.mxu0 0.0
        %1879 = vmatprep.subr.mxu0 0.0
        %1880 = vmatpush2.msra.mxu0 0.0
        %1881 = vmatprep.subr.mxu0 0.0
        %1882 = vmatpush2.msra.mxu0 0.0
        %1883 = vmatprep.subr.mxu0 0.0
        %1884 = vmatpush2.msra.mxu0 0.0
        %1885 = vmatprep.subr.mxu0 0.0
        %1886 = vmatpush2.msra.mxu0 0.0
        %1887 = vmatprep.subr.mxu0 0.0
        %1888 = vmatpush2.msra.mxu0 0.0
        %1889 = vmatprep.subr.mxu0 0.0
        %1890 = vmatpush2.msra.mxu0 0.0
        %1891 = vmatprep.subr.mxu0 0.0
        %1892 = vmatpush2.msra.mxu0 0.0
        %1893 = vmatprep.mubr.f32.mxu0 0.0
        %1894 = vmatmul.mubr.f32.gmra.mxu0 %v800
        %v1895 = vpop.f32.mrf.mxu0
        %v1896 = vadd.f32 0.0, %v1895
        %v1897 = vpop.f32.mrf.mxu0
        %1898 = vdwg.mxu0
        %v1899 = vadd.f32 %v1585, %v1896
        %v1900 = vld [vmem:[%s284 + $0x14] sm:$0xf]
        %v1903 = vunpack.c.l.s4 1966171168
        %v1904 = vunpack.c.0.s8 %v1903
        %v1905 = vlaneseq
        %v1906 = vshrl.u32 %v1905, 7
        %v1907 = vsub.s32 %v1904, %v1906
        %v1908 = vrot.slane %v1900, %v1907
        %v1909 = vcombine.high %v1908, %v1908
        %v1911 = vunpack.c.l.s4 1966171168
        %v1912 = vunpack.c.0.s8 %v1911
        %v1913 = vlaneseq
        %v1914 = vshrl.u32 %v1913, 7
        %v1915 = vsub.s32 %v1912, %v1914
        %v1916 = vrot.slane %v1908, %v1915
        %v1918 = vunpack.c.l.s4 1966171168
        %v1919 = vunpack.c.0.s8 %v1918
        %v1920 = vlaneseq
        %v1921 = vshrl.u32 %v1920, 7
        %v1922 = vsub.s32 %v1919, %v1921
        %v1923 = vrot.slane %v1909, %v1922
        %v1924 = vcombine.high %v1916, %v1916
        %v1925 = vcombine.high %v1923, %v1923
        %v1926 = vlaneseq
        %v1927 = vshrl.u32 %v1926, 7
        %v1928 = vsub.s32 0, %v1927
        %v1929 = vrot.slane %v1916, %v1928
        %v1930 = vlaneseq
        %v1931 = vshrl.u32 %v1930, 7
        %v1932 = vsub.s32 0, %v1931
        %v1933 = vrot.slane %v1923, %v1932
        %v1934 = vlaneseq
        %v1935 = vshrl.u32 %v1934, 7
        %v1936 = vsub.s32 0, %v1935
        %v1937 = vrot.slane %v1924, %v1936
        %v1938 = vlaneseq
        %v1939 = vshrl.u32 %v1938, 7
        %v1940 = vsub.s32 0, %v1939
        %v1941 = vrot.slane %v1925, %v1940
        %v1946 = vmul.f32 %v1929, %v1900
        %v1947 = vmul.f32 %v1933, %v1900
        %v1948 = vmul.f32 %v1937, %v1900
        %v1949 = vmul.f32 %v1941, %v1900
        %v1954 = vcombine.low %v1946, %v1947
        %v1955 = vcombine.low %v1948, %v1949
        %1958 = vmatprep.subr.mxu0 0.0
        %1959 = vmatpush1.msra.mxu0 0.0
        %1960 = vmatprep.subr.mxu0 0.0
        %1961 = vmatpush1.msra.mxu0 0.0
        %1962 = vmatprep.subr.mxu0 0.0
        %1963 = vmatpush1.msra.mxu0 0.0
        %1964 = vmatprep.subr.mxu0 0.0
        %1965 = vmatpush1.msra.mxu0 0.0
        %1966 = vmatprep.subr.mxu0 0.0
        %1967 = vmatpush1.msra.mxu0 0.0
        %1968 = vmatprep.subr.mxu0 0.0
        %1969 = vmatpush1.msra.mxu0 0.0
        %1970 = vmatprep.subr.mxu0 0.0
        %1971 = vmatpush1.msra.mxu0 0.0
        %1972 = vmatprep.subr.mxu0 0.0
        %1973 = vmatpush1.msra.mxu0 0.0
        %1974 = vmatprep.subr.mxu0 0.0
        %1975 = vmatpush1.msra.mxu0 0.0
        %1976 = vmatprep.subr.mxu0 0.0
        %1977 = vmatpush1.msra.mxu0 0.0
        %1978 = vmatprep.subr.mxu0 0.0
        %1979 = vmatpush1.msra.mxu0 0.0
        %1980 = vmatprep.subr.mxu0 0.0
        %1981 = vmatpush1.msra.mxu0 0.0
        %1982 = vmatprep.subr.mxu0 0.0
        %1983 = vmatpush1.msra.mxu0 0.0
        %1984 = vmatprep.subr.mxu0 0.0
        %1985 = vmatpush1.msra.mxu0 0.0
        %1986 = vmatprep.subr.mxu0 0.0
        %1987 = vmatpush1.msra.mxu0 %v1955
        %1988 = vmatprep.subr.mxu0 0.0
        %1989 = vmatpush1.msra.mxu0 %v1954
        %1990 = vmatprep.subr.mxu0 0.0
        %1991 = vmatpush2.msra.mxu0 0.0
        %1992 = vmatprep.subr.mxu0 0.0
        %1993 = vmatpush2.msra.mxu0 0.0
        %1994 = vmatprep.subr.mxu0 0.0
        %1995 = vmatpush2.msra.mxu0 0.0
        %1996 = vmatprep.subr.mxu0 0.0
        %1997 = vmatpush2.msra.mxu0 0.0
        %1998 = vmatprep.subr.mxu0 0.0
        %1999 = vmatpush2.msra.mxu0 0.0
        %2000 = vmatprep.subr.mxu0 0.0
        %2001 = vmatpush2.msra.mxu0 0.0
        %2002 = vmatprep.subr.mxu0 0.0
        %2003 = vmatpush2.msra.mxu0 0.0
        %2004 = vmatprep.subr.mxu0 0.0
        %2005 = vmatpush2.msra.mxu0 0.0
        %2006 = vmatprep.subr.mxu0 0.0
        %2007 = vmatpush2.msra.mxu0 0.0
        %2008 = vmatprep.subr.mxu0 0.0
        %2009 = vmatpush2.msra.mxu0 0.0
        %2010 = vmatprep.subr.mxu0 0.0
        %2011 = vmatpush2.msra.mxu0 0.0
        %2012 = vmatprep.subr.mxu0 0.0
        %2013 = vmatpush2.msra.mxu0 0.0
        %2014 = vmatprep.subr.mxu0 0.0
        %2015 = vmatpush2.msra.mxu0 0.0
        %2016 = vmatprep.subr.mxu0 0.0
        %2017 = vmatpush2.msra.mxu0 0.0
        %2018 = vmatprep.subr.mxu0 0.0
        %2019 = vmatpush2.msra.mxu0 0.0
        %2020 = vmatprep.subr.mxu0 0.0
        %2021 = vmatpush2.msra.mxu0 0.0
        %2022 = vmatprep.mubr.f32.mxu0 0.0
        %2023 = vmatmul.mubr.f32.gmra.mxu0 %v384
        %v2024 = vpop.f32.mrf.mxu0
        %v2025 = vadd.f32 0.0, %v2024
        %v2026 = vpop.f32.mrf.mxu0
        %2027 = vdwg.mxu0
        %v2028 = vadd.f32 %v1714, %v2025
        %v2030 = vcombine.high %v2025, %v2025
        %v2032 = vunpack.c.l.s4 1966171168
        %v2033 = vunpack.c.0.s8 %v2032
        %v2034 = vlaneseq
        %v2035 = vshrl.u32 %v2034, 7
        %v2036 = vsub.s32 %v2033, %v2035
        %v2037 = vrot.slane %v2025, %v2036
        %v2039 = vunpack.c.l.s4 1966171168
        %v2040 = vunpack.c.0.s8 %v2039
        %v2041 = vlaneseq
        %v2042 = vshrl.u32 %v2041, 7
        %v2043 = vsub.s32 %v2040, %v2042
        %v2044 = vrot.slane %v2030, %v2043
        %v2045 = vcombine.high %v2037, %v2037
        %v2046 = vcombine.high %v2044, %v2044
        %v2048 = vunpack.c.l.s4 1966171168
        %v2049 = vunpack.c.0.s8 %v2048
        %v2050 = vlaneseq
        %v2051 = vshrl.u32 %v2050, 7
        %v2052 = vsub.s32 %v2049, %v2051
        %v2053 = vrot.slane %v2037, %v2052
        %v2055 = vunpack.c.l.s4 1966171168
        %v2056 = vunpack.c.0.s8 %v2055
        %v2057 = vlaneseq
        %v2058 = vshrl.u32 %v2057, 7
        %v2059 = vsub.s32 %v2056, %v2058
        %v2060 = vrot.slane %v2044, %v2059
        %v2062 = vunpack.c.l.s4 1966171168
        %v2063 = vunpack.c.0.s8 %v2062
        %v2064 = vlaneseq
        %v2065 = vshrl.u32 %v2064, 7
        %v2066 = vsub.s32 %v2063, %v2065
        %v2067 = vrot.slane %v2045, %v2066
        %v2069 = vunpack.c.l.s4 1966171168
        %v2070 = vunpack.c.0.s8 %v2069
        %v2071 = vlaneseq
        %v2072 = vshrl.u32 %v2071, 7
        %v2073 = vsub.s32 %v2070, %v2072
        %v2074 = vrot.slane %v2046, %v2073
        %v2075 = vcombine.high %v2053, %v2053
        %v2076 = vcombine.high %v2060, %v2060
        %v2077 = vcombine.high %v2067, %v2067
        %v2078 = vcombine.high %v2074, %v2074
        %v2079 = vlaneseq
        %v2080 = vshrl.u32 %v2079, 7
        %v2081 = vsub.s32 0, %v2080
        %v2082 = vrot.slane %v2053, %v2081
        %v2083 = vlaneseq
        %v2084 = vshrl.u32 %v2083, 7
        %v2085 = vsub.s32 0, %v2084
        %v2086 = vrot.slane %v2067, %v2085
        %v2087 = vlaneseq
        %v2088 = vshrl.u32 %v2087, 7
        %v2089 = vsub.s32 0, %v2088
        %v2090 = vrot.slane %v2075, %v2089
        %v2091 = vlaneseq
        %v2092 = vshrl.u32 %v2091, 7
        %v2093 = vsub.s32 0, %v2092
        %v2094 = vrot.slane %v2077, %v2093
        %v2095 = vlaneseq
        %v2096 = vshrl.u32 %v2095, 7
        %v2097 = vsub.s32 0, %v2096
        %v2098 = vrot.slane %v2060, %v2097
        %v2099 = vlaneseq
        %v2100 = vshrl.u32 %v2099, 7
        %v2101 = vsub.s32 0, %v2100
        %v2102 = vrot.slane %v2074, %v2101
        %v2103 = vlaneseq
        %v2104 = vshrl.u32 %v2103, 7
        %v2105 = vsub.s32 0, %v2104
        %v2106 = vrot.slane %v2076, %v2105
        %v2107 = vlaneseq
        %v2108 = vshrl.u32 %v2107, 7
        %v2109 = vsub.s32 0, %v2108
        %v2110 = vrot.slane %v2078, %v2109
        %v2119 = vmul.f32 %v2082, %v1900
        %v2120 = vmul.f32 %v2086, %v1900
        %v2121 = vmul.f32 %v2090, %v1900
        %v2122 = vmul.f32 %v2094, %v1900
        %v2123 = vmul.f32 %v2098, %v1900
        %v2124 = vmul.f32 %v2102, %v1900
        %v2125 = vmul.f32 %v2106, %v1900
        %v2126 = vmul.f32 %v2110, %v1900
        %v2135 = vcombine.low %v2119, %v2120
        %v2136 = vcombine.low %v2121, %v2122
        %v2137 = vcombine.low %v2123, %v2124
        %v2138 = vcombine.low %v2125, %v2126
        %2143 = vmatprep.subr.mxu0 0.0
        %2144 = vmatpush1.msra.mxu0 0.0
        %2145 = vmatprep.subr.mxu0 0.0
        %2146 = vmatpush1.msra.mxu0 0.0
        %2147 = vmatprep.subr.mxu0 0.0
        %2148 = vmatpush1.msra.mxu0 0.0
        %2149 = vmatprep.subr.mxu0 0.0
        %2150 = vmatpush1.msra.mxu0 0.0
        %2151 = vmatprep.subr.mxu0 0.0
        %2152 = vmatpush1.msra.mxu0 0.0
        %2153 = vmatprep.subr.mxu0 0.0
        %2154 = vmatpush1.msra.mxu0 0.0
        %2155 = vmatprep.subr.mxu0 0.0
        %2156 = vmatpush1.msra.mxu0 0.0
        %2157 = vmatprep.subr.mxu0 0.0
        %2158 = vmatpush1.msra.mxu0 0.0
        %2159 = vmatprep.subr.mxu0 0.0
        %2160 = vmatpush1.msra.mxu0 0.0
        %2161 = vmatprep.subr.mxu0 0.0
        %2162 = vmatpush1.msra.mxu0 0.0
        %2163 = vmatprep.subr.mxu0 0.0
        %2164 = vmatpush1.msra.mxu0 0.0
        %2165 = vmatprep.subr.mxu0 0.0
        %2166 = vmatpush1.msra.mxu0 0.0
        %2167 = vmatprep.subr.mxu0 0.0
        %2168 = vmatpush1.msra.mxu0 %v2138
        %2169 = vmatprep.subr.mxu0 0.0
        %2170 = vmatpush1.msra.mxu0 %v2137
        %2171 = vmatprep.subr.mxu0 0.0
        %2172 = vmatpush1.msra.mxu0 %v2136
        %2173 = vmatprep.subr.mxu0 0.0
        %2174 = vmatpush1.msra.mxu0 %v2135
        %2175 = vmatprep.subr.mxu0 0.0
        %2176 = vmatpush2.msra.mxu0 0.0
        %2177 = vmatprep.subr.mxu0 0.0
        %2178 = vmatpush2.msra.mxu0 0.0
        %2179 = vmatprep.subr.mxu0 0.0
        %2180 = vmatpush2.msra.mxu0 0.0
        %2181 = vmatprep.subr.mxu0 0.0
        %2182 = vmatpush2.msra.mxu0 0.0
        %2183 = vmatprep.subr.mxu0 0.0
        %2184 = vmatpush2.msra.mxu0 0.0
        %2185 = vmatprep.subr.mxu0 0.0
        %2186 = vmatpush2.msra.mxu0 0.0
        %2187 = vmatprep.subr.mxu0 0.0
        %2188 = vmatpush2.msra.mxu0 0.0
        %2189 = vmatprep.subr.mxu0 0.0
        %2190 = vmatpush2.msra.mxu0 0.0
        %2191 = vmatprep.subr.mxu0 0.0
        %2192 = vmatpush2.msra.mxu0 0.0
        %2193 = vmatprep.subr.mxu0 0.0
        %2194 = vmatpush2.msra.mxu0 0.0
        %2195 = vmatprep.subr.mxu0 0.0
        %2196 = vmatpush2.msra.mxu0 0.0
        %2197 = vmatprep.subr.mxu0 0.0
        %2198 = vmatpush2.msra.mxu0 0.0
        %2199 = vmatprep.subr.mxu0 0.0
        %2200 = vmatpush2.msra.mxu0 0.0
        %2201 = vmatprep.subr.mxu0 0.0
        %2202 = vmatpush2.msra.mxu0 0.0
        %2203 = vmatprep.subr.mxu0 0.0
        %2204 = vmatpush2.msra.mxu0 0.0
        %2205 = vmatprep.subr.mxu0 0.0
        %2206 = vmatpush2.msra.mxu0 0.0
        %2207 = vmatprep.mubr.f32.mxu0 0.0
        %2208 = vmatmul.mubr.f32.gmra.mxu0 %v800
        %v2209 = vpop.f32.mrf.mxu0
        %v2210 = vadd.f32 0.0, %v2209
        %v2211 = vpop.f32.mrf.mxu0
        %2212 = vdwg.mxu0
        %v2213 = vadd.f32 %v1899, %v2210
        %v2214 = vld [vmem:[%s284 + $0x18] sm:$0xf]
        %v2217 = vunpack.c.l.s4 1966171168
        %v2218 = vunpack.c.0.s8 %v2217
        %v2219 = vlaneseq
        %v2220 = vshrl.u32 %v2219, 7
        %v2221 = vsub.s32 %v2218, %v2220
        %v2222 = vrot.slane %v2214, %v2221
        %v2223 = vcombine.high %v2222, %v2222
        %v2225 = vunpack.c.l.s4 1966171168
        %v2226 = vunpack.c.0.s8 %v2225
        %v2227 = vlaneseq
        %v2228 = vshrl.u32 %v2227, 7
        %v2229 = vsub.s32 %v2226, %v2228
        %v2230 = vrot.slane %v2222, %v2229
        %v2232 = vunpack.c.l.s4 1966171168
        %v2233 = vunpack.c.0.s8 %v2232
        %v2234 = vlaneseq
        %v2235 = vshrl.u32 %v2234, 7
        %v2236 = vsub.s32 %v2233, %v2235
        %v2237 = vrot.slane %v2223, %v2236
        %v2238 = vcombine.high %v2230, %v2230
        %v2239 = vcombine.high %v2237, %v2237
        %v2240 = vlaneseq
        %v2241 = vshrl.u32 %v2240, 7
        %v2242 = vsub.s32 0, %v2241
        %v2243 = vrot.slane %v2230, %v2242
        %v2244 = vlaneseq
        %v2245 = vshrl.u32 %v2244, 7
        %v2246 = vsub.s32 0, %v2245
        %v2247 = vrot.slane %v2237, %v2246
        %v2248 = vlaneseq
        %v2249 = vshrl.u32 %v2248, 7
        %v2250 = vsub.s32 0, %v2249
        %v2251 = vrot.slane %v2238, %v2250
        %v2252 = vlaneseq
        %v2253 = vshrl.u32 %v2252, 7
        %v2254 = vsub.s32 0, %v2253
        %v2255 = vrot.slane %v2239, %v2254
        %v2260 = vmul.f32 %v2243, %v2214
        %v2261 = vmul.f32 %v2247, %v2214
        %v2262 = vmul.f32 %v2251, %v2214
        %v2263 = vmul.f32 %v2255, %v2214
        %v2268 = vcombine.low %v2260, %v2261
        %v2269 = vcombine.low %v2262, %v2263
        %2272 = vmatprep.subr.mxu0 0.0
        %2273 = vmatpush1.msra.mxu0 0.0
        %2274 = vmatprep.subr.mxu0 0.0
        %2275 = vmatpush1.msra.mxu0 0.0
        %2276 = vmatprep.subr.mxu0 0.0
        %2277 = vmatpush1.msra.mxu0 0.0
        %2278 = vmatprep.subr.mxu0 0.0
        %2279 = vmatpush1.msra.mxu0 0.0
        %2280 = vmatprep.subr.mxu0 0.0
        %2281 = vmatpush1.msra.mxu0 0.0
        %2282 = vmatprep.subr.mxu0 0.0
        %2283 = vmatpush1.msra.mxu0 0.0
        %2284 = vmatprep.subr.mxu0 0.0
        %2285 = vmatpush1.msra.mxu0 0.0
        %2286 = vmatprep.subr.mxu0 0.0
        %2287 = vmatpush1.msra.mxu0 0.0
        %2288 = vmatprep.subr.mxu0 0.0
        %2289 = vmatpush1.msra.mxu0 0.0
        %2290 = vmatprep.subr.mxu0 0.0
        %2291 = vmatpush1.msra.mxu0 0.0
        %2292 = vmatprep.subr.mxu0 0.0
        %2293 = vmatpush1.msra.mxu0 0.0
        %2294 = vmatprep.subr.mxu0 0.0
        %2295 = vmatpush1.msra.mxu0 0.0
        %2296 = vmatprep.subr.mxu0 0.0
        %2297 = vmatpush1.msra.mxu0 0.0
        %2298 = vmatprep.subr.mxu0 0.0
        %2299 = vmatpush1.msra.mxu0 0.0
        %2300 = vmatprep.subr.mxu0 0.0
        %2301 = vmatpush1.msra.mxu0 %v2269
        %2302 = vmatprep.subr.mxu0 0.0
        %2303 = vmatpush1.msra.mxu0 %v2268
        %2304 = vmatprep.subr.mxu0 0.0
        %2305 = vmatpush2.msra.mxu0 0.0
        %2306 = vmatprep.subr.mxu0 0.0
        %2307 = vmatpush2.msra.mxu0 0.0
        %2308 = vmatprep.subr.mxu0 0.0
        %2309 = vmatpush2.msra.mxu0 0.0
        %2310 = vmatprep.subr.mxu0 0.0
        %2311 = vmatpush2.msra.mxu0 0.0
        %2312 = vmatprep.subr.mxu0 0.0
        %2313 = vmatpush2.msra.mxu0 0.0
        %2314 = vmatprep.subr.mxu0 0.0
        %2315 = vmatpush2.msra.mxu0 0.0
        %2316 = vmatprep.subr.mxu0 0.0
        %2317 = vmatpush2.msra.mxu0 0.0
        %2318 = vmatprep.subr.mxu0 0.0
        %2319 = vmatpush2.msra.mxu0 0.0
        %2320 = vmatprep.subr.mxu0 0.0
        %2321 = vmatpush2.msra.mxu0 0.0
        %2322 = vmatprep.subr.mxu0 0.0
        %2323 = vmatpush2.msra.mxu0 0.0
        %2324 = vmatprep.subr.mxu0 0.0
        %2325 = vmatpush2.msra.mxu0 0.0
        %2326 = vmatprep.subr.mxu0 0.0
        %2327 = vmatpush2.msra.mxu0 0.0
        %2328 = vmatprep.subr.mxu0 0.0
        %2329 = vmatpush2.msra.mxu0 0.0
        %2330 = vmatprep.subr.mxu0 0.0
        %2331 = vmatpush2.msra.mxu0 0.0
        %2332 = vmatprep.subr.mxu0 0.0
        %2333 = vmatpush2.msra.mxu0 0.0
        %2334 = vmatprep.subr.mxu0 0.0
        %2335 = vmatpush2.msra.mxu0 0.0
        %2336 = vmatprep.mubr.f32.mxu0 0.0
        %2337 = vmatmul.mubr.f32.gmra.mxu0 %v384
        %v2338 = vpop.f32.mrf.mxu0
        %v2339 = vadd.f32 0.0, %v2338
        %v2340 = vpop.f32.mrf.mxu0
        %2341 = vdwg.mxu0
        %v2342 = vadd.f32 %v2028, %v2339
        %v2344 = vcombine.high %v2339, %v2339
        %v2346 = vunpack.c.l.s4 1966171168
        %v2347 = vunpack.c.0.s8 %v2346
        %v2348 = vlaneseq
        %v2349 = vshrl.u32 %v2348, 7
        %v2350 = vsub.s32 %v2347, %v2349
        %v2351 = vrot.slane %v2339, %v2350
        %v2353 = vunpack.c.l.s4 1966171168
        %v2354 = vunpack.c.0.s8 %v2353
        %v2355 = vlaneseq
        %v2356 = vshrl.u32 %v2355, 7
        %v2357 = vsub.s32 %v2354, %v2356
        %v2358 = vrot.slane %v2344, %v2357
        %v2359 = vcombine.high %v2351, %v2351
        %v2360 = vcombine.high %v2358, %v2358
        %v2362 = vunpack.c.l.s4 1966171168
        %v2363 = vunpack.c.0.s8 %v2362
        %v2364 = vlaneseq
        %v2365 = vshrl.u32 %v2364, 7
        %v2366 = vsub.s32 %v2363, %v2365
        %v2367 = vrot.slane %v2351, %v2366
        %v2369 = vunpack.c.l.s4 1966171168
        %v2370 = vunpack.c.0.s8 %v2369
        %v2371 = vlaneseq
        %v2372 = vshrl.u32 %v2371, 7
        %v2373 = vsub.s32 %v2370, %v2372
        %v2374 = vrot.slane %v2358, %v2373
        %v2376 = vunpack.c.l.s4 1966171168
        %v2377 = vunpack.c.0.s8 %v2376
        %v2378 = vlaneseq
        %v2379 = vshrl.u32 %v2378, 7
        %v2380 = vsub.s32 %v2377, %v2379
        %v2381 = vrot.slane %v2359, %v2380
        %v2383 = vunpack.c.l.s4 1966171168
        %v2384 = vunpack.c.0.s8 %v2383
        %v2385 = vlaneseq
        %v2386 = vshrl.u32 %v2385, 7
        %v2387 = vsub.s32 %v2384, %v2386
        %v2388 = vrot.slane %v2360, %v2387
        %v2389 = vcombine.high %v2367, %v2367
        %v2390 = vcombine.high %v2374, %v2374
        %v2391 = vcombine.high %v2381, %v2381
        %v2392 = vcombine.high %v2388, %v2388
        %v2393 = vlaneseq
        %v2394 = vshrl.u32 %v2393, 7
        %v2395 = vsub.s32 0, %v2394
        %v2396 = vrot.slane %v2367, %v2395
        %v2397 = vlaneseq
        %v2398 = vshrl.u32 %v2397, 7
        %v2399 = vsub.s32 0, %v2398
        %v2400 = vrot.slane %v2381, %v2399
        %v2401 = vlaneseq
        %v2402 = vshrl.u32 %v2401, 7
        %v2403 = vsub.s32 0, %v2402
        %v2404 = vrot.slane %v2389, %v2403
        %v2405 = vlaneseq
        %v2406 = vshrl.u32 %v2405, 7
        %v2407 = vsub.s32 0, %v2406
        %v2408 = vrot.slane %v2391, %v2407
        %v2409 = vlaneseq
        %v2410 = vshrl.u32 %v2409, 7
        %v2411 = vsub.s32 0, %v2410
        %v2412 = vrot.slane %v2374, %v2411
        %v2413 = vlaneseq
        %v2414 = vshrl.u32 %v2413, 7
        %v2415 = vsub.s32 0, %v2414
        %v2416 = vrot.slane %v2388, %v2415
        %v2417 = vlaneseq
        %v2418 = vshrl.u32 %v2417, 7
        %v2419 = vsub.s32 0, %v2418
        %v2420 = vrot.slane %v2390, %v2419
        %v2421 = vlaneseq
        %v2422 = vshrl.u32 %v2421, 7
        %v2423 = vsub.s32 0, %v2422
        %v2424 = vrot.slane %v2392, %v2423
        %v2433 = vmul.f32 %v2396, %v2214
        %v2434 = vmul.f32 %v2400, %v2214
        %v2435 = vmul.f32 %v2404, %v2214
        %v2436 = vmul.f32 %v2408, %v2214
        %v2437 = vmul.f32 %v2412, %v2214
        %v2438 = vmul.f32 %v2416, %v2214
        %v2439 = vmul.f32 %v2420, %v2214
        %v2440 = vmul.f32 %v2424, %v2214
        %v2449 = vcombine.low %v2433, %v2434
        %v2450 = vcombine.low %v2435, %v2436
        %v2451 = vcombine.low %v2437, %v2438
        %v2452 = vcombine.low %v2439, %v2440
        %2457 = vmatprep.subr.mxu0 0.0
        %2458 = vmatpush1.msra.mxu0 0.0
        %2459 = vmatprep.subr.mxu0 0.0
        %2460 = vmatpush1.msra.mxu0 0.0
        %2461 = vmatprep.subr.mxu0 0.0
        %2462 = vmatpush1.msra.mxu0 0.0
        %2463 = vmatprep.subr.mxu0 0.0
        %2464 = vmatpush1.msra.mxu0 0.0
        %2465 = vmatprep.subr.mxu0 0.0
        %2466 = vmatpush1.msra.mxu0 0.0
        %2467 = vmatprep.subr.mxu0 0.0
        %2468 = vmatpush1.msra.mxu0 0.0
        %2469 = vmatprep.subr.mxu0 0.0
        %2470 = vmatpush1.msra.mxu0 0.0
        %2471 = vmatprep.subr.mxu0 0.0
        %2472 = vmatpush1.msra.mxu0 0.0
        %2473 = vmatprep.subr.mxu0 0.0
        %2474 = vmatpush1.msra.mxu0 0.0
        %2475 = vmatprep.subr.mxu0 0.0
        %2476 = vmatpush1.msra.mxu0 0.0
        %2477 = vmatprep.subr.mxu0 0.0
        %2478 = vmatpush1.msra.mxu0 0.0
        %2479 = vmatprep.subr.mxu0 0.0
        %2480 = vmatpush1.msra.mxu0 0.0
        %2481 = vmatprep.subr.mxu0 0.0
        %2482 = vmatpush1.msra.mxu0 %v2452
        %2483 = vmatprep.subr.mxu0 0.0
        %2484 = vmatpush1.msra.mxu0 %v2451
        %2485 = vmatprep.subr.mxu0 0.0
        %2486 = vmatpush1.msra.mxu0 %v2450
        %2487 = vmatprep.subr.mxu0 0.0
        %2488 = vmatpush1.msra.mxu0 %v2449
        %2489 = vmatprep.subr.mxu0 0.0
        %2490 = vmatpush2.msra.mxu0 0.0
        %2491 = vmatprep.subr.mxu0 0.0
        %2492 = vmatpush2.msra.mxu0 0.0
        %2493 = vmatprep.subr.mxu0 0.0
        %2494 = vmatpush2.msra.mxu0 0.0
        %2495 = vmatprep.subr.mxu0 0.0
        %2496 = vmatpush2.msra.mxu0 0.0
        %2497 = vmatprep.subr.mxu0 0.0
        %2498 = vmatpush2.msra.mxu0 0.0
        %2499 = vmatprep.subr.mxu0 0.0
        %2500 = vmatpush2.msra.mxu0 0.0
        %2501 = vmatprep.subr.mxu0 0.0
        %2502 = vmatpush2.msra.mxu0 0.0
        %2503 = vmatprep.subr.mxu0 0.0
        %2504 = vmatpush2.msra.mxu0 0.0
        %2505 = vmatprep.subr.mxu0 0.0
        %2506 = vmatpush2.msra.mxu0 0.0
        %2507 = vmatprep.subr.mxu0 0.0
        %2508 = vmatpush2.msra.mxu0 0.0
        %2509 = vmatprep.subr.mxu0 0.0
        %2510 = vmatpush2.msra.mxu0 0.0
        %2511 = vmatprep.subr.mxu0 0.0
        %2512 = vmatpush2.msra.mxu0 0.0
        %2513 = vmatprep.subr.mxu0 0.0
        %2514 = vmatpush2.msra.mxu0 0.0
        %2515 = vmatprep.subr.mxu0 0.0
        %2516 = vmatpush2.msra.mxu0 0.0
        %2517 = vmatprep.subr.mxu0 0.0
        %2518 = vmatpush2.msra.mxu0 0.0
        %2519 = vmatprep.subr.mxu0 0.0
        %2520 = vmatpush2.msra.mxu0 0.0
        %2521 = vmatprep.mubr.f32.mxu0 0.0
        %2522 = vmatmul.mubr.f32.gmra.mxu0 %v800
        %v2523 = vpop.f32.mrf.mxu0
        %v2524 = vadd.f32 0.0, %v2523
        %v2525 = vpop.f32.mrf.mxu0
        %2526 = vdwg.mxu0
        %v2527 = vadd.f32 %v2213, %v2524
        %v2528 = vld [vmem:[%s284 + $0x1c] sm:$0xf]
        %v2531 = vunpack.c.l.s4 1966171168
        %v2532 = vunpack.c.0.s8 %v2531
        %v2533 = vlaneseq
        %v2534 = vshrl.u32 %v2533, 7
        %v2535 = vsub.s32 %v2532, %v2534
        %v2536 = vrot.slane %v2528, %v2535
        %v2537 = vcombine.high %v2536, %v2536
        %v2539 = vunpack.c.l.s4 1966171168
        %v2540 = vunpack.c.0.s8 %v2539
        %v2541 = vlaneseq
        %v2542 = vshrl.u32 %v2541, 7
        %v2543 = vsub.s32 %v2540, %v2542
        %v2544 = vrot.slane %v2536, %v2543
        %v2546 = vunpack.c.l.s4 1966171168
        %v2547 = vunpack.c.0.s8 %v2546
        %v2548 = vlaneseq
        %v2549 = vshrl.u32 %v2548, 7
        %v2550 = vsub.s32 %v2547, %v2549
        %v2551 = vrot.slane %v2537, %v2550
        %v2552 = vcombine.high %v2544, %v2544
        %v2553 = vcombine.high %v2551, %v2551
        %v2554 = vlaneseq
        %v2555 = vshrl.u32 %v2554, 7
        %v2556 = vsub.s32 0, %v2555
        %v2557 = vrot.slane %v2544, %v2556
        %v2558 = vlaneseq
        %v2559 = vshrl.u32 %v2558, 7
        %v2560 = vsub.s32 0, %v2559
        %v2561 = vrot.slane %v2551, %v2560
        %v2562 = vlaneseq
        %v2563 = vshrl.u32 %v2562, 7
        %v2564 = vsub.s32 0, %v2563
        %v2565 = vrot.slane %v2552, %v2564
        %v2566 = vlaneseq
        %v2567 = vshrl.u32 %v2566, 7
        %v2568 = vsub.s32 0, %v2567
        %v2569 = vrot.slane %v2553, %v2568
        %v2574 = vmul.f32 %v2557, %v2528
        %v2575 = vmul.f32 %v2561, %v2528
        %v2576 = vmul.f32 %v2565, %v2528
        %v2577 = vmul.f32 %v2569, %v2528
        %v2582 = vcombine.low %v2574, %v2575
        %v2583 = vcombine.low %v2576, %v2577
        %2586 = vmatprep.subr.mxu0 0.0
        %2587 = vmatpush1.msra.mxu0 0.0
        %2588 = vmatprep.subr.mxu0 0.0
        %2589 = vmatpush1.msra.mxu0 0.0
        %2590 = vmatprep.subr.mxu0 0.0
        %2591 = vmatpush1.msra.mxu0 0.0
        %2592 = vmatprep.subr.mxu0 0.0
        %2593 = vmatpush1.msra.mxu0 0.0
        %2594 = vmatprep.subr.mxu0 0.0
        %2595 = vmatpush1.msra.mxu0 0.0
        %2596 = vmatprep.subr.mxu0 0.0
        %2597 = vmatpush1.msra.mxu0 0.0
        %2598 = vmatprep.subr.mxu0 0.0
        %2599 = vmatpush1.msra.mxu0 0.0
        %2600 = vmatprep.subr.mxu0 0.0
        %2601 = vmatpush1.msra.mxu0 0.0
        %2602 = vmatprep.subr.mxu0 0.0
        %2603 = vmatpush1.msra.mxu0 0.0
        %2604 = vmatprep.subr.mxu0 0.0
        %2605 = vmatpush1.msra.mxu0 0.0
        %2606 = vmatprep.subr.mxu0 0.0
        %2607 = vmatpush1.msra.mxu0 0.0
        %2608 = vmatprep.subr.mxu0 0.0
        %2609 = vmatpush1.msra.mxu0 0.0
        %2610 = vmatprep.subr.mxu0 0.0
        %2611 = vmatpush1.msra.mxu0 0.0
        %2612 = vmatprep.subr.mxu0 0.0
        %2613 = vmatpush1.msra.mxu0 0.0
        %2614 = vmatprep.subr.mxu0 0.0
        %2615 = vmatpush1.msra.mxu0 %v2583
        %2616 = vmatprep.subr.mxu0 0.0
        %2617 = vmatpush1.msra.mxu0 %v2582
        %2618 = vmatprep.subr.mxu0 0.0
        %2619 = vmatpush2.msra.mxu0 0.0
        %2620 = vmatprep.subr.mxu0 0.0
        %2621 = vmatpush2.msra.mxu0 0.0
        %2622 = vmatprep.subr.mxu0 0.0
        %2623 = vmatpush2.msra.mxu0 0.0
        %2624 = vmatprep.subr.mxu0 0.0
        %2625 = vmatpush2.msra.mxu0 0.0
        %2626 = vmatprep.subr.mxu0 0.0
        %2627 = vmatpush2.msra.mxu0 0.0
        %2628 = vmatprep.subr.mxu0 0.0
        %2629 = vmatpush2.msra.mxu0 0.0
        %2630 = vmatprep.subr.mxu0 0.0
        %2631 = vmatpush2.msra.mxu0 0.0
        %2632 = vmatprep.subr.mxu0 0.0
        %2633 = vmatpush2.msra.mxu0 0.0
        %2634 = vmatprep.subr.mxu0 0.0
        %2635 = vmatpush2.msra.mxu0 0.0
        %2636 = vmatprep.subr.mxu0 0.0
        %2637 = vmatpush2.msra.mxu0 0.0
        %2638 = vmatprep.subr.mxu0 0.0
        %2639 = vmatpush2.msra.mxu0 0.0
        %2640 = vmatprep.subr.mxu0 0.0
        %2641 = vmatpush2.msra.mxu0 0.0
        %2642 = vmatprep.subr.mxu0 0.0
        %2643 = vmatpush2.msra.mxu0 0.0
        %2644 = vmatprep.subr.mxu0 0.0
        %2645 = vmatpush2.msra.mxu0 0.0
        %2646 = vmatprep.subr.mxu0 0.0
        %2647 = vmatpush2.msra.mxu0 0.0
        %2648 = vmatprep.subr.mxu0 0.0
        %2649 = vmatpush2.msra.mxu0 0.0
        %2650 = vmatprep.mubr.f32.mxu0 0.0
        %2651 = vmatmul.mubr.f32.gmra.mxu0 %v384
        %v2652 = vpop.f32.mrf.mxu0
        %v2653 = vadd.f32 0.0, %v2652
        %v2654 = vpop.f32.mrf.mxu0
        %2655 = vdwg.mxu0
        %v2656 = vadd.f32 %v2342, %v2653
        %v2658 = vcombine.high %v2653, %v2653
        %v2660 = vunpack.c.l.s4 1966171168
        %v2661 = vunpack.c.0.s8 %v2660
        %v2662 = vlaneseq
        %v2663 = vshrl.u32 %v2662, 7
        %v2664 = vsub.s32 %v2661, %v2663
        %v2665 = vrot.slane %v2653, %v2664
        %v2667 = vunpack.c.l.s4 1966171168
        %v2668 = vunpack.c.0.s8 %v2667
        %v2669 = vlaneseq
        %v2670 = vshrl.u32 %v2669, 7
        %v2671 = vsub.s32 %v2668, %v2670
        %v2672 = vrot.slane %v2658, %v2671
        %v2673 = vcombine.high %v2665, %v2665
        %v2674 = vcombine.high %v2672, %v2672
        %v2676 = vunpack.c.l.s4 1966171168
        %v2677 = vunpack.c.0.s8 %v2676
        %v2678 = vlaneseq
        %v2679 = vshrl.u32 %v2678, 7
        %v2680 = vsub.s32 %v2677, %v2679
        %v2681 = vrot.slane %v2665, %v2680
        %v2683 = vunpack.c.l.s4 1966171168
        %v2684 = vunpack.c.0.s8 %v2683
        %v2685 = vlaneseq
        %v2686 = vshrl.u32 %v2685, 7
        %v2687 = vsub.s32 %v2684, %v2686
        %v2688 = vrot.slane %v2672, %v2687
        %v2690 = vunpack.c.l.s4 1966171168
        %v2691 = vunpack.c.0.s8 %v2690
        %v2692 = vlaneseq
        %v2693 = vshrl.u32 %v2692, 7
        %v2694 = vsub.s32 %v2691, %v2693
        %v2695 = vrot.slane %v2673, %v2694
        %v2697 = vunpack.c.l.s4 1966171168
        %v2698 = vunpack.c.0.s8 %v2697
        %v2699 = vlaneseq
        %v2700 = vshrl.u32 %v2699, 7
        %v2701 = vsub.s32 %v2698, %v2700
        %v2702 = vrot.slane %v2674, %v2701
        %v2703 = vcombine.high %v2681, %v2681
        %v2704 = vcombine.high %v2688, %v2688
        %v2705 = vcombine.high %v2695, %v2695
        %v2706 = vcombine.high %v2702, %v2702
        %v2707 = vlaneseq
        %v2708 = vshrl.u32 %v2707, 7
        %v2709 = vsub.s32 0, %v2708
        %v2710 = vrot.slane %v2681, %v2709
        %v2711 = vlaneseq
        %v2712 = vshrl.u32 %v2711, 7
        %v2713 = vsub.s32 0, %v2712
        %v2714 = vrot.slane %v2695, %v2713
        %v2715 = vlaneseq
        %v2716 = vshrl.u32 %v2715, 7
        %v2717 = vsub.s32 0, %v2716
        %v2718 = vrot.slane %v2703, %v2717
        %v2719 = vlaneseq
        %v2720 = vshrl.u32 %v2719, 7
        %v2721 = vsub.s32 0, %v2720
        %v2722 = vrot.slane %v2705, %v2721
        %v2723 = vlaneseq
        %v2724 = vshrl.u32 %v2723, 7
        %v2725 = vsub.s32 0, %v2724
        %v2726 = vrot.slane %v2688, %v2725
        %v2727 = vlaneseq
        %v2728 = vshrl.u32 %v2727, 7
        %v2729 = vsub.s32 0, %v2728
        %v2730 = vrot.slane %v2702, %v2729
        %v2731 = vlaneseq
        %v2732 = vshrl.u32 %v2731, 7
        %v2733 = vsub.s32 0, %v2732
        %v2734 = vrot.slane %v2704, %v2733
        %v2735 = vlaneseq
        %v2736 = vshrl.u32 %v2735, 7
        %v2737 = vsub.s32 0, %v2736
        %v2738 = vrot.slane %v2706, %v2737
        %v2747 = vmul.f32 %v2710, %v2528
        %v2748 = vmul.f32 %v2714, %v2528
        %v2749 = vmul.f32 %v2718, %v2528
        %v2750 = vmul.f32 %v2722, %v2528
        %v2751 = vmul.f32 %v2726, %v2528
        %v2752 = vmul.f32 %v2730, %v2528
        %v2753 = vmul.f32 %v2734, %v2528
        %v2754 = vmul.f32 %v2738, %v2528
        %v2763 = vcombine.low %v2747, %v2748
        %v2764 = vcombine.low %v2749, %v2750
        %v2765 = vcombine.low %v2751, %v2752
        %v2766 = vcombine.low %v2753, %v2754
        %2771 = vmatprep.subr.mxu0 0.0
        %2772 = vmatpush1.msra.mxu0 0.0
        %2773 = vmatprep.subr.mxu0 0.0
        %2774 = vmatpush1.msra.mxu0 0.0
        %2775 = vmatprep.subr.mxu0 0.0
        %2776 = vmatpush1.msra.mxu0 0.0
        %2777 = vmatprep.subr.mxu0 0.0
        %2778 = vmatpush1.msra.mxu0 0.0
        %2779 = vmatprep.subr.mxu0 0.0
        %2780 = vmatpush1.msra.mxu0 0.0
        %2781 = vmatprep.subr.mxu0 0.0
        %2782 = vmatpush1.msra.mxu0 0.0
        %2783 = vmatprep.subr.mxu0 0.0
        %2784 = vmatpush1.msra.mxu0 0.0
        %2785 = vmatprep.subr.mxu0 0.0
        %2786 = vmatpush1.msra.mxu0 0.0
        %2787 = vmatprep.subr.mxu0 0.0
        %2788 = vmatpush1.msra.mxu0 0.0
        %2789 = vmatprep.subr.mxu0 0.0
        %2790 = vmatpush1.msra.mxu0 0.0
        %2791 = vmatprep.subr.mxu0 0.0
        %2792 = vmatpush1.msra.mxu0 0.0
        %2793 = vmatprep.subr.mxu0 0.0
        %2794 = vmatpush1.msra.mxu0 0.0
        %2795 = vmatprep.subr.mxu0 0.0
        %2796 = vmatpush1.msra.mxu0 %v2766
        %2797 = vmatprep.subr.mxu0 0.0
        %2798 = vmatpush1.msra.mxu0 %v2765
        %2799 = vmatprep.subr.mxu0 0.0
        %2800 = vmatpush1.msra.mxu0 %v2764
        %2801 = vmatprep.subr.mxu0 0.0
        %2802 = vmatpush1.msra.mxu0 %v2763
        %2803 = vmatprep.subr.mxu0 0.0
        %2804 = vmatpush2.msra.mxu0 0.0
        %2805 = vmatprep.subr.mxu0 0.0
        %2806 = vmatpush2.msra.mxu0 0.0
        %2807 = vmatprep.subr.mxu0 0.0
        %2808 = vmatpush2.msra.mxu0 0.0
        %2809 = vmatprep.subr.mxu0 0.0
        %2810 = vmatpush2.msra.mxu0 0.0
        %2811 = vmatprep.subr.mxu0 0.0
        %2812 = vmatpush2.msra.mxu0 0.0
        %2813 = vmatprep.subr.mxu0 0.0
        %2814 = vmatpush2.msra.mxu0 0.0
        %2815 = vmatprep.subr.mxu0 0.0
        %2816 = vmatpush2.msra.mxu0 0.0
        %2817 = vmatprep.subr.mxu0 0.0
        %2818 = vmatpush2.msra.mxu0 0.0
        %2819 = vmatprep.subr.mxu0 0.0
        %2820 = vmatpush2.msra.mxu0 0.0
        %2821 = vmatprep.subr.mxu0 0.0
        %2822 = vmatpush2.msra.mxu0 0.0
        %2823 = vmatprep.subr.mxu0 0.0
        %2824 = vmatpush2.msra.mxu0 0.0
        %2825 = vmatprep.subr.mxu0 0.0
        %2826 = vmatpush2.msra.mxu0 0.0
        %2827 = vmatprep.subr.mxu0 0.0
        %2828 = vmatpush2.msra.mxu0 0.0
        %2829 = vmatprep.subr.mxu0 0.0
        %2830 = vmatpush2.msra.mxu0 0.0
        %2831 = vmatprep.subr.mxu0 0.0
        %2832 = vmatpush2.msra.mxu0 0.0
        %2833 = vmatprep.subr.mxu0 0.0
        %2834 = vmatpush2.msra.mxu0 0.0
        %2835 = vmatprep.mubr.f32.mxu0 0.0
        %2836 = vmatmul.mubr.f32.gmra.mxu0 %v800
        %v2837 = vpop.f32.mrf.mxu0
        %v2838 = vadd.f32 0.0, %v2837
        %v2839 = vpop.f32.mrf.mxu0
        %2840 = vdwg.mxu0
        %v2841 = vadd.f32 %v2527, %v2838
        %v2842 = vld [vmem:[#allocation7] sm:$0xff]
        %v2843 = vld [vmem:[#allocation7 + $0x8] sm:$0xff]
        %v2844 = vld [vmem:[#allocation7 + $0x10] sm:$0xff]
        %v2845 = vld [vmem:[#allocation7 + $0x18] sm:$0xff]
        %v2846 = vld [vmem:[%s284] sm:$0xff]
        %v2847 = vld [vmem:[%s284 + $0x8] sm:$0xff]
        %v2848 = vld [vmem:[%s284 + $0x10] sm:$0xff]
        %v2849 = vld [vmem:[%s284 + $0x18] sm:$0xff]
        %v2850 = vld [vmem:[%s284 + $0x20] sm:$0xff]
        %vm2851 = vcmask 326656
        %v2853 = vsel %vm2851, %v2842, 0
        %v2856 = vsel %vm2851, %v2843, 0
        %v2859 = vsel %vm2851, %v2844, 0
        %v2862 = vsel %vm2851, %v2845, 0
        %2864 = vmatprep.subr.mxu0 0.0
        %2865 = vmatpush1.msra.mxu0 0.0
        %2866 = vmatprep.subr.mxu0 0.0
        %2867 = vmatpush1.msra.mxu0 0.0
        %2868 = vmatprep.subr.mxu0 0.0
        %2869 = vmatpush1.msra.mxu0 0.0
        %2870 = vmatprep.subr.mxu0 0.0
        %2871 = vmatpush1.msra.mxu0 0.0
        %2872 = vmatprep.subr.mxu0 0.0
        %2873 = vmatpush1.msra.mxu0 0.0
        %2874 = vmatprep.subr.mxu0 0.0
        %2875 = vmatpush1.msra.mxu0 0.0
        %2876 = vmatprep.subr.mxu0 0.0
        %2877 = vmatpush1.msra.mxu0 0.0
        %2878 = vmatprep.subr.mxu0 0.0
        %2879 = vmatpush1.msra.mxu0 0.0
        %2880 = vmatprep.subr.mxu0 0.0
        %2881 = vmatpush1.msra.mxu0 0.0
        %2882 = vmatprep.subr.mxu0 0.0
        %2883 = vmatpush1.msra.mxu0 0.0
        %2884 = vmatprep.subr.mxu0 0.0
        %2885 = vmatpush1.msra.mxu0 0.0
        %2886 = vmatprep.subr.mxu0 0.0
        %2887 = vmatpush1.msra.mxu0 %v2850
        %2888 = vmatprep.subr.mxu0 0.0
        %2889 = vmatpush1.msra.mxu0 %v2849
        %2890 = vmatprep.subr.mxu0 0.0
        %2891 = vmatpush1.msra.mxu0 %v2848
        %2892 = vmatprep.subr.mxu0 0.0
        %2893 = vmatpush1.msra.mxu0 %v2847
        %2894 = vmatprep.subr.mxu0 0.0
        %2895 = vmatpush1.msra.mxu0 %v2846
        %2896 = vmatprep.subr.mxu0 0.0
        %2897 = vmatpush2.msra.mxu0 0.0
        %2898 = vmatprep.subr.mxu0 0.0
        %2899 = vmatpush2.msra.mxu0 0.0
        %2900 = vmatprep.subr.mxu0 0.0
        %2901 = vmatpush2.msra.mxu0 0.0
        %2902 = vmatprep.subr.mxu0 0.0
        %2903 = vmatpush2.msra.mxu0 0.0
        %2904 = vmatprep.subr.mxu0 0.0
        %2905 = vmatpush2.msra.mxu0 0.0
        %2906 = vmatprep.subr.mxu0 0.0
        %2907 = vmatpush2.msra.mxu0 0.0
        %2908 = vmatprep.subr.mxu0 0.0
        %2909 = vmatpush2.msra.mxu0 0.0
        %2910 = vmatprep.subr.mxu0 0.0
        %2911 = vmatpush2.msra.mxu0 0.0
        %2912 = vmatprep.subr.mxu0 0.0
        %2913 = vmatpush2.msra.mxu0 0.0
        %2914 = vmatprep.subr.mxu0 0.0
        %2915 = vmatpush2.msra.mxu0 0.0
        %2916 = vmatprep.subr.mxu0 0.0
        %2917 = vmatpush2.msra.mxu0 0.0
        %2918 = vmatprep.subr.mxu0 0.0
        %2919 = vmatpush2.msra.mxu0 0.0
        %2920 = vmatprep.subr.mxu0 0.0
        %2921 = vmatpush2.msra.mxu0 0.0
        %2922 = vmatprep.subr.mxu0 0.0
        %2923 = vmatpush2.msra.mxu0 0.0
        %2924 = vmatprep.subr.mxu0 0.0
        %2925 = vmatpush2.msra.mxu0 0.0
        %2926 = vmatprep.subr.mxu0 0.0
        %2927 = vmatpush2.msra.mxu0 0.0
        %2928 = vmatprep.mubr.f32.mxu0 0.0
        %2929 = vmatmul.mubr.f32.gmra.mxu0 %v2853
        %v2930 = vpop.f32.mrf.mxu0
        %v2931 = vadd.f32 0.0, %v2930
        %v2932 = vpop.f32.mrf.mxu0
        %2933 = vmatprep.mubr.f32.mxu0 0.0
        %2934 = vmatmul.mubr.f32.gmra.mxu0 %v2856
        %v2935 = vpop.f32.mrf.mxu0
        %v2936 = vadd.f32 0.0, %v2935
        %v2937 = vpop.f32.mrf.mxu0
        %2938 = vmatprep.mubr.f32.mxu0 0.0
        %2939 = vmatmul.mubr.f32.gmra.mxu0 %v2859
        %v2940 = vpop.f32.mrf.mxu0
        %v2941 = vadd.f32 0.0, %v2940
        %v2942 = vpop.f32.mrf.mxu0
        %2943 = vmatprep.mubr.f32.mxu0 0.0
        %2944 = vmatmul.mubr.f32.gmra.mxu0 %v2862
        %v2945 = vpop.f32.mrf.mxu0
        %v2946 = vadd.f32 0.0, %v2945
        %v2947 = vpop.f32.mrf.mxu0
        %2948 = vdwg.mxu0
        %v2949 = vmax.f32 %v2931, 0.0
        %v2950 = vmax.f32 %v2936, 0.0
        %v2951 = vmax.f32 %v2941, 0.0
        %v2952 = vmax.f32 %v2946, 0.0
        %v2953 = vld [vmem:[%s4] sm:$0xff]
        %v2954 = vld [vmem:[%s4 + $0x8] sm:$0xff]
        %v2955 = vld [vmem:[%s5] sm:$0xff]
        %v2956 = vld [vmem:[%s5 + $0x8] sm:$0xff]
        %2958 = vset.pattern.permute.xlu0 0
        %2959 = vperm.xlu0 %2958, %v2955
        %v2960 = vpop.permute.xlu0 %2959
        %2963 = vset.pattern.permute.xlu0 0
        %2964 = vperm.xlu0 %2963, %v2956
        %v2965 = vpop.permute.xlu0 %2964
        %v2968 = vsel %vm798, %v2953, 0
        %v2971 = vsel %vm798, %v2954, 0
        %2973 = vmatprep.subr.mxu0 0.0
        %2974 = vmatpush1.msra.mxu0 0.0
        %2975 = vmatprep.subr.mxu0 0.0
        %2976 = vmatpush1.msra.mxu0 0.0
        %2977 = vmatprep.subr.mxu0 0.0
        %2978 = vmatpush1.msra.mxu0 0.0
        %2979 = vmatprep.subr.mxu0 0.0
        %2980 = vmatpush1.msra.mxu0 0.0
        %2981 = vmatprep.subr.mxu0 0.0
        %2982 = vmatpush1.msra.mxu0 0.0
        %2983 = vmatprep.subr.mxu0 0.0
        %2984 = vmatpush1.msra.mxu0 0.0
        %2985 = vmatprep.subr.mxu0 0.0
        %2986 = vmatpush1.msra.mxu0 0.0
        %2987 = vmatprep.subr.mxu0 0.0
        %2988 = vmatpush1.msra.mxu0 0.0
        %2989 = vmatprep.subr.mxu0 0.0
        %2990 = vmatpush1.msra.mxu0 0.0
        %2991 = vmatprep.subr.mxu0 0.0
        %2992 = vmatpush1.msra.mxu0 0.0
        %2993 = vmatprep.subr.mxu0 0.0
        %2994 = vmatpush1.msra.mxu0 0.0
        %2995 = vmatprep.subr.mxu0 0.0
        %2996 = vmatpush1.msra.mxu0 0.0
        %2997 = vmatprep.subr.mxu0 0.0
        %2998 = vmatpush1.msra.mxu0 %v2952
        %2999 = vmatprep.subr.mxu0 0.0
        %3000 = vmatpush1.msra.mxu0 %v2951
        %3001 = vmatprep.subr.mxu0 0.0
        %3002 = vmatpush1.msra.mxu0 %v2950
        %3003 = vmatprep.subr.mxu0 0.0
        %3004 = vmatpush1.msra.mxu0 %v2949
        %3005 = vmatprep.subr.mxu0 0.0
        %3006 = vmatpush2.msra.mxu0 0.0
        %3007 = vmatprep.subr.mxu0 0.0
        %3008 = vmatpush2.msra.mxu0 0.0
        %3009 = vmatprep.subr.mxu0 0.0
        %3010 = vmatpush2.msra.mxu0 0.0
        %3011 = vmatprep.subr.mxu0 0.0
        %3012 = vmatpush2.msra.mxu0 0.0
        %3013 = vmatprep.subr.mxu0 0.0
        %3014 = vmatpush2.msra.mxu0 0.0
        %3015 = vmatprep.subr.mxu0 0.0
        %3016 = vmatpush2.msra.mxu0 0.0
        %3017 = vmatprep.subr.mxu0 0.0
        %3018 = vmatpush2.msra.mxu0 0.0
        %3019 = vmatprep.subr.mxu0 0.0
        %3020 = vmatpush2.msra.mxu0 0.0
        %3021 = vmatprep.subr.mxu0 0.0
        %3022 = vmatpush2.msra.mxu0 0.0
        %3023 = vmatprep.subr.mxu0 0.0
        %3024 = vmatpush2.msra.mxu0 0.0
        %3025 = vmatprep.subr.mxu0 0.0
        %3026 = vmatpush2.msra.mxu0 0.0
        %3027 = vmatprep.subr.mxu0 0.0
        %3028 = vmatpush2.msra.mxu0 0.0
        %3029 = vmatprep.subr.mxu0 0.0
        %3030 = vmatpush2.msra.mxu0 0.0
        %3031 = vmatprep.subr.mxu0 0.0
        %3032 = vmatpush2.msra.mxu0 0.0
        %3033 = vmatprep.subr.mxu0 0.0
        %3034 = vmatpush2.msra.mxu0 0.0
        %3035 = vmatprep.subr.mxu0 0.0
        %3036 = vmatpush2.msra.mxu0 0.0
        %3037 = vmatprep.mubr.f32.mxu0 0.0
        %3038 = vmatmul.mubr.f32.gmra.mxu0 %v2968
        %v3039 = vpop.f32.mrf.mxu0
        %v3040 = vadd.f32 %v2960, %v3039
        %v3041 = vpop.f32.mrf.mxu0
        %3042 = vmatprep.mubr.f32.mxu0 0.0
        %3043 = vmatmul.mubr.f32.gmra.mxu0 %v2971
        %v3044 = vpop.f32.mrf.mxu0
        %v3045 = vadd.f32 %v2965, %v3044
        %v3046 = vpop.f32.mrf.mxu0
        %3047 = vdwg.mxu0
        %v3048 = vmax.f32 %v3040, 0.0
        %v3049 = vmax.f32 %v3045, 0.0
        %v3050 = vld [vmem:[%s6] sm:$0x1]
        %v3052 = vlaneseq
        %v3053 = vshrl.u32 %v3052, 7
        %v3054 = vsub.s32 0, %v3053
        %v3055 = vrot.slane %v3050, %v3054
        %3056 = vrot.lane.b32.xlu0 %v3055, 88
        %v3057 = vpop.permute.xlu0 %3056
        %vm3058 = vcmask 64512
        %v3059 = vsel %vm3058, %v3057, 0
        %3061 = vmatprep.subr.mxu0 0.0
        %3062 = vmatpush1.msra.mxu0 0.0
        %3063 = vmatprep.subr.mxu0 0.0
        %3064 = vmatpush1.msra.mxu0 0.0
        %3065 = vmatprep.subr.mxu0 0.0
        %3066 = vmatpush1.msra.mxu0 0.0
        %3067 = vmatprep.subr.mxu0 0.0
        %3068 = vmatpush1.msra.mxu0 0.0
        %3069 = vmatprep.subr.mxu0 0.0
        %3070 = vmatpush1.msra.mxu0 0.0
        %3071 = vmatprep.subr.mxu0 0.0
        %3072 = vmatpush1.msra.mxu0 0.0
        %3073 = vmatprep.subr.mxu0 0.0
        %3074 = vmatpush1.msra.mxu0 0.0
        %3075 = vmatprep.subr.mxu0 0.0
        %3076 = vmatpush1.msra.mxu0 0.0
        %3077 = vmatprep.subr.mxu0 0.0
        %3078 = vmatpush1.msra.mxu0 0.0
        %3079 = vmatprep.subr.mxu0 0.0
        %3080 = vmatpush1.msra.mxu0 0.0
        %3081 = vmatprep.subr.mxu0 0.0
        %3082 = vmatpush1.msra.mxu0 0.0
        %3083 = vmatprep.subr.mxu0 0.0
        %3084 = vmatpush1.msra.mxu0 0.0
        %3085 = vmatprep.subr.mxu0 0.0
        %3086 = vmatpush1.msra.mxu0 0.0
        %3087 = vmatprep.subr.mxu0 0.0
        %3088 = vmatpush1.msra.mxu0 0.0
        %3089 = vmatprep.subr.mxu0 0.0
        %3090 = vmatpush1.msra.mxu0 0.0
        %3091 = vmatprep.subr.mxu0 0.0
        %3092 = vmatpush1.msra.mxu0 %v2656
        %3093 = vmatprep.subr.mxu0 0.0
        %3094 = vmatpush2.msra.mxu0 0.0
        %3095 = vmatprep.subr.mxu0 0.0
        %3096 = vmatpush2.msra.mxu0 0.0
        %3097 = vmatprep.subr.mxu0 0.0
        %3098 = vmatpush2.msra.mxu0 0.0
        %3099 = vmatprep.subr.mxu0 0.0
        %3100 = vmatpush2.msra.mxu0 0.0
        %3101 = vmatprep.subr.mxu0 0.0
        %3102 = vmatpush2.msra.mxu0 0.0
        %3103 = vmatprep.subr.mxu0 0.0
        %3104 = vmatpush2.msra.mxu0 0.0
        %3105 = vmatprep.subr.mxu0 0.0
        %3106 = vmatpush2.msra.mxu0 0.0
        %3107 = vmatprep.subr.mxu0 0.0
        %3108 = vmatpush2.msra.mxu0 0.0
        %3109 = vmatprep.subr.mxu0 0.0
        %3110 = vmatpush2.msra.mxu0 0.0
        %3111 = vmatprep.subr.mxu0 0.0
        %3112 = vmatpush2.msra.mxu0 0.0
        %3113 = vmatprep.subr.mxu0 0.0
        %3114 = vmatpush2.msra.mxu0 0.0
        %3115 = vmatprep.subr.mxu0 0.0
        %3116 = vmatpush2.msra.mxu0 0.0
        %3117 = vmatprep.subr.mxu0 0.0
        %3118 = vmatpush2.msra.mxu0 0.0
        %3119 = vmatprep.subr.mxu0 0.0
        %3120 = vmatpush2.msra.mxu0 0.0
        %3121 = vmatprep.subr.mxu0 0.0
        %3122 = vmatpush2.msra.mxu0 0.0
        %3123 = vmatprep.subr.mxu0 0.0
        %3124 = vmatpush2.msra.mxu0 0.0
        %3125 = vmatprep.mubr.f32.mxu0 0.0
        %3126 = vmatmul.mubr.f32.gmra.mxu0 %v3059
        %v3127 = vpop.f32.mrf.mxu0
        %v3128 = vadd.f32 0.0, %v3127
        %v3129 = vpop.f32.mrf.mxu0
        %3130 = vdwg.mxu0
        %v3131 = vsel %vm2851, %v3050, 0
        %3133 = vmatprep.subr.mxu0 0.0
        %3134 = vmatpush1.msra.mxu0 0.0
        %3135 = vmatprep.subr.mxu0 0.0
        %3136 = vmatpush1.msra.mxu0 0.0
        %3137 = vmatprep.subr.mxu0 0.0
        %3138 = vmatpush1.msra.mxu0 0.0
        %3139 = vmatprep.subr.mxu0 0.0
        %3140 = vmatpush1.msra.mxu0 0.0
        %3141 = vmatprep.subr.mxu0 0.0
        %3142 = vmatpush1.msra.mxu0 0.0
        %3143 = vmatprep.subr.mxu0 0.0
        %3144 = vmatpush1.msra.mxu0 0.0
        %3145 = vmatprep.subr.mxu0 0.0
        %3146 = vmatpush1.msra.mxu0 0.0
        %3147 = vmatprep.subr.mxu0 0.0
        %3148 = vmatpush1.msra.mxu0 0.0
        %3149 = vmatprep.subr.mxu0 0.0
        %3150 = vmatpush1.msra.mxu0 0.0
        %3151 = vmatprep.subr.mxu0 0.0
        %3152 = vmatpush1.msra.mxu0 0.0
        %3153 = vmatprep.subr.mxu0 0.0
        %3154 = vmatpush1.msra.mxu0 0.0
        %3155 = vmatprep.subr.mxu0 0.0
        %3156 = vmatpush1.msra.mxu0 %v2850
        %3157 = vmatprep.subr.mxu0 0.0
        %3158 = vmatpush1.msra.mxu0 %v2849
        %3159 = vmatprep.subr.mxu0 0.0
        %3160 = vmatpush1.msra.mxu0 %v2848
        %3161 = vmatprep.subr.mxu0 0.0
        %3162 = vmatpush1.msra.mxu0 %v2847
        %3163 = vmatprep.subr.mxu0 0.0
        %3164 = vmatpush1.msra.mxu0 %v2846
        %3165 = vmatprep.subr.mxu0 0.0
        %3166 = vmatpush2.msra.mxu0 0.0
        %3167 = vmatprep.subr.mxu0 0.0
        %3168 = vmatpush2.msra.mxu0 0.0
        %3169 = vmatprep.subr.mxu0 0.0
        %3170 = vmatpush2.msra.mxu0 0.0
        %3171 = vmatprep.subr.mxu0 0.0
        %3172 = vmatpush2.msra.mxu0 0.0
        %3173 = vmatprep.subr.mxu0 0.0
        %3174 = vmatpush2.msra.mxu0 0.0
        %3175 = vmatprep.subr.mxu0 0.0
        %3176 = vmatpush2.msra.mxu0 0.0
        %3177 = vmatprep.subr.mxu0 0.0
        %3178 = vmatpush2.msra.mxu0 0.0
        %3179 = vmatprep.subr.mxu0 0.0
        %3180 = vmatpush2.msra.mxu0 0.0
        %3181 = vmatprep.subr.mxu0 0.0
        %3182 = vmatpush2.msra.mxu0 0.0
        %3183 = vmatprep.subr.mxu0 0.0
        %3184 = vmatpush2.msra.mxu0 0.0
        %3185 = vmatprep.subr.mxu0 0.0
        %3186 = vmatpush2.msra.mxu0 0.0
        %3187 = vmatprep.subr.mxu0 0.0
        %3188 = vmatpush2.msra.mxu0 0.0
        %3189 = vmatprep.subr.mxu0 0.0
        %3190 = vmatpush2.msra.mxu0 0.0
        %3191 = vmatprep.subr.mxu0 0.0
        %3192 = vmatpush2.msra.mxu0 0.0
        %3193 = vmatprep.subr.mxu0 0.0
        %3194 = vmatpush2.msra.mxu0 0.0
        %3195 = vmatprep.subr.mxu0 0.0
        %3196 = vmatpush2.msra.mxu0 0.0
        %3197 = vmatprep.mubr.f32.mxu0 0.0
        %3198 = vmatmul.mubr.f32.gmra.mxu0 %v3131
        %v3199 = vpop.f32.mrf.mxu0
        %v3200 = vadd.f32 %v3128, %v3199
        %v3201 = vpop.f32.mrf.mxu0
        %3202 = vdwg.mxu0
        %3203 = vrot.lane.b32.xlu0 %v3055, 80
        %v3204 = vpop.permute.xlu0 %3203
        %v3205 = vsel %vm3058, %v3204, 0
        %3207 = vmatprep.subr.mxu0 0.0
        %3208 = vmatpush1.msra.mxu0 0.0
        %3209 = vmatprep.subr.mxu0 0.0
        %3210 = vmatpush1.msra.mxu0 0.0
        %3211 = vmatprep.subr.mxu0 0.0
        %3212 = vmatpush1.msra.mxu0 0.0
        %3213 = vmatprep.subr.mxu0 0.0
        %3214 = vmatpush1.msra.mxu0 0.0
        %3215 = vmatprep.subr.mxu0 0.0
        %3216 = vmatpush1.msra.mxu0 0.0
        %3217 = vmatprep.subr.mxu0 0.0
        %3218 = vmatpush1.msra.mxu0 0.0
        %3219 = vmatprep.subr.mxu0 0.0
        %3220 = vmatpush1.msra.mxu0 0.0
        %3221 = vmatprep.subr.mxu0 0.0
        %3222 = vmatpush1.msra.mxu0 0.0
        %3223 = vmatprep.subr.mxu0 0.0
        %3224 = vmatpush1.msra.mxu0 0.0
        %3225 = vmatprep.subr.mxu0 0.0
        %3226 = vmatpush1.msra.mxu0 0.0
        %3227 = vmatprep.subr.mxu0 0.0
        %3228 = vmatpush1.msra.mxu0 0.0
        %3229 = vmatprep.subr.mxu0 0.0
        %3230 = vmatpush1.msra.mxu0 0.0
        %3231 = vmatprep.subr.mxu0 0.0
        %3232 = vmatpush1.msra.mxu0 0.0
        %3233 = vmatprep.subr.mxu0 0.0
        %3234 = vmatpush1.msra.mxu0 0.0
        %3235 = vmatprep.subr.mxu0 0.0
        %3236 = vmatpush1.msra.mxu0 0.0
        %3237 = vmatprep.subr.mxu0 0.0
        %3238 = vmatpush1.msra.mxu0 %v2841
        %3239 = vmatprep.subr.mxu0 0.0
        %3240 = vmatpush2.msra.mxu0 0.0
        %3241 = vmatprep.subr.mxu0 0.0
        %3242 = vmatpush2.msra.mxu0 0.0
        %3243 = vmatprep.subr.mxu0 0.0
        %3244 = vmatpush2.msra.mxu0 0.0
        %3245 = vmatprep.subr.mxu0 0.0
        %3246 = vmatpush2.msra.mxu0 0.0
        %3247 = vmatprep.subr.mxu0 0.0
        %3248 = vmatpush2.msra.mxu0 0.0
        %3249 = vmatprep.subr.mxu0 0.0
        %3250 = vmatpush2.msra.mxu0 0.0
        %3251 = vmatprep.subr.mxu0 0.0
        %3252 = vmatpush2.msra.mxu0 0.0
        %3253 = vmatprep.subr.mxu0 0.0
        %3254 = vmatpush2.msra.mxu0 0.0
        %3255 = vmatprep.subr.mxu0 0.0
        %3256 = vmatpush2.msra.mxu0 0.0
        %3257 = vmatprep.subr.mxu0 0.0
        %3258 = vmatpush2.msra.mxu0 0.0
        %3259 = vmatprep.subr.mxu0 0.0
        %3260 = vmatpush2.msra.mxu0 0.0
        %3261 = vmatprep.subr.mxu0 0.0
        %3262 = vmatpush2.msra.mxu0 0.0
        %3263 = vmatprep.subr.mxu0 0.0
        %3264 = vmatpush2.msra.mxu0 0.0
        %3265 = vmatprep.subr.mxu0 0.0
        %3266 = vmatpush2.msra.mxu0 0.0
        %3267 = vmatprep.subr.mxu0 0.0
        %3268 = vmatpush2.msra.mxu0 0.0
        %3269 = vmatprep.subr.mxu0 0.0
        %3270 = vmatpush2.msra.mxu0 0.0
        %3271 = vmatprep.mubr.f32.mxu0 0.0
        %3272 = vmatmul.mubr.f32.gmra.mxu0 %v3205
        %v3273 = vpop.f32.mrf.mxu0
        %v3274 = vadd.f32 0.0, %v3273
        %v3275 = vpop.f32.mrf.mxu0
        %3276 = vdwg.mxu0
        %v3277 = vadd.f32 %v3200, %v3274
        %3278 = vrot.lane.b32.xlu0 %v3055, 72
        %v3279 = vpop.permute.xlu0 %3278
        %v3280 = vsel %vm382, %v3279, 0
        %3282 = vmatprep.subr.mxu0 0.0
        %3283 = vmatpush1.msra.mxu0 0.0
        %3284 = vmatprep.subr.mxu0 0.0
        %3285 = vmatpush1.msra.mxu0 0.0
        %3286 = vmatprep.subr.mxu0 0.0
        %3287 = vmatpush1.msra.mxu0 0.0
        %3288 = vmatprep.subr.mxu0 0.0
        %3289 = vmatpush1.msra.mxu0 0.0
        %3290 = vmatprep.subr.mxu0 0.0
        %3291 = vmatpush1.msra.mxu0 0.0
        %3292 = vmatprep.subr.mxu0 0.0
        %3293 = vmatpush1.msra.mxu0 0.0
        %3294 = vmatprep.subr.mxu0 0.0
        %3295 = vmatpush1.msra.mxu0 0.0
        %3296 = vmatprep.subr.mxu0 0.0
        %3297 = vmatpush1.msra.mxu0 0.0
        %3298 = vmatprep.subr.mxu0 0.0
        %3299 = vmatpush1.msra.mxu0 0.0
        %3300 = vmatprep.subr.mxu0 0.0
        %3301 = vmatpush1.msra.mxu0 0.0
        %3302 = vmatprep.subr.mxu0 0.0
        %3303 = vmatpush1.msra.mxu0 0.0
        %3304 = vmatprep.subr.mxu0 0.0
        %3305 = vmatpush1.msra.mxu0 0.0
        %3306 = vmatprep.subr.mxu0 0.0
        %3307 = vmatpush1.msra.mxu0 0.0
        %3308 = vmatprep.subr.mxu0 0.0
        %3309 = vmatpush1.msra.mxu0 0.0
        %3310 = vmatprep.subr.mxu0 0.0
        %3311 = vmatpush1.msra.mxu0 %v3049
        %3312 = vmatprep.subr.mxu0 0.0
        %3313 = vmatpush1.msra.mxu0 %v3048
        %3314 = vmatprep.subr.mxu0 0.0
        %3315 = vmatpush2.msra.mxu0 0.0
        %3316 = vmatprep.subr.mxu0 0.0
        %3317 = vmatpush2.msra.mxu0 0.0
        %3318 = vmatprep.subr.mxu0 0.0
        %3319 = vmatpush2.msra.mxu0 0.0
        %3320 = vmatprep.subr.mxu0 0.0
        %3321 = vmatpush2.msra.mxu0 0.0
        %3322 = vmatprep.subr.mxu0 0.0
        %3323 = vmatpush2.msra.mxu0 0.0
        %3324 = vmatprep.subr.mxu0 0.0
        %3325 = vmatpush2.msra.mxu0 0.0
        %3326 = vmatprep.subr.mxu0 0.0
        %3327 = vmatpush2.msra.mxu0 0.0
        %3328 = vmatprep.subr.mxu0 0.0
        %3329 = vmatpush2.msra.mxu0 0.0
        %3330 = vmatprep.subr.mxu0 0.0
        %3331 = vmatpush2.msra.mxu0 0.0
        %3332 = vmatprep.subr.mxu0 0.0
        %3333 = vmatpush2.msra.mxu0 0.0
        %3334 = vmatprep.subr.mxu0 0.0
        %3335 = vmatpush2.msra.mxu0 0.0
        %3336 = vmatprep.subr.mxu0 0.0
        %3337 = vmatpush2.msra.mxu0 0.0
        %3338 = vmatprep.subr.mxu0 0.0
        %3339 = vmatpush2.msra.mxu0 0.0
        %3340 = vmatprep.subr.mxu0 0.0
        %3341 = vmatpush2.msra.mxu0 0.0
        %3342 = vmatprep.subr.mxu0 0.0
        %3343 = vmatpush2.msra.mxu0 0.0
        %3344 = vmatprep.subr.mxu0 0.0
        %3345 = vmatpush2.msra.mxu0 0.0
        %3346 = vmatprep.mubr.f32.mxu0 0.0
        %3347 = vmatmul.mubr.f32.gmra.mxu0 %v3280
        %v3348 = vpop.f32.mrf.mxu0
        %v3349 = vadd.f32 0.0, %v3348
        %v3350 = vpop.f32.mrf.mxu0
        %3351 = vdwg.mxu0
        %v3352 = vadd.f32 %v3277, %v3349
        %v3353 = vxor.u32 %v3352, 2147483648
        %v3354 = vmul.f32 %v3353, 1.442695
        %v3355 = vpow.pop %v3354
        %v3356 = vadd.f32 %v3355, 1.0
        %v3357 = vrcp.pop %v3356
        %v3358 = vmul.f32 1.0, %v3357
        %3359 = vst [vmem:[%s321] sm:$0x1] %v3358
        %s3360 = sand.u32 %s185, 1
        %s3361 = scalar_lea.sflag [#allocation4], %s3360
        %s3362 = sand.u32 %s185, 1
        %s3363 = scalar_lea.vmem [#allocation8], %s3362
        // Predicated region
        $region61: #{tpu_custom_call.1} parent=47 // pred_check
          %p3364 = pneg %p195
        $region62: #{tpu_custom_call.1} parent=47 // pred_check_branch
          %3366 = sbr.rel (%p3364) target = $region64
        $region63: #{tpu_custom_call.1} parent=47 // pred_region
          %s3368 = ssub.s32 16, 16
          %3369 = vsyncadd %s3361, %s3368
          %s3370 = smul.addr %s25, 16
          %s3371 = scalar_lea.hbm %s7, %s3370
          %s3373 = sshll.u32 %s3363, 4
          %s3374 = int_to_ptr.vmem [resolvable:$true] %s3373
          %3376 = dma.vmem_to_hbm [thread:$0]  %s3374, 16, %s3371, %s3361
        $region64: #{tpu_custom_call.1} parent=47 // pred_fallthru
          _
      $region48: #{tpu_custom_call.1} parent=5 // pred_fallthru
        _
      %p3377 = scmp.le.s32.totalorder 2, %s20
      // Predicated region
      $region65: #{tpu_custom_call.1} parent=5 // pred_check
        %p3378 = pneg %p3377
      $region66: #{tpu_custom_call.1} parent=5 // pred_check_branch
        %3380 = sbr.rel (%p3378) target = $region68
      $region67: #{tpu_custom_call.1} parent=5 // pred_region
        %s3381 = ssub.s32 %s20, 2
        // Predicated region
        $region69: #{tpu_custom_call.1} parent=67 // pred_check
          %p3382 = pneg %p201
        $region70: #{tpu_custom_call.1} parent=67 // pred_check_branch
          %3384 = sbr.rel (%p3382) target = $region72
        $region71: #{tpu_custom_call.1} parent=67 // pred_region
          %s3385 = sand.u32 %s186, 1
          %s3386 = scalar_lea.sflag [#allocation4], %s3385
          %s3387 = sand.u32 %s186, 1
          %s3388 = scalar_lea.vmem [#allocation8], %s3387
          %3389 = dma.done %s3386, 16
        $region72: #{tpu_custom_call.1} parent=67 // pred_fallthru
          _
      $region68: #{tpu_custom_call.1} parent=5 // pred_fallthru
        _
    $region6: #{tpu_custom_call.1} parent=1 // loop_footer
      %s24 = sadd.s32 1, %s20
    $region7: #{tpu_custom_call.1} parent=1 // loop_footer_branch
      %19 = sbr.rel target = $region3
    $region8: #{tpu_custom_call.1} parent=1 // loop_exit
      _
    %3390 = vsyncpa [#allocation3], 1
    %s3391 = scalar_lea.sflag [#allocation3], 1
    %3392 = vsyncpa %s3391, 1
    %3393 = vsyncpa [#allocation6], 1
    %3394 = vsyncpa [#allocation4], 1
    %s3395 = scalar_lea.sflag [#allocation4], 1
    %3396 = vsyncpa %s3395, 1

</llo_original>
